<compile_context>
chip_gen: v5e
topology: v5e:2x2
jax: 0.10.0
libtpu: 0.0.40
codegen_flags: <defaults>
</compile_context>

<pallas_src>
import functools

import jax
import jax.numpy as jnp
from jax import lax
from jax.experimental import pallas as pl
from jax.experimental.pallas import tpu as pltpu


_WEIGHT_ORDER = ("wq", "bq", "wk", "bk", "wv", "bv", "wm", "bm",
                 "w1a", "w1b", "b1", "w2", "b2")


def _round_up(x, m):
    return ((x + m - 1) // m) * m


def _vmem_capacity_bytes():
    try:
        info = pltpu.get_tpu_info()
        cap = getattr(info, "vmem_capacity_bytes", None)
        if cap:
            return int(cap)
    except Exception:
        pass
    return 64 << 20          # conservative (v7x-sized) fallback


# ---------------------------------------------------------------------------
# Fused AttentionalPropagation kernel for one (stacked-)batch element:
#   out = x + MLP([x, merge(MHA(x, source, source))])
# ---------------------------------------------------------------------------
def _attn_prop_kernel(*refs, num_heads, n_valid, q_tile, self_attn, compute_dtype):
    if self_attn:
        (x_ref, wq_ref, bq_ref, wk_ref, bk_ref, wv_ref, bv_ref, wm_ref, bm_ref,
         w1a_ref, w1b_ref, b1_ref, w2_ref, b2_ref, out_ref,
         h1_ref, sum_ref, ssq_ref) = refs
        s_ref = x_ref                     # self-attention: reuse x for K/V (one DMA)
    else:
        (x_ref, s_ref, wq_ref, bq_ref, wk_ref, bk_ref, wv_ref, bv_ref, wm_ref,
         bm_ref, w1a_ref, w1b_ref, b1_ref, w2_ref, b2_ref, out_ref,
         h1_ref, sum_ref, ssq_ref) = refs

    D, Np = x_ref.shape
    H = num_heads
    dim = D // H
    cdt = compute_dtype
    f32 = jnp.float32

    # Static tiling derived from n_valid (all Python ints).
    Nk = min(Np, _round_up(n_valid, 128))        # key columns actually attended
    n_q_tiles = -(-n_valid // q_tile)            # only query tiles with valid cols
    nq_cover = n_q_tiles * q_tile                # q_tile | Np  =>  nq_cover <= Np
    key_mask_needed = Nk > n_valid
    q_mask_needed = nq_cover > n_valid
    inv_n = 1.0 / float(n_valid)

    # --- weights / biases loaded once (resident for the whole grid step) -------
    wq_c, bq_c = wq_ref[...], bq_ref[...]
    wm_c, bm_c = wm_ref[...], bm_ref[...]
    w1a_c, w1b_c, b1_c = w1a_ref[...], w1b_ref[...], b1_ref[...]
    w2_c, b2_c = w2_ref[...], b2_ref[...]

    # --- K / V projections over the restricted source columns, kept resident ---
    s_c = s_ref[:, :Nk].astype(cdt)
    k_c = (jnp.dot(wk_ref[...], s_c, preferred_element_type=f32)
           + bk_ref[...]).astype(cdt)                                # (D, Nk)
    v_c = (jnp.dot(wv_ref[...], s_c, preferred_element_type=f32)
           + bv_ref[...]).astype(cdt)                                # (D, Nk)

    # Loop-invariant additive key mask (hoisted out of the head/tile loops).
    if key_mask_needed:
        key_bias = jnp.where(
            lax.broadcasted_iota(jnp.int32, (1, Nk), 1) < n_valid, 0.0, -1e30)
    else:
        key_bias = None

    def tile_valid(off):
        return (lax.broadcasted_iota(jnp.int32, (1, q_tile), 1) + off) < n_valid

    sum_ref[...] = jnp.zeros_like(sum_ref)
    ssq_ref[...] = jnp.zeros_like(ssq_ref)

    # --- pass 1: attention + merge + first MLP layer, per query tile -----------
    @pl.loop(0, n_q_tiles)
    def _pass1(qt):
        off = pl.multiple_of(qt * q_tile, q_tile)
        # Each column of x is cast exactly once across the whole kernel.
        x_t = x_ref[:, pl.ds(off, q_tile)].astype(cdt)               # (D, Tq)
        # 1/sqrt(dim) is pre-folded into wq / bq.
        q_t = (jnp.dot(wq_c, x_t, preferred_element_type=f32)
               + bq_c).astype(cdt)                                   # (D, Tq)

        heads = []
        for h in range(H):                                           # static head slices
            lo = h * dim
            qh = q_t[lo:lo + dim, :]
            kh = k_c[lo:lo + dim, :]
            vh = v_c[lo:lo + dim, :]
            scores = lax.dot_general(qh, kh, (((0,), (0,)), ((), ())),
                                     preferred_element_type=f32)     # (Tq, Nk)
            if key_bias is not None:
                scores = scores + key_bias
            smax = jnp.max(scores, axis=-1, keepdims=True)
            p = jnp.exp(scores - smax)                               # f32 exp
            # TODO(synk): bf16 exp would ~2x EUP throughput on v6e/v7x, but v5e has
            # no bf16 EUP; kept in f32 so one kernel is exact on all generations.
            denom = jnp.sum(p, axis=-1, keepdims=True)               # >= 1, never 0
            p_n = (p * (1.0 / denom)).astype(cdt)                    # exact reciprocal
            # msg_h[d, n] = sum_m v[d, m] * p_n[n, m]
            heads.append(lax.dot_general(vh, p_n, (((1,), (1,)), ((), ())),
                                         preferred_element_type=f32))  # (dim, Tq)

        # One full-depth (D-deep) merge matmul per tile instead of H depth-(D/H)
        # accumulations -> 4x better MXU fill on v6e/v7x (2x on v5e).
        msg_all = jnp.concatenate(heads, axis=0).astype(cdt)         # (D, Tq)
        message_t = (jnp.dot(wm_c, msg_all, preferred_element_type=f32)
                     + bm_c)                                         # (D, Tq) f32

        # MLP layer 1; w1 is split so cat([x, message]) never materializes.
        h1_t = (jnp.dot(w1a_c, x_t, preferred_element_type=f32)
                + jnp.dot(w1b_c, message_t.astype(cdt), preferred_element_type=f32)
                + b1_c)                                              # (2D, Tq) f32
        h1_ref[:, pl.ds(off, q_tile)] = h1_t

        h1_m = jnp.where(tile_valid(off), h1_t, 0.0) if q_mask_needed else h1_t
        sum_ref[...] += jnp.sum(h1_m, axis=-1, keepdims=True)

    mean = sum_ref[...] * inv_n                                      # (2D, 1)

    # --- pass 2: centered sum-of-squares (two-pass InstanceNorm variance) ------
    @pl.loop(0, n_q_tiles)
    def _pass2(qt):
        off = pl.multiple_of(qt * q_tile, q_tile)
        d = h1_ref[:, pl.ds(off, q_tile)] - mean
        if q_mask_needed:
            d = jnp.where(tile_valid(off), d, 0.0)
        ssq_ref[...] += jnp.sum(d * d, axis=-1, keepdims=True)

    rstd = lax.rsqrt(ssq_ref[...] * inv_n + 1e-5)                    # biased var (PyTorch IN)

    # --- pass 3: normalize + ReLU + MLP layer 2 + fused residual ---------------
    @pl.loop(0, n_q_tiles)
    def _pass3(qt):
        off = pl.multiple_of(qt * q_tile, q_tile)
        h1n = jnp.maximum((h1_ref[:, pl.ds(off, q_tile)] - mean) * rstd, 0.0)
        delta = (jnp.dot(w2_c, h1n.astype(cdt), preferred_element_type=f32)
                 + b2_c)                                             # (D, Tq)
        out_t = x_ref[:, pl.ds(off, q_tile)].astype(f32) + delta
        if q_mask_needed:
            out_t = jnp.where(tile_valid(off), out_t, 0.0)           # keep pads exactly 0
        out_ref[:, pl.ds(off, q_tile)] = out_t.astype(out_ref.dtype)

    if nq_cover < Np:                                                # zero fully-padded tail
        out_ref[:, nq_cover:] = jnp.zeros((D, Np - nq_cover), out_ref.dtype)


# ---------------------------------------------------------------------------
# VMEM budget / tile-size heuristics (generation-aware, with headroom).
# ---------------------------------------------------------------------------
def _estimate_vmem_limit(D, Np, Nk, q_tile, nq_cover, x_isz, out_isz, cdt_isz,
                         cross, weight_bytes):
    f32b = 4
    blocks = 2 * D * Np * x_isz                          # x (double-buffered)
    if cross:
        blocks += 2 * D * Np * x_isz                     # cross-attention source
    blocks += 2 * D * Np * out_isz                       # output block
    weights = 2 * weight_bytes                           # (default double-buffering)
    scratch = 2 * D * nq_cover * f32b + 2 * (2 * D * 128 * f32b)
    temps = (3 * D * Nk * max(cdt_isz, f32b)             # s_c / k / v projections
             + 3 * q_tile * Nk * f32b                    # scores / p / p_n per head
             + 6 * D * q_tile * f32b                     # q / msg / message tiles
             + 4 * 2 * D * q_tile * f32b)                # h1 / h1n tiles
    need = blocks + weights + scratch + temps
    cap = _vmem_capacity_bytes()
    limit = max(int(need * 1.75) + (4 << 20), 32 << 20)
    return int(min(limit, cap - (16 << 20)))             # headroom for compiler scratch


def _pick_q_tile(Np, n_valid):
    # v5e/v6e (128 MiB VMEM) amortize better with 512-wide query tiles; 256 on v7x.
    max_tile = 512 if _vmem_capacity_bytes() >= (100 << 20) else 256
    q_tile = 128
    for cand in (256, 512):
        if cand <= max_tile and Np % cand == 0 and cand <= _round_up(n_valid, 128):
            q_tile = cand
    return q_tile


# ---------------------------------------------------------------------------
# pallas_call wrapper for one GNN layer over the stacked (2B, D, Np) tensor.
# ---------------------------------------------------------------------------
def _attn_prop_call(desc, prep, cross, num_heads, n_valid, q_tile,
                    compute_dtype, out_dtype):
    Bt, D, Np = desc.shape
    n_q_tiles = -(-n_valid // q_tile)
    nq_cover = n_q_tiles * q_tile
    Nk = min(Np, _round_up(n_valid, 128))

    kernel = functools.partial(
        _attn_prop_kernel, num_heads=num_heads, n_valid=n_valid,
        q_tile=q_tile, self_attn=not cross, compute_dtype=compute_dtype)

    in_specs = [pl.BlockSpec((None, D, Np), lambda b: (b, 0, 0))]
    args = [desc]
    if cross:
        half = Bt // 2
        # Source block chosen by index_map only: desc0 half reads desc1, etc.
        in_specs.append(pl.BlockSpec((None, D, Np),
                                     lambda b: ((b + half) % Bt, 0, 0)))
        args.append(desc)

    weight_bytes = 0
    for name in _WEIGHT_ORDER:
        w = prep[name]
        # TODO(synk): pipeline_mode=pl.Buffered(1) on these constant blocks (and
        # packing the 13 small arrays) would drop their double-buffer copies.
        in_specs.append(pl.BlockSpec(w.shape, lambda b: (0, 0)))
        args.append(w)
        weight_bytes += int(w.size) * jnp.dtype(w.dtype).itemsize

    vmem_limit = _estimate_vmem_limit(
        D, Np, Nk, q_tile, nq_cover,
        jnp.dtype(desc.dtype).itemsize, jnp.dtype(out_dtype).itemsize,
        jnp.dtype(compute_dtype).itemsize, cross, weight_bytes)

    return pl.pallas_call(
        kernel,
        out_shape=jax.ShapeDtypeStruct((Bt, D, Np), out_dtype),
        grid=(Bt,),
        in_specs=in_specs,
        out_specs=pl.BlockSpec((None, D, Np), lambda b: (b, 0, 0)),
        scratch_shapes=[pltpu.VMEM((2 * D, nq_cover), jnp.float32),   # h1 (only full-width temp)
                        pltpu.VMEM((2 * D, 1), jnp.float32),          # running sum
                        pltpu.VMEM((2 * D, 1), jnp.float32)],         # centered sum of squares
        compiler_params=pltpu.CompilerParams(
            dimension_semantics=("parallel",),
            vmem_limit_bytes=vmem_limit),
    )(*args)


# ---------------------------------------------------------------------------
# One-time parameter preprocessing: head-major permutation, 1/sqrt(dim) fold
# into q, w1 split (avoids cat), compute-dtype cast.
# ---------------------------------------------------------------------------
def preprocess_params(p, num_heads, compute_dtype):
    D = p["wq"].shape[0]
    dim = D // num_heads
    f32 = jnp.float32
    # PyTorch's view(B, dim, H, N) maps channel c = d*H + h; permute projection
    # rows / merge columns to head-major order c' = h*dim + d so each head is a
    # contiguous (dim, N) slab inside the kernel.
    perm = jnp.asarray([d * num_heads + h
                        for h in range(num_heads) for d in range(dim)], jnp.int32)
    scale = 1.0 / (dim ** 0.5)
    return dict(
        wq=(p["wq"][perm] * scale).astype(compute_dtype),
        bq=(p["bq"][perm] * scale).astype(f32)[:, None],
        wk=p["wk"][perm].astype(compute_dtype),
        bk=p["bk"][perm].astype(f32)[:, None],
        wv=p["wv"][perm].astype(compute_dtype),
        bv=p["bv"][perm].astype(f32)[:, None],
        wm=p["wm"][:, perm].astype(compute_dtype),
        bm=p["bm"].astype(f32)[:, None],
        w1a=p["w1"][:, :D].astype(compute_dtype),
        w1b=p["w1"][:, D:].astype(compute_dtype),
        b1=p["b1"].astype(f32)[:, None],
        w2=p["w2"].astype(compute_dtype),
        b2=p["b2"].astype(f32)[:, None],
    )


# ---------------------------------------------------------------------------
# Full AttentionalGNN forward (residual updates included).
# ---------------------------------------------------------------------------
def attentional_gnn(desc0, desc1, layer_params, layer_names, num_heads=4,
                    compute_dtype=jnp.bfloat16, interlayer_dtype=None):
    B, D, N = desc0.shape
    assert D % num_heads == 0
    Np = max(128, _round_up(N, 128))                     # lane-dense point dimension
    q_tile = _pick_q_tile(Np, N)

    # Stack both descriptor sets once; each layer is a single pallas_call over
    # a (2B,) "parallel" grid (weights stay resident, >=2 iterations for v7x).
    desc = jnp.concatenate([desc0, desc1], axis=0)
    if Np != N:
        desc = jnp.pad(desc, ((0, 0), (0, 0), (0, Np - N)))

    preps = [preprocess_params(p, num_heads, compute_dtype) for p in layer_params]

    # TODO(synk): PyTorch stores layer.attn.prob (attention maps) as a side effect;
    # they are not returned and are not materialized here.
    # TODO(synk): fusing multiple layers into one pallas_call (descriptors resident
    # in VMEM, next layer's weights prefetched) would remove the remaining
    # inter-layer HBM round trips entirely; interlayer_dtype=bfloat16 already
    # halves that traffic.
    n_layers = len(layer_names)
    for li, (prep, name) in enumerate(zip(preps, layer_names)):
        is_last = li == n_layers - 1
        out_dtype = desc0.dtype if (is_last or interlayer_dtype is None) else interlayer_dtype
        desc = _attn_prop_call(desc, prep, name == "cross", num_heads, N,
                               q_tile, compute_dtype, out_dtype)

    desc = desc[:, :, :N]
    return desc[:B].astype(desc0.dtype), desc[B:].astype(desc1.dtype)


# ---------------------------------------------------------------------------
# Pure-JAX references.
#  _ref_gnn        : mirrors the PyTorch forward exactly (f32).
#  _ref_gnn_policy : mirrors the kernel's precision policy (operand casts to
#                    compute_dtype, f32 accumulation) for a tight bf16 check.
# ---------------------------------------------------------------------------
def _ref_attn_prop(x, s, p, H):
    B, D, N = x.shape
    dim = D // H

    def conv1(w, b, t):
        return jnp.einsum("oi,bin->bon", w, t) + b[None, :, None]

    q = conv1(p["wq"], p["bq"], x).reshape(B, dim, H, N)
    k = conv1(p["wk"], p["bk"], s).reshape(B, dim, H, N)
    v = conv1(p["wv"], p["bv"], s).reshape(B, dim, H, N)
    scores = jnp.einsum("bdhn,bdhm->bhnm", q, k) / (dim ** 0.5)
    prob = jax.nn.softmax(scores, axis=-1)
    msg = jnp.einsum("bhnm,bdhm->bdhn", prob, v).reshape(B, D, N)
    message = conv1(p["wm"], p["bm"], msg)
    cat = jnp.concatenate([x, message], axis=1)
    h1 = conv1(p["w1"], p["b1"], cat)
    mean = h1.mean(axis=-1, keepdims=True)
    var = ((h1 - mean) ** 2).mean(axis=-1, keepdims=True)
    h1 = jnp.maximum((h1 - mean) / jnp.sqrt(var + 1e-5), 0.0)
    return conv1(p["w2"], p["b2"], h1)


def _ref_gnn(desc0, desc1, layer_params, layer_names, H):
    for p, name in zip(layer_params, layer_names):
        src0, src1 = (desc1, desc0) if name == "cross" else (desc0, desc1)
        d0 = _ref_attn_prop(desc0, src0, p, H)
        d1 = _ref_attn_prop(desc1, src1, p, H)
        desc0, desc1 = desc0 + d0, desc1 + d1
    return desc0, desc1


def _ref_attn_prop_policy(x, s, prep, H, cdt):
    f32 = jnp.float32
    B, D, N = x.shape
    dim = D // H
    c = lambda t: t.astype(cdt).astype(f32)
    W = lambda n: prep[n].astype(f32)
    bias = lambda n: prep[n].astype(f32)[None]           # (1, O, 1)

    q = jnp.einsum("oi,bin->bon", W("wq"), c(x)) + bias("bq")
    k = jnp.einsum("oi,bin->bon", W("wk"), c(s)) + bias("bk")
    v = jnp.einsum("oi,bin->bon", W("wv"), c(s)) + bias("bv")
    qh = c(q).reshape(B, H, dim, N)
    kh = c(k).reshape(B, H, dim, N)
    vh = c(v).reshape(B, H, dim, N)
    scores = jnp.einsum("bhdn,bhdm->bhnm", qh, kh)        # scale folded into wq/bq
    smax = scores.max(axis=-1, keepdims=True)
    p = jnp.exp(scores - smax)
    p = p / p.sum(axis=-1, keepdims=True)                 # exact normalization (as kernel)
    msg = jnp.einsum("bhnm,bhdm->bhdn", c(p), vh)
    message = jnp.einsum("oi,bin->bon", W("wm"), c(msg.reshape(B, D, N))) + bias("bm")
    h1 = (jnp.einsum("oi,bin->bon", W("w1a"), c(x))
          + jnp.einsum("oi,bin->bon", W("w1b"), c(message)) + bias("b1"))
    mean = h1.mean(axis=-1, keepdims=True)
    var = ((h1 - mean) ** 2).mean(axis=-1, keepdims=True)
    h1n = jnp.maximum((h1 - mean) * lax.rsqrt(var + 1e-5), 0.0)
    delta = jnp.einsum("oi,bin->bon", W("w2"), c(h1n)) + bias("b2")
    return x + delta


def _ref_gnn_policy(desc0, desc1, preps, layer_names, H, cdt):
    for prep, name in zip(preps, layer_names):
        src0, src1 = (desc1, desc0) if name == "cross" else (desc0, desc1)
        n0 = _ref_attn_prop_policy(desc0, src0, prep, H, cdt)
        n1 = _ref_attn_prop_policy(desc1, src1, prep, H, cdt)
        desc0, desc1 = n0, n1
    return desc0, desc1


# ---------------------------------------------------------------------------
# Deterministic synthetic parameter init (shapes per the module __init__).
# ---------------------------------------------------------------------------
def init_params(key, D, n_layers):
    params = []
    for i in range(n_layers):
        ks = jax.random.split(jax.random.fold_in(key, i), 11)

        def w(k, o, inp):
            return jax.random.normal(k, (o, inp), jnp.float32) / jnp.sqrt(inp)

        params.append(dict(
            wq=w(ks[0], D, D), bq=0.01 * jax.random.normal(ks[1], (D,), jnp.float32),
            wk=w(ks[2], D, D), bk=0.01 * jax.random.normal(ks[3], (D,), jnp.float32),
            wv=w(ks[4], D, D), bv=0.01 * jax.random.normal(ks[5], (D,), jnp.float32),
            wm=w(ks[6], D, D), bm=0.01 * jax.random.normal(ks[7], (D,), jnp.float32),
            w1=w(ks[8], 2 * D, 2 * D),
            b1=0.01 * jax.random.normal(ks[9], (2 * D,), jnp.float32),
            w2=w(ks[10], D, 2 * D),
            b2=jnp.zeros((D,), jnp.float32),   # nn.init.constant_(mlp[-1].bias, 0)
        ))
    return params


if __name__ == "__main__":
    key = jax.random.PRNGKey(0)
    B, D, N, H = 2, 32, 8, 4                   # batch, feature_dim, points, heads
    layer_names = ["self", "cross"]

    k0, k1, kp = jax.random.split(key, 3)
    desc0 = jax.random.normal(k0, (B, D, N), jnp.float32)
    desc1 = jax.random.normal(k1, (B, D, N), jnp.float32)
    layer_params = init_params(kp, D, len(layer_names))

    # 1) Strict semantic check: f32 compute policy vs PyTorch-exact reference.
    o0, o1 = attentional_gnn(desc0, desc1, layer_params, layer_names, H,
                             compute_dtype=jnp.float32)
    o0, o1 = jax.block_until_ready((o0, o1))
    r0, r1 = _ref_gnn(desc0, desc1, layer_params, layer_names, H)
    assert o0.shape == (B, D, N) and o1.shape == (B, D, N)
    assert jnp.allclose(o0, r0, atol=5e-3, rtol=5e-3), "f32 policy: desc0 mismatch"
    assert jnp.allclose(o1, r1, atol=5e-3, rtol=5e-3), "f32 policy: desc1 mismatch"

    # 2) Fast path: bf16 MXU operands (f32 accumulation) vs mirrored reference.
    b0, b1 = attentional_gnn(desc0, desc1, layer_params, layer_names, H,
                             compute_dtype=jnp.bfloat16)
    b0, b1 = jax.block_until_ready((b0, b1))
    preps = [preprocess_params(p, H, jnp.bfloat16) for p in layer_params]
    p0, p1 = _ref_gnn_policy(desc0, desc1, preps, layer_names, H, jnp.bfloat16)
    assert jnp.allclose(b0, p0, atol=1e-2, rtol=1e-2), "bf16 policy: desc0 mismatch"
    assert jnp.allclose(b1, p1, atol=1e-2, rtol=1e-2), "bf16 policy: desc1 mismatch"

    # 3) HBM-traffic option: bf16 inter-layer descriptor storage (loose check
    #    against the bf16 policy reference; only the residual stream is rounded).
    c0, c1 = attentional_gnn(desc0, desc1, layer_params, layer_names, H,
                             compute_dtype=jnp.bfloat16,
                             interlayer_dtype=jnp.bfloat16)
    c0, c1 = jax.block_until_ready((c0, c1))
    assert jnp.all(jnp.isfinite(c0)) and jnp.all(jnp.isfinite(c1))
    assert jnp.allclose(c0, p0, atol=1e-1, rtol=1e-1), "bf16 inter-layer: desc0 drift"
    assert jnp.allclose(c1, p1, atol=1e-1, rtol=1e-1), "bf16 inter-layer: desc1 drift"

    print("KERNEL_OK")
</pallas_src>

<mosaic_0001>
module attributes {stable_mosaic.version = 11 : i64} {
  func.func @_attn_prop_kernel(%arg0: i32, %arg1: memref<1x32x128xf32, #tpu.memory_space<vmem>>, %arg2: memref<32x32xf32, #tpu.memory_space<vmem>>, %arg3: memref<32x1xf32, #tpu.memory_space<vmem>>, %arg4: memref<32x32xf32, #tpu.memory_space<vmem>>, %arg5: memref<32x1xf32, #tpu.memory_space<vmem>>, %arg6: memref<32x32xf32, #tpu.memory_space<vmem>>, %arg7: memref<32x1xf32, #tpu.memory_space<vmem>>, %arg8: memref<32x32xf32, #tpu.memory_space<vmem>>, %arg9: memref<32x1xf32, #tpu.memory_space<vmem>>, %arg10: memref<64x32xf32, #tpu.memory_space<vmem>>, %arg11: memref<64x32xf32, #tpu.memory_space<vmem>>, %arg12: memref<64x1xf32, #tpu.memory_space<vmem>>, %arg13: memref<32x64xf32, #tpu.memory_space<vmem>>, %arg14: memref<32x1xf32, #tpu.memory_space<vmem>>, %arg15: memref<1x32x128xf32, #tpu.memory_space<vmem>>, %arg16: memref<64x128xf32, #tpu.memory_space<vmem>>, %arg17: memref<64x1xf32, #tpu.memory_space<vmem>>, %arg18: memref<64x1xf32, #tpu.memory_space<vmem>>) attributes {dimension_semantics = [#tpu.dimension_semantics<parallel>], iteration_bounds = array<i64: 4>, scalar_prefetch = 0 : i64, scratch_operands = 3 : i64, tpu.core_type = #tpu.core_type<tc>, window_params = [{transform_indices = @transform_0, window_bounds = array<i64: 1, 32, 128>}, {pipeline_mode = #tpu.pipeline_mode<synchronous>, transform_indices = @transform_1, window_bounds = array<i64: 32, 32>}, {pipeline_mode = #tpu.pipeline_mode<synchronous>, transform_indices = @transform_2, window_bounds = array<i64: 32, 1>}, {pipeline_mode = #tpu.pipeline_mode<synchronous>, transform_indices = @transform_3, window_bounds = array<i64: 32, 32>}, {pipeline_mode = #tpu.pipeline_mode<synchronous>, transform_indices = @transform_4, window_bounds = array<i64: 32, 1>}, {pipeline_mode = #tpu.pipeline_mode<synchronous>, transform_indices = @transform_5, window_bounds = array<i64: 32, 32>}, {pipeline_mode = #tpu.pipeline_mode<synchronous>, transform_indices = @transform_6, window_bounds = array<i64: 32, 1>}, {pipeline_mode = #tpu.pipeline_mode<synchronous>, transform_indices = @transform_7, window_bounds = array<i64: 32, 32>}, {pipeline_mode = #tpu.pipeline_mode<synchronous>, transform_indices = @transform_8, window_bounds = array<i64: 32, 1>}, {pipeline_mode = #tpu.pipeline_mode<synchronous>, transform_indices = @transform_9, window_bounds = array<i64: 64, 32>}, {pipeline_mode = #tpu.pipeline_mode<synchronous>, transform_indices = @transform_10, window_bounds = array<i64: 64, 32>}, {pipeline_mode = #tpu.pipeline_mode<synchronous>, transform_indices = @transform_11, window_bounds = array<i64: 64, 1>}, {pipeline_mode = #tpu.pipeline_mode<synchronous>, transform_indices = @transform_12, window_bounds = array<i64: 32, 64>}, {pipeline_mode = #tpu.pipeline_mode<synchronous>, transform_indices = @transform_13, window_bounds = array<i64: 32, 1>}, {transform_indices = @transform_14, window_bounds = array<i64: 1, 32, 128>}]} {
    %c0 = arith.constant 0 : index
    %c0_0 = arith.constant 0 : index
    %0 = vector.load %arg2[%c0, %c0_0] : memref<32x32xf32, #tpu.memory_space<vmem>>, vector<32x32xf32>
    %c0_1 = arith.constant 0 : index
    %c0_2 = arith.constant 0 : index
    %1 = vector.load %arg3[%c0_1, %c0_2] : memref<32x1xf32, #tpu.memory_space<vmem>>, vector<32x1xf32>
    %c0_3 = arith.constant 0 : index
    %c0_4 = arith.constant 0 : index
    %2 = vector.load %arg8[%c0_3, %c0_4] : memref<32x32xf32, #tpu.memory_space<vmem>>, vector<32x32xf32>
    %c0_5 = arith.constant 0 : index
    %c0_6 = arith.constant 0 : index
    %3 = vector.load %arg9[%c0_5, %c0_6] : memref<32x1xf32, #tpu.memory_space<vmem>>, vector<32x1xf32>
    %c0_7 = arith.constant 0 : index
    %c0_8 = arith.constant 0 : index
    %4 = vector.load %arg10[%c0_7, %c0_8] : memref<64x32xf32, #tpu.memory_space<vmem>>, vector<64x32xf32>
    %c0_9 = arith.constant 0 : index
    %c0_10 = arith.constant 0 : index
    %5 = vector.load %arg11[%c0_9, %c0_10] : memref<64x32xf32, #tpu.memory_space<vmem>>, vector<64x32xf32>
    %c0_11 = arith.constant 0 : index
    %c0_12 = arith.constant 0 : index
    %6 = vector.load %arg12[%c0_11, %c0_12] : memref<64x1xf32, #tpu.memory_space<vmem>>, vector<64x1xf32>
    %c0_13 = arith.constant 0 : index
    %c0_14 = arith.constant 0 : index
    %7 = vector.load %arg13[%c0_13, %c0_14] : memref<32x64xf32, #tpu.memory_space<vmem>>, vector<32x64xf32>
    %c0_15 = arith.constant 0 : index
    %c0_16 = arith.constant 0 : index
    %8 = vector.load %arg14[%c0_15, %c0_16] : memref<32x1xf32, #tpu.memory_space<vmem>>, vector<32x1xf32>
    %c0_17 = arith.constant 0 : index
    %c0_18 = arith.constant 0 : index
    %c0_19 = arith.constant 0 : index
    %9 = vector.load %arg1[%c0_17, %c0_18, %c0_19] : memref<1x32x128xf32, #tpu.memory_space<vmem>>, vector<1x32x128xf32>
    %10 = vector.shape_cast %9 : vector<1x32x128xf32> to vector<32x128xf32>
    %c0_20 = arith.constant 0 : index
    %c0_21 = arith.constant 0 : index
    %11 = vector.load %arg4[%c0_20, %c0_21] : memref<32x32xf32, #tpu.memory_space<vmem>>, vector<32x32xf32>
    %cst = arith.constant dense<0.000000e+00> : vector<32x128xf32>
    %12 = tpu.matmul %11, %10, %cst {dimension_numbers = #tpu.dot_dimension_numbers<[1], [0], [0], [1], [0, 0, 1, 1], [], []>} : vector<32x32xf32>, vector<32x128xf32>, vector<32x128xf32> -> vector<32x128xf32>
    %c0_22 = arith.constant 0 : index
    %c0_23 = arith.constant 0 : index
    %13 = vector.load %arg5[%c0_22, %c0_23] : memref<32x1xf32, #tpu.memory_space<vmem>>, vector<32x1xf32>
    %14 = vector.broadcast %13 : vector<32x1xf32> to vector<32x128xf32>
    %15 = arith.addf %12, %14 : vector<32x128xf32>
    %c0_24 = arith.constant 0 : index
    %c0_25 = arith.constant 0 : index
    %16 = vector.load %arg6[%c0_24, %c0_25] : memref<32x32xf32, #tpu.memory_space<vmem>>, vector<32x32xf32>
    %cst_26 = arith.constant dense<0.000000e+00> : vector<32x128xf32>
    %17 = tpu.matmul %16, %10, %cst_26 {dimension_numbers = #tpu.dot_dimension_numbers<[1], [0], [0], [1], [0, 0, 1, 1], [], []>} : vector<32x32xf32>, vector<32x128xf32>, vector<32x128xf32> -> vector<32x128xf32>
    %c0_27 = arith.constant 0 : index
    %c0_28 = arith.constant 0 : index
    %18 = vector.load %arg7[%c0_27, %c0_28] : memref<32x1xf32, #tpu.memory_space<vmem>>, vector<32x1xf32>
    %19 = vector.broadcast %18 : vector<32x1xf32> to vector<32x128xf32>
    %20 = arith.addf %17, %19 : vector<32x128xf32>
    %21 = tpu.iota {dimensions = array<i32: 1>} : vector<1x128xi32>
    %c8_i32 = arith.constant 8 : i32
    %22 = vector.broadcast %c8_i32 : i32 to vector<1x128xi32>
    %23 = arith.cmpi slt, %21, %22 : vector<1x128xi32>
    %cst_29 = arith.constant 0.000000e+00 : f32
    %cst_30 = arith.constant -1.000000e+30 : f32
    %24 = vector.broadcast %cst_29 : f32 to vector<1x128xf32>
    %25 = vector.broadcast %cst_30 : f32 to vector<1x128xf32>
    %26 = arith.select %23, %24, %25 : vector<1x128xi1>, vector<1x128xf32>
    %cst_31 = arith.constant 0.000000e+00 : f32
    %27 = vector.broadcast %cst_31 : f32 to vector<64x1xf32>
    %c0_32 = arith.constant 0 : index
    %c0_33 = arith.constant 0 : index
    %28 = vector.load %arg17[%c0_32, %c0_33] : memref<64x1xf32, #tpu.memory_space<vmem>>, vector<64x1xf32>
    tpu.vector_store %arg17[%c0_32, %c0_33], %27 {strides = array<i32>} : memref<64x1xf32, #tpu.memory_space<vmem>>, vector<64x1xf32>,
    %cst_34 = arith.constant 0.000000e+00 : f32
    %29 = vector.broadcast %cst_34 : f32 to vector<64x1xf32>
    %c0_35 = arith.constant 0 : index
    %c0_36 = arith.constant 0 : index
    %30 = vector.load %arg18[%c0_35, %c0_36] : memref<64x1xf32, #tpu.memory_space<vmem>>, vector<64x1xf32>
    tpu.vector_store %arg18[%c0_35, %c0_36], %29 {strides = array<i32>} : memref<64x1xf32, #tpu.memory_space<vmem>>, vector<64x1xf32>,
    %c0_i32 = arith.constant 0 : i32
    %c1_i32 = arith.constant 1 : i32
    %31 = arith.muli %c0_i32, %c1_i32 : i32
    %c0_i32_37 = arith.constant 0 : i32
    %32 = arith.addi %c0_i32_37, %31 : i32
    %c128_i32 = arith.constant 128 : i32
    %33 = arith.muli %32, %c128_i32 : i32
    %34 = tpu.assume_multiple %33, 128 : i32
    %c0_38 = arith.constant 0 : index
    %c0_39 = arith.constant 0 : index
    %35 = arith.index_cast %34 : i32 to index
    %36 = vector.load %arg1[%c0_38, %c0_39, %35] : memref<1x32x128xf32, #tpu.memory_space<vmem>>, vector<1x32x128xf32>
    %37 = vector.shape_cast %36 : vector<1x32x128xf32> to vector<32x128xf32>
    %cst_40 = arith.constant dense<0.000000e+00> : vector<32x128xf32>
    %38 = tpu.matmul %0, %37, %cst_40 {dimension_numbers = #tpu.dot_dimension_numbers<[1], [0], [0], [1], [0, 0, 1, 1], [], []>} : vector<32x32xf32>, vector<32x128xf32>, vector<32x128xf32> -> vector<32x128xf32>
    %39 = vector.broadcast %1 : vector<32x1xf32> to vector<32x128xf32>
    %40 = arith.addf %38, %39 : vector<32x128xf32>
    %41 = vector.extract_strided_slice %40 {offsets = [0, 0], sizes = [8, 128], strides = [1, 1]} : vector<32x128xf32> to vector<8x128xf32>
    %42 = vector.extract_strided_slice %15 {offsets = [0, 0], sizes = [8, 128], strides = [1, 1]} : vector<32x128xf32> to vector<8x128xf32>
    %43 = vector.extract_strided_slice %20 {offsets = [0, 0], sizes = [8, 128], strides = [1, 1]} : vector<32x128xf32> to vector<8x128xf32>
    %cst_41 = arith.constant dense<0.000000e+00> : vector<128x128xf32>
    %44 = tpu.matmul %41, %42, %cst_41 {dimension_numbers = #tpu.dot_dimension_numbers<[0], [0], [1], [1], [0, 1, 1, 1], [], []>} : vector<8x128xf32>, vector<8x128xf32>, vector<128x128xf32> -> vector<128x128xf32>
    %45 = vector.broadcast %26 : vector<1x128xf32> to vector<128x128xf32>
    %46 = arith.addf %44, %45 : vector<128x128xf32>
    %cst_42 = arith.constant dense<0xFF800000> : vector<128xf32>
    %47 = vector.multi_reduction <maximumf>, %46, %cst_42 [1] : vector<128x128xf32> to vector<128xf32>
    %48 = vector.shape_cast %47 : vector<128xf32> to vector<128x1xf32>
    %49 = vector.broadcast %48 : vector<128x1xf32> to vector<128x128xf32>
    %50 = arith.subf %46, %49 : vector<128x128xf32>
    %51 = math.exp %50 : vector<128x128xf32>
    %cst_43 = arith.constant dense<0.000000e+00> : vector<128xf32>
    %52 = vector.multi_reduction <add>, %51, %cst_43 [1] : vector<128x128xf32> to vector<128xf32>
    %53 = vector.shape_cast %52 : vector<128xf32> to vector<128x1xf32>
    %cst_44 = arith.constant 1.000000e+00 : f32
    %54 = vector.broadcast %cst_44 : f32 to vector<128x1xf32>
    %55 = arith.divf %54, %53 : vector<128x1xf32>
    %56 = vector.broadcast %55 : vector<128x1xf32> to vector<128x128xf32>
    %57 = arith.mulf %51, %56 : vector<128x128xf32>
    %cst_45 = arith.constant dense<0.000000e+00> : vector<8x128xf32>
    %58 = tpu.matmul %43, %57, %cst_45 {dimension_numbers = #tpu.dot_dimension_numbers<[1], [1], [0], [0], [0, 0, 1, 0], [], []>} : vector<8x128xf32>, vector<128x128xf32>, vector<8x128xf32> -> vector<8x128xf32>
    %59 = vector.extract_strided_slice %40 {offsets = [8, 0], sizes = [8, 128], strides = [1, 1]} : vector<32x128xf32> to vector<8x128xf32>
    %60 = vector.extract_strided_slice %15 {offsets = [8, 0], sizes = [8, 128], strides = [1, 1]} : vector<32x128xf32> to vector<8x128xf32>
    %61 = vector.extract_strided_slice %20 {offsets = [8, 0], sizes = [8, 128], strides = [1, 1]} : vector<32x128xf32> to vector<8x128xf32>
    %cst_46 = arith.constant dense<0.000000e+00> : vector<128x128xf32>
    %62 = tpu.matmul %59, %60, %cst_46 {dimension_numbers = #tpu.dot_dimension_numbers<[0], [0], [1], [1], [0, 1, 1, 1], [], []>} : vector<8x128xf32>, vector<8x128xf32>, vector<128x128xf32> -> vector<128x128xf32>
    %63 = vector.broadcast %26 : vector<1x128xf32> to vector<128x128xf32>
    %64 = arith.addf %62, %63 : vector<128x128xf32>
    %cst_47 = arith.constant dense<0xFF800000> : vector<128xf32>
    %65 = vector.multi_reduction <maximumf>, %64, %cst_47 [1] : vector<128x128xf32> to vector<128xf32>
    %66 = vector.shape_cast %65 : vector<128xf32> to vector<128x1xf32>
    %67 = vector.broadcast %66 : vector<128x1xf32> to vector<128x128xf32>
    %68 = arith.subf %64, %67 : vector<128x128xf32>
    %69 = math.exp %68 : vector<128x128xf32>
    %cst_48 = arith.constant dense<0.000000e+00> : vector<128xf32>
    %70 = vector.multi_reduction <add>, %69, %cst_48 [1] : vector<128x128xf32> to vector<128xf32>
    %71 = vector.shape_cast %70 : vector<128xf32> to vector<128x1xf32>
    %cst_49 = arith.constant 1.000000e+00 : f32
    %72 = vector.broadcast %cst_49 : f32 to vector<128x1xf32>
    %73 = arith.divf %72, %71 : vector<128x1xf32>
    %74 = vector.broadcast %73 : vector<128x1xf32> to vector<128x128xf32>
    %75 = arith.mulf %69, %74 : vector<128x128xf32>
    %cst_50 = arith.constant dense<0.000000e+00> : vector<8x128xf32>
    %76 = tpu.matmul %61, %75, %cst_50 {dimension_numbers = #tpu.dot_dimension_numbers<[1], [1], [0], [0], [0, 0, 1, 0], [], []>} : vector<8x128xf32>, vector<128x128xf32>, vector<8x128xf32> -> vector<8x128xf32>
    %77 = vector.extract_strided_slice %40 {offsets = [16, 0], sizes = [8, 128], strides = [1, 1]} : vector<32x128xf32> to vector<8x128xf32>
    %78 = vector.extract_strided_slice %15 {offsets = [16, 0], sizes = [8, 128], strides = [1, 1]} : vector<32x128xf32> to vector<8x128xf32>
    %79 = vector.extract_strided_slice %20 {offsets = [16, 0], sizes = [8, 128], strides = [1, 1]} : vector<32x128xf32> to vector<8x128xf32>
    %cst_51 = arith.constant dense<0.000000e+00> : vector<128x128xf32>
    %80 = tpu.matmul %77, %78, %cst_51 {dimension_numbers = #tpu.dot_dimension_numbers<[0], [0], [1], [1], [0, 1, 1, 1], [], []>} : vector<8x128xf32>, vector<8x128xf32>, vector<128x128xf32> -> vector<128x128xf32>
    %81 = vector.broadcast %26 : vector<1x128xf32> to vector<128x128xf32>
    %82 = arith.addf %80, %81 : vector<128x128xf32>
    %cst_52 = arith.constant dense<0xFF800000> : vector<128xf32>
    %83 = vector.multi_reduction <maximumf>, %82, %cst_52 [1] : vector<128x128xf32> to vector<128xf32>
    %84 = vector.shape_cast %83 : vector<128xf32> to vector<128x1xf32>
    %85 = vector.broadcast %84 : vector<128x1xf32> to vector<128x128xf32>
    %86 = arith.subf %82, %85 : vector<128x128xf32>
    %87 = math.exp %86 : vector<128x128xf32>
    %cst_53 = arith.constant dense<0.000000e+00> : vector<128xf32>
    %88 = vector.multi_reduction <add>, %87, %cst_53 [1] : vector<128x128xf32> to vector<128xf32>
    %89 = vector.shape_cast %88 : vector<128xf32> to vector<128x1xf32>
    %cst_54 = arith.constant 1.000000e+00 : f32
    %90 = vector.broadcast %cst_54 : f32 to vector<128x1xf32>
    %91 = arith.divf %90, %89 : vector<128x1xf32>
    %92 = vector.broadcast %91 : vector<128x1xf32> to vector<128x128xf32>
    %93 = arith.mulf %87, %92 : vector<128x128xf32>
    %cst_55 = arith.constant dense<0.000000e+00> : vector<8x128xf32>
    %94 = tpu.matmul %79, %93, %cst_55 {dimension_numbers = #tpu.dot_dimension_numbers<[1], [1], [0], [0], [0, 0, 1, 0], [], []>} : vector<8x128xf32>, vector<128x128xf32>, vector<8x128xf32> -> vector<8x128xf32>
    %95 = vector.extract_strided_slice %40 {offsets = [24, 0], sizes = [8, 128], strides = [1, 1]} : vector<32x128xf32> to vector<8x128xf32>
    %96 = vector.extract_strided_slice %15 {offsets = [24, 0], sizes = [8, 128], strides = [1, 1]} : vector<32x128xf32> to vector<8x128xf32>
    %97 = vector.extract_strided_slice %20 {offsets = [24, 0], sizes = [8, 128], strides = [1, 1]} : vector<32x128xf32> to vector<8x128xf32>
    %cst_56 = arith.constant dense<0.000000e+00> : vector<128x128xf32>
    %98 = tpu.matmul %95, %96, %cst_56 {dimension_numbers = #tpu.dot_dimension_numbers<[0], [0], [1], [1], [0, 1, 1, 1], [], []>} : vector<8x128xf32>, vector<8x128xf32>, vector<128x128xf32> -> vector<128x128xf32>
    %99 = vector.broadcast %26 : vector<1x128xf32> to vector<128x128xf32>
    %100 = arith.addf %98, %99 : vector<128x128xf32>
    %cst_57 = arith.constant dense<0xFF800000> : vector<128xf32>
    %101 = vector.multi_reduction <maximumf>, %100, %cst_57 [1] : vector<128x128xf32> to vector<128xf32>
    %102 = vector.shape_cast %101 : vector<128xf32> to vector<128x1xf32>
    %103 = vector.broadcast %102 : vector<128x1xf32> to vector<128x128xf32>
    %104 = arith.subf %100, %103 : vector<128x128xf32>
    %105 = math.exp %104 : vector<128x128xf32>
    %cst_58 = arith.constant dense<0.000000e+00> : vector<128xf32>
    %106 = vector.multi_reduction <add>, %105, %cst_58 [1] : vector<128x128xf32> to vector<128xf32>
    %107 = vector.shape_cast %106 : vector<128xf32> to vector<128x1xf32>
    %cst_59 = arith.constant 1.000000e+00 : f32
    %108 = vector.broadcast %cst_59 : f32 to vector<128x1xf32>
    %109 = arith.divf %108, %107 : vector<128x1xf32>
    %110 = vector.broadcast %109 : vector<128x1xf32> to vector<128x128xf32>
    %111 = arith.mulf %105, %110 : vector<128x128xf32>
    %cst_60 = arith.constant dense<0.000000e+00> : vector<8x128xf32>
    %112 = tpu.matmul %97, %111, %cst_60 {dimension_numbers = #tpu.dot_dimension_numbers<[1], [1], [0], [0], [0, 0, 1, 0], [], []>} : vector<8x128xf32>, vector<128x128xf32>, vector<8x128xf32> -> vector<8x128xf32>
    %113 = tpu.concatenate %58, %76, %94, %112 in 0 : vector<8x128xf32>, vector<8x128xf32>, vector<8x128xf32>, vector<8x128xf32> -> vector<32x128xf32>
    %cst_61 = arith.constant dense<0.000000e+00> : vector<32x128xf32>
    %114 = tpu.matmul %2, %113, %cst_61 {dimension_numbers = #tpu.dot_dimension_numbers<[1], [0], [0], [1], [0, 0, 1, 1], [], []>} : vector<32x32xf32>, vector<32x128xf32>, vector<32x128xf32> -> vector<32x128xf32>
    %115 = vector.broadcast %3 : vector<32x1xf32> to vector<32x128xf32>
    %116 = arith.addf %114, %115 : vector<32x128xf32>
    %cst_62 = arith.constant dense<0.000000e+00> : vector<64x128xf32>
    %117 = tpu.matmul %4, %37, %cst_62 {dimension_numbers = #tpu.dot_dimension_numbers<[1], [0], [0], [1], [0, 0, 1, 1], [], []>} : vector<64x32xf32>, vector<32x128xf32>, vector<64x128xf32> -> vector<64x128xf32>
    %cst_63 = arith.constant dense<0.000000e+00> : vector<64x128xf32>
    %118 = tpu.matmul %5, %116, %cst_63 {dimension_numbers = #tpu.dot_dimension_numbers<[1], [0], [0], [1], [0, 0, 1, 1], [], []>} : vector<64x32xf32>, vector<32x128xf32>, vector<64x128xf32> -> vector<64x128xf32>
    %119 = arith.addf %117, %118 : vector<64x128xf32>
    %120 = vector.broadcast %6 : vector<64x1xf32> to vector<64x128xf32>
    %121 = arith.addf %119, %120 : vector<64x128xf32>
    %c0_64 = arith.constant 0 : index
    %122 = arith.index_cast %34 : i32 to index
    %123 = vector.load %arg16[%c0_64, %122] : memref<64x128xf32, #tpu.memory_space<vmem>>, vector<64x128xf32>
    tpu.vector_store %arg16[%c0_64, %122], %121 {strides = array<i32>} : memref<64x128xf32, #tpu.memory_space<vmem>>, vector<64x128xf32>,
    %124 = tpu.iota {dimensions = array<i32: 1>} : vector<1x128xi32>
    %125 = vector.broadcast %34 : i32 to vector<1x128xi32>
    %126 = arith.addi %124, %125 : vector<1x128xi32>
    %c8_i32_65 = arith.constant 8 : i32
    %127 = vector.broadcast %c8_i32_65 : i32 to vector<1x128xi32>
    %128 = arith.cmpi slt, %126, %127 : vector<1x128xi32>
    %cst_66 = arith.constant 0.000000e+00 : f32
    %129 = vector.shape_cast %128 : vector<1x128xi1> to vector<1x128xi1>
    %130 = vector.broadcast %129 : vector<1x128xi1> to vector<64x128xi1>
    %131 = vector.broadcast %cst_66 : f32 to vector<64x128xf32>
    %132 = arith.select %130, %121, %131 : vector<64x128xi1>, vector<64x128xf32>
    %c0_67 = arith.constant 0 : index
    %c0_68 = arith.constant 0 : index
    %133 = vector.load %arg17[%c0_67, %c0_68] : memref<64x1xf32, #tpu.memory_space<vmem>>, vector<64x1xf32>
    %cst_69 = arith.constant dense<0.000000e+00> : vector<64xf32>
    %134 = vector.multi_reduction <add>, %132, %cst_69 [1] : vector<64x128xf32> to vector<64xf32>
    %135 = vector.shape_cast %134 : vector<64xf32> to vector<64x1xf32>
    %136 = arith.addf %133, %135 : vector<64x1xf32>
    %c0_70 = arith.constant 0 : index
    %c0_71 = arith.constant 0 : index
    %137 = vector.load %arg17[%c0_70, %c0_71] : memref<64x1xf32, #tpu.memory_space<vmem>>, vector<64x1xf32>
    tpu.vector_store %arg17[%c0_70, %c0_71], %136 {strides = array<i32>} : memref<64x1xf32, #tpu.memory_space<vmem>>, vector<64x1xf32>,
    %c1_i32_72 = arith.constant 1 : i32
    %c0_73 = arith.constant 0 : index
    %c0_74 = arith.constant 0 : index
    %138 = vector.load %arg17[%c0_73, %c0_74] : memref<64x1xf32, #tpu.memory_space<vmem>>, vector<64x1xf32>
    %cst_75 = arith.constant 1.250000e-01 : f32
    %139 = vector.broadcast %cst_75 : f32 to vector<64x1xf32>
    %140 = arith.mulf %138, %139 : vector<64x1xf32>
    %c0_i32_76 = arith.constant 0 : i32
    %c1_i32_77 = arith.constant 1 : i32
    %141 = arith.muli %c0_i32_76, %c1_i32_77 : i32
    %c0_i32_78 = arith.constant 0 : i32
    %142 = arith.addi %c0_i32_78, %141 : i32
    %c128_i32_79 = arith.constant 128 : i32
    %143 = arith.muli %142, %c128_i32_79 : i32
    %144 = tpu.assume_multiple %143, 128 : i32
    %c0_80 = arith.constant 0 : index
    %145 = arith.index_cast %144 : i32 to index
    %146 = vector.load %arg16[%c0_80, %145] : memref<64x128xf32, #tpu.memory_space<vmem>>, vector<64x128xf32>
    %147 = vector.broadcast %140 : vector<64x1xf32> to vector<64x128xf32>
    %148 = arith.subf %146, %147 : vector<64x128xf32>
    %149 = tpu.iota {dimensions = array<i32: 1>} : vector<1x128xi32>
    %150 = vector.broadcast %144 : i32 to vector<1x128xi32>
    %151 = arith.addi %149, %150 : vector<1x128xi32>
    %c8_i32_81 = arith.constant 8 : i32
    %152 = vector.broadcast %c8_i32_81 : i32 to vector<1x128xi32>
    %153 = arith.cmpi slt, %151, %152 : vector<1x128xi32>
    %cst_82 = arith.constant 0.000000e+00 : f32
    %154 = vector.shape_cast %153 : vector<1x128xi1> to vector<1x128xi1>
    %155 = vector.broadcast %154 : vector<1x128xi1> to vector<64x128xi1>
    %156 = vector.broadcast %cst_82 : f32 to vector<64x128xf32>
    %157 = arith.select %155, %148, %156 : vector<64x128xi1>, vector<64x128xf32>
    %c0_83 = arith.constant 0 : index
    %c0_84 = arith.constant 0 : index
    %158 = vector.load %arg18[%c0_83, %c0_84] : memref<64x1xf32, #tpu.memory_space<vmem>>, vector<64x1xf32>
    %159 = arith.mulf %157, %157 : vector<64x128xf32>
    %cst_85 = arith.constant dense<0.000000e+00> : vector<64xf32>
    %160 = vector.multi_reduction <add>, %159, %cst_85 [1] : vector<64x128xf32> to vector<64xf32>
    %161 = vector.shape_cast %160 : vector<64xf32> to vector<64x1xf32>
    %162 = arith.addf %158, %161 : vector<64x1xf32>
    %c0_86 = arith.constant 0 : index
    %c0_87 = arith.constant 0 : index
    %163 = vector.load %arg18[%c0_86, %c0_87] : memref<64x1xf32, #tpu.memory_space<vmem>>, vector<64x1xf32>
    tpu.vector_store %arg18[%c0_86, %c0_87], %162 {strides = array<i32>} : memref<64x1xf32, #tpu.memory_space<vmem>>, vector<64x1xf32>,
    %c1_i32_88 = arith.constant 1 : i32
    %c0_89 = arith.constant 0 : index
    %c0_90 = arith.constant 0 : index
    %164 = vector.load %arg18[%c0_89, %c0_90] : memref<64x1xf32, #tpu.memory_space<vmem>>, vector<64x1xf32>
    %cst_91 = arith.constant 1.250000e-01 : f32
    %165 = vector.broadcast %cst_91 : f32 to vector<64x1xf32>
    %166 = arith.mulf %164, %165 : vector<64x1xf32>
    %cst_92 = arith.constant 9.99999974E-6 : f32
    %167 = vector.broadcast %cst_92 : f32 to vector<64x1xf32>
    %168 = arith.addf %166, %167 : vector<64x1xf32>
    %169 = math.rsqrt %168 : vector<64x1xf32>
    %c0_i32_93 = arith.constant 0 : i32
    %c1_i32_94 = arith.constant 1 : i32
    %170 = arith.muli %c0_i32_93, %c1_i32_94 : i32
    %c0_i32_95 = arith.constant 0 : i32
    %171 = arith.addi %c0_i32_95, %170 : i32
    %c128_i32_96 = arith.constant 128 : i32
    %172 = arith.muli %171, %c128_i32_96 : i32
    %173 = tpu.assume_multiple %172, 128 : i32
    %c0_97 = arith.constant 0 : index
    %174 = arith.index_cast %173 : i32 to index
    %175 = vector.load %arg16[%c0_97, %174] : memref<64x128xf32, #tpu.memory_space<vmem>>, vector<64x128xf32>
    %176 = vector.broadcast %140 : vector<64x1xf32> to vector<64x128xf32>
    %177 = arith.subf %175, %176 : vector<64x128xf32>
    %178 = vector.broadcast %169 : vector<64x1xf32> to vector<64x128xf32>
    %179 = arith.mulf %177, %178 : vector<64x128xf32>
    %cst_98 = arith.constant 0.000000e+00 : f32
    %180 = vector.broadcast %cst_98 : f32 to vector<64x128xf32>
    %181 = arith.maximumf %179, %180 : vector<64x128xf32>
    %cst_99 = arith.constant dense<0.000000e+00> : vector<32x128xf32>
    %182 = tpu.matmul %7, %181, %cst_99 {dimension_numbers = #tpu.dot_dimension_numbers<[1], [0], [0], [1], [0, 0, 1, 1], [], []>} : vector<32x64xf32>, vector<64x128xf32>, vector<32x128xf32> -> vector<32x128xf32>
    %183 = vector.broadcast %8 : vector<32x1xf32> to vector<32x128xf32>
    %184 = arith.addf %182, %183 : vector<32x128xf32>
    %c0_100 = arith.constant 0 : index
    %c0_101 = arith.constant 0 : index
    %185 = arith.index_cast %173 : i32 to index
    %186 = vector.load %arg1[%c0_100, %c0_101, %185] : memref<1x32x128xf32, #tpu.memory_space<vmem>>, vector<1x32x128xf32>
    %187 = vector.shape_cast %186 : vector<1x32x128xf32> to vector<32x128xf32>
    %188 = arith.addf %187, %184 : vector<32x128xf32>
    %189 = tpu.iota {dimensions = array<i32: 1>} : vector<1x128xi32>
    %190 = vector.broadcast %173 : i32 to vector<1x128xi32>
    %191 = arith.addi %189, %190 : vector<1x128xi32>
    %c8_i32_102 = arith.constant 8 : i32
    %192 = vector.broadcast %c8_i32_102 : i32 to vector<1x128xi32>
    %193 = arith.cmpi slt, %191, %192 : vector<1x128xi32>
    %cst_103 = arith.constant 0.000000e+00 : f32
    %194 = vector.shape_cast %193 : vector<1x128xi1> to vector<1x128xi1>
    %195 = vector.broadcast %194 : vector<1x128xi1> to vector<32x128xi1>
    %196 = vector.broadcast %cst_103 : f32 to vector<32x128xf32>
    %197 = arith.select %195, %188, %196 : vector<32x128xi1>, vector<32x128xf32>
    %c0_104 = arith.constant 0 : index
    %c0_105 = arith.constant 0 : index
    %198 = arith.index_cast %173 : i32 to index
    %199 = vector.load %arg15[%c0_104, %c0_105, %198] : memref<1x32x128xf32, #tpu.memory_space<vmem>>, vector<1x32x128xf32>
    %200 = vector.shape_cast %199 : vector<1x32x128xf32> to vector<32x128xf32>
    %201 = vector.shape_cast %197 : vector<32x128xf32> to vector<1x32x128xf32>
    tpu.vector_store %arg15[%c0_104, %c0_105, %198], %201 {strides = array<i32>} : memref<1x32x128xf32, #tpu.memory_space<vmem>>, vector<1x32x128xf32>,
    %c1_i32_106 = arith.constant 1 : i32
    return
  }
  func.func @transform_0(%arg0: i32) -> (i32, i32, i32) {
    %c0_i32 = arith.constant 0 : i32
    %c0_i32_0 = arith.constant 0 : i32
    %c0_i32_1 = arith.constant 0 : i32
    return %arg0, %c0_i32, %c0_i32_0 : i32, i32, i32
  }
  func.func @transform_1(%arg0: i32) -> (i32, i32) {
    %c0_i32 = arith.constant 0 : i32
    %c0_i32_0 = arith.constant 0 : i32
    %c0_i32_1 = arith.constant 0 : i32
    return %c0_i32, %c0_i32_0 : i32, i32
  }
  func.func @transform_2(%arg0: i32) -> (i32, i32) {
    %c0_i32 = arith.constant 0 : i32
    %c0_i32_0 = arith.constant 0 : i32
    %c0_i32_1 = arith.constant 0 : i32
    return %c0_i32, %c0_i32_0 : i32, i32
  }
  func.func @transform_3(%arg0: i32) -> (i32, i32) {
    %c0_i32 = arith.constant 0 : i32
    %c0_i32_0 = arith.constant 0 : i32
    %c0_i32_1 = arith.constant 0 : i32
    return %c0_i32, %c0_i32_0 : i32, i32
  }
  func.func @transform_4(%arg0: i32) -> (i32, i32) {
    %c0_i32 = arith.constant 0 : i32
    %c0_i32_0 = arith.constant 0 : i32
    %c0_i32_1 = arith.constant 0 : i32
    return %c0_i32, %c0_i32_0 : i32, i32
  }
  func.func @transform_5(%arg0: i32) -> (i32, i32) {
    %c0_i32 = arith.constant 0 : i32
    %c0_i32_0 = arith.constant 0 : i32
    %c0_i32_1 = arith.constant 0 : i32
    return %c0_i32, %c0_i32_0 : i32, i32
  }
  func.func @transform_6(%arg0: i32) -> (i32, i32) {
    %c0_i32 = arith.constant 0 : i32
    %c0_i32_0 = arith.constant 0 : i32
    %c0_i32_1 = arith.constant 0 : i32
    return %c0_i32, %c0_i32_0 : i32, i32
  }
  func.func @transform_7(%arg0: i32) -> (i32, i32) {
    %c0_i32 = arith.constant 0 : i32
    %c0_i32_0 = arith.constant 0 : i32
    %c0_i32_1 = arith.constant 0 : i32
    return %c0_i32, %c0_i32_0 : i32, i32
  }
  func.func @transform_8(%arg0: i32) -> (i32, i32) {
    %c0_i32 = arith.constant 0 : i32
    %c0_i32_0 = arith.constant 0 : i32
    %c0_i32_1 = arith.constant 0 : i32
    return %c0_i32, %c0_i32_0 : i32, i32
  }
  func.func @transform_9(%arg0: i32) -> (i32, i32) {
    %c0_i32 = arith.constant 0 : i32
    %c0_i32_0 = arith.constant 0 : i32
    %c0_i32_1 = arith.constant 0 : i32
    return %c0_i32, %c0_i32_0 : i32, i32
  }
  func.func @transform_10(%arg0: i32) -> (i32, i32) {
    %c0_i32 = arith.constant 0 : i32
    %c0_i32_0 = arith.constant 0 : i32
    %c0_i32_1 = arith.constant 0 : i32
    return %c0_i32, %c0_i32_0 : i32, i32
  }
  func.func @transform_11(%arg0: i32) -> (i32, i32) {
    %c0_i32 = arith.constant 0 : i32
    %c0_i32_0 = arith.constant 0 : i32
    %c0_i32_1 = arith.constant 0 : i32
    return %c0_i32, %c0_i32_0 : i32, i32
  }
  func.func @transform_12(%arg0: i32) -> (i32, i32) {
    %c0_i32 = arith.constant 0 : i32
    %c0_i32_0 = arith.constant 0 : i32
    %c0_i32_1 = arith.constant 0 : i32
    return %c0_i32, %c0_i32_0 : i32, i32
  }
  func.func @transform_13(%arg0: i32) -> (i32, i32) {
    %c0_i32 = arith.constant 0 : i32
    %c0_i32_0 = arith.constant 0 : i32
    %c0_i32_1 = arith.constant 0 : i32
    return %c0_i32, %c0_i32_0 : i32, i32
  }
  func.func @transform_14(%arg0: i32) -> (i32, i32, i32) {
    %c0_i32 = arith.constant 0 : i32
    %c0_i32_0 = arith.constant 0 : i32
    %c0_i32_1 = arith.constant 0 : i32
    return %arg0, %c0_i32, %c0_i32_0 : i32, i32, i32
  }
}

</mosaic_0001>

<llo_original>
// kernel: tpu_custom_call.1
$region0: #{tpu_custom_call.1}
  #allocation0 [shape = 'u32[]', space=smem, size = 0x4, offset = 0x4, fixed_abs, tag = 'smem constant byte address 0x4 - core index']
  #allocation1 [shape = 'u32[72,128]{1,0:T(1,128)}', space=vmem, size = 0x9000, scoped, tag = 'internal scratch']
  #allocation2 [shape = 'f32[64,128]{1,0:T(8,128)}', space=vmem, size = 0x8000, scoped, tag = 'scratch operand']
  #allocation3 [shape = 'f32[64,1]{1,0:T(8,128)}', space=vmem, size = 0x8000, scoped, tag = 'scratch operand']
  #allocation4 [shape = 'f32[64,1]{1,0:T(8,128)}', space=vmem, size = 0x8000, scoped, tag = 'scratch operand']
  %s0 = inlined_call_operand.vmem [shape: f32[4,32,128], index: 0, kind: input, shape index: {}]
  %s1 = inlined_call_operand.vmem [shape: f32[32,32], index: 1, kind: input, shape index: {}]
  %s2 = inlined_call_operand.vmem [shape: f32[32,1], index: 2, kind: input, shape index: {}]
  %s3 = inlined_call_operand.vmem [shape: f32[32,32], index: 3, kind: input, shape index: {}]
  %s4 = inlined_call_operand.vmem [shape: f32[32,1], index: 4, kind: input, shape index: {}]
  %s5 = inlined_call_operand.vmem [shape: f32[32,32], index: 5, kind: input, shape index: {}]
  %s6 = inlined_call_operand.vmem [shape: f32[32,1], index: 6, kind: input, shape index: {}]
  %s7 = inlined_call_operand.vmem [shape: f32[32,32], index: 7, kind: input, shape index: {}]
  %s8 = inlined_call_operand.vmem [shape: f32[32,1], index: 8, kind: input, shape index: {}]
  %s9 = inlined_call_operand.vmem [shape: f32[64,32], index: 9, kind: input, shape index: {}]
  %s10 = inlined_call_operand.vmem [shape: f32[64,32], index: 10, kind: input, shape index: {}]
  %s11 = inlined_call_operand.vmem [shape: f32[64,1], index: 11, kind: input, shape index: {}]
  %s12 = inlined_call_operand.vmem [shape: f32[32,64], index: 12, kind: input, shape index: {}]
  %s13 = inlined_call_operand.vmem [shape: f32[32,1], index: 13, kind: input, shape index: {}]
  %s14 = inlined_call_operand.hbm [shape: f32[4,32,128], index: 14, kind: output, shape index: {}]
  %s15 = sld [smem:[#allocation0]]
  $region89: #{tpu_custom_call.1} parent=0
    _
  %s17 = ssub.s32 1, %s15
  %s18 = scalar_select 0, %s17, %s15
  $region1: #{tpu_custom_call.1} parent=0
    #allocation5 [shape = 'u8[32768]{0}', space=vmem, size = 0x8000, scoped, tag = 'output window, operand 0']
    #allocation6 [shape = 's32[2]{0}', space=sflag, size = 0x8, scoped, tag = 'scoped memory for tpu_custom_call.1']
    %19 = vsyncpa [#allocation6], 0
    %s20 = scalar_lea.sflag [#allocation6], 1
    %21 = vsyncpa %s20, 0
    loop: start=0, step=1, limit=6
    $region2: #{tpu_custom_call.1} parent=1 // loop_pre_header
      _
    $region3: #{tpu_custom_call.1} parent=1 // loop_header
      %s23 = sphi 0, %s27
      %p24 = scmp.ge.s32.totalorder %s23, 6
      %s33 = sphi 0, %s35
      %s36 = sphi 0, %s33
      %s37 = sphi 0, %s36
      %s53 = sphi 0, %s37
      %s57 = sphi 0, %s57
      %s59 = sphi 0, %s57
      %s60 = sphi 0, %s59
      %s74 = sphi 0, %s60
      %s78 = sphi 0, %s78
      %s80 = sphi 0, %s78
      %s81 = sphi 0, %s80
      %s95 = sphi 0, %s81
      %s99 = sphi 0, %s99
      %s101 = sphi 0, %s99
      %s102 = sphi 0, %s101
      %s116 = sphi 0, %s102
      %s120 = sphi 0, %s120
      %s122 = sphi 0, %s120
      %s123 = sphi 0, %s122
      %s137 = sphi 0, %s123
      %s141 = sphi 0, %s141
      %s143 = sphi 0, %s141
      %s144 = sphi 0, %s143
      %s158 = sphi 0, %s144
      %s162 = sphi 0, %s162
      %s164 = sphi 0, %s162
      %s165 = sphi 0, %s164
      %s179 = sphi 0, %s165
      %s183 = sphi 0, %s183
      %s185 = sphi 0, %s183
      %s186 = sphi 0, %s185
      %s200 = sphi 0, %s186
      %s204 = sphi 0, %s204
      %s206 = sphi 0, %s204
      %s207 = sphi 0, %s206
      %s221 = sphi 0, %s207
      %s225 = sphi 0, %s225
      %s227 = sphi 0, %s225
      %s228 = sphi 0, %s227
      %s242 = sphi 0, %s228
      %s246 = sphi 0, %s246
      %s248 = sphi 0, %s246
      %s249 = sphi 0, %s248
      %s263 = sphi 0, %s249
      %s267 = sphi 0, %s267
      %s269 = sphi 0, %s267
      %s270 = sphi 0, %s269
      %s284 = sphi 0, %s270
      %s288 = sphi 0, %s288
      %s290 = sphi 0, %s288
      %s291 = sphi 0, %s290
      %s305 = sphi 0, %s291
      %s309 = sphi 0, %s309
      %s311 = sphi 0, %s309
      %s312 = sphi 0, %s311
      %s326 = sphi 0, %s312
      %s332 = sphi 0, %s334
      %s335 = sphi 0, %s332
      %s336 = sphi 0, %s335
      %s352 = sphi 0, %s336
    $region4: #{tpu_custom_call.1} parent=1 // loop_header_branch
      %26 = sbr.rel (%p24) target = $region8
    $region5: #{tpu_custom_call.1} parent=1 // loop_body
      %s28 = ssub.s32 %s23, 1
      %s29 = ssub.s32 %s23, 2
      %s30 = sadd.s32 %s23, 1
      %s31 = ssub.s32 %s23, %s30
      %p32 = scmp.eq.s32.totalorder %s31, 0
      %s34 = sadd.s32 %s33, 1
      %s35 = scalar_select %p32, %s33, %s34
      %p38 = pneg %p32
      %p39 = scmp.eq.s32.totalorder %s23, 3
      %p40 = por %p38, %p39
      %p41 = scmp.ne.s32.totalorder %s33, %s36
      %p42 = scmp.eq.s32.totalorder %s23, 0
      %p43 = por %p41, %p42
      %p44 = scmp.ne.s32.totalorder %s33, %s36
      %p45 = scmp.eq.s32.totalorder %s28, 3
      %p46 = por %p44, %p45
      %p47 = scmp.ne.s32.totalorder %s36, %s37
      %p48 = scmp.eq.s32.totalorder %s28, 0
      %p49 = por %p47, %p48
      %p50 = scmp.ne.s32.totalorder %s36, %s37
      %p51 = scmp.eq.s32.totalorder %s29, 3
      %p52 = por %p50, %p51
      %p54 = scmp.ne.s32.totalorder %s37, %s53
      %p55 = scmp.eq.s32.totalorder %s29, 0
      %p56 = por %p54, %p55
      %s58 = sadd.s32 %s57, 1
      %p61 = scmp.eq.s32.totalorder %s23, 3
      %p62 = scmp.ne.s32.totalorder %s57, %s59
      %p63 = scmp.eq.s32.totalorder %s23, 0
      %p64 = por %p62, %p63
      %p65 = scmp.ne.s32.totalorder %s57, %s59
      %p66 = scmp.eq.s32.totalorder %s28, 3
      %p67 = por %p65, %p66
      %p68 = scmp.ne.s32.totalorder %s59, %s60
      %p69 = scmp.eq.s32.totalorder %s28, 0
      %p70 = por %p68, %p69
      %p71 = scmp.ne.s32.totalorder %s59, %s60
      %p72 = scmp.eq.s32.totalorder %s29, 3
      %p73 = por %p71, %p72
      %p75 = scmp.ne.s32.totalorder %s60, %s74
      %p76 = scmp.eq.s32.totalorder %s29, 0
      %p77 = por %p75, %p76
      %s79 = sadd.s32 %s78, 1
      %p82 = scmp.eq.s32.totalorder %s23, 3
      %p83 = scmp.ne.s32.totalorder %s78, %s80
      %p84 = scmp.eq.s32.totalorder %s23, 0
      %p85 = por %p83, %p84
      %p86 = scmp.ne.s32.totalorder %s78, %s80
      %p87 = scmp.eq.s32.totalorder %s28, 3
      %p88 = por %p86, %p87
      %p89 = scmp.ne.s32.totalorder %s80, %s81
      %p90 = scmp.eq.s32.totalorder %s28, 0
      %p91 = por %p89, %p90
      %p92 = scmp.ne.s32.totalorder %s80, %s81
      %p93 = scmp.eq.s32.totalorder %s29, 3
      %p94 = por %p92, %p93
      %p96 = scmp.ne.s32.totalorder %s81, %s95
      %p97 = scmp.eq.s32.totalorder %s29, 0
      %p98 = por %p96, %p97
      %s100 = sadd.s32 %s99, 1
      %p103 = scmp.eq.s32.totalorder %s23, 3
      %p104 = scmp.ne.s32.totalorder %s99, %s101
      %p105 = scmp.eq.s32.totalorder %s23, 0
      %p106 = por %p104, %p105
      %p107 = scmp.ne.s32.totalorder %s99, %s101
      %p108 = scmp.eq.s32.totalorder %s28, 3
      %p109 = por %p107, %p108
      %p110 = scmp.ne.s32.totalorder %s101, %s102
      %p111 = scmp.eq.s32.totalorder %s28, 0
      %p112 = por %p110, %p111
      %p113 = scmp.ne.s32.totalorder %s101, %s102
      %p114 = scmp.eq.s32.totalorder %s29, 3
      %p115 = por %p113, %p114
      %p117 = scmp.ne.s32.totalorder %s102, %s116
      %p118 = scmp.eq.s32.totalorder %s29, 0
      %p119 = por %p117, %p118
      %s121 = sadd.s32 %s120, 1
      %p124 = scmp.eq.s32.totalorder %s23, 3
      %p125 = scmp.ne.s32.totalorder %s120, %s122
      %p126 = scmp.eq.s32.totalorder %s23, 0
      %p127 = por %p125, %p126
      %p128 = scmp.ne.s32.totalorder %s120, %s122
      %p129 = scmp.eq.s32.totalorder %s28, 3
      %p130 = por %p128, %p129
      %p131 = scmp.ne.s32.totalorder %s122, %s123
      %p132 = scmp.eq.s32.totalorder %s28, 0
      %p133 = por %p131, %p132
      %p134 = scmp.ne.s32.totalorder %s122, %s123
      %p135 = scmp.eq.s32.totalorder %s29, 3
      %p136 = por %p134, %p135
      %p138 = scmp.ne.s32.totalorder %s123, %s137
      %p139 = scmp.eq.s32.totalorder %s29, 0
      %p140 = por %p138, %p139
      %s142 = sadd.s32 %s141, 1
      %p145 = scmp.eq.s32.totalorder %s23, 3
      %p146 = scmp.ne.s32.totalorder %s141, %s143
      %p147 = scmp.eq.s32.totalorder %s23, 0
      %p148 = por %p146, %p147
      %p149 = scmp.ne.s32.totalorder %s141, %s143
      %p150 = scmp.eq.s32.totalorder %s28, 3
      %p151 = por %p149, %p150
      %p152 = scmp.ne.s32.totalorder %s143, %s144
      %p153 = scmp.eq.s32.totalorder %s28, 0
      %p154 = por %p152, %p153
      %p155 = scmp.ne.s32.totalorder %s143, %s144
      %p156 = scmp.eq.s32.totalorder %s29, 3
      %p157 = por %p155, %p156
      %p159 = scmp.ne.s32.totalorder %s144, %s158
      %p160 = scmp.eq.s32.totalorder %s29, 0
      %p161 = por %p159, %p160
      %s163 = sadd.s32 %s162, 1
      %p166 = scmp.eq.s32.totalorder %s23, 3
      %p167 = scmp.ne.s32.totalorder %s162, %s164
      %p168 = scmp.eq.s32.totalorder %s23, 0
      %p169 = por %p167, %p168
      %p170 = scmp.ne.s32.totalorder %s162, %s164
      %p171 = scmp.eq.s32.totalorder %s28, 3
      %p172 = por %p170, %p171
      %p173 = scmp.ne.s32.totalorder %s164, %s165
      %p174 = scmp.eq.s32.totalorder %s28, 0
      %p175 = por %p173, %p174
      %p176 = scmp.ne.s32.totalorder %s164, %s165
      %p177 = scmp.eq.s32.totalorder %s29, 3
      %p178 = por %p176, %p177
      %p180 = scmp.ne.s32.totalorder %s165, %s179
      %p181 = scmp.eq.s32.totalorder %s29, 0
      %p182 = por %p180, %p181
      %s184 = sadd.s32 %s183, 1
      %p187 = scmp.eq.s32.totalorder %s23, 3
      %p188 = scmp.ne.s32.totalorder %s183, %s185
      %p189 = scmp.eq.s32.totalorder %s23, 0
      %p190 = por %p188, %p189
      %p191 = scmp.ne.s32.totalorder %s183, %s185
      %p192 = scmp.eq.s32.totalorder %s28, 3
      %p193 = por %p191, %p192
      %p194 = scmp.ne.s32.totalorder %s185, %s186
      %p195 = scmp.eq.s32.totalorder %s28, 0
      %p196 = por %p194, %p195
      %p197 = scmp.ne.s32.totalorder %s185, %s186
      %p198 = scmp.eq.s32.totalorder %s29, 3
      %p199 = por %p197, %p198
      %p201 = scmp.ne.s32.totalorder %s186, %s200
      %p202 = scmp.eq.s32.totalorder %s29, 0
      %p203 = por %p201, %p202
      %s205 = sadd.s32 %s204, 1
      %p208 = scmp.eq.s32.totalorder %s23, 3
      %p209 = scmp.ne.s32.totalorder %s204, %s206
      %p210 = scmp.eq.s32.totalorder %s23, 0
      %p211 = por %p209, %p210
      %p212 = scmp.ne.s32.totalorder %s204, %s206
      %p213 = scmp.eq.s32.totalorder %s28, 3
      %p214 = por %p212, %p213
      %p215 = scmp.ne.s32.totalorder %s206, %s207
      %p216 = scmp.eq.s32.totalorder %s28, 0
      %p217 = por %p215, %p216
      %p218 = scmp.ne.s32.totalorder %s206, %s207
      %p219 = scmp.eq.s32.totalorder %s29, 3
      %p220 = por %p218, %p219
      %p222 = scmp.ne.s32.totalorder %s207, %s221
      %p223 = scmp.eq.s32.totalorder %s29, 0
      %p224 = por %p222, %p223
      %s226 = sadd.s32 %s225, 1
      %p229 = scmp.eq.s32.totalorder %s23, 3
      %p230 = scmp.ne.s32.totalorder %s225, %s227
      %p231 = scmp.eq.s32.totalorder %s23, 0
      %p232 = por %p230, %p231
      %p233 = scmp.ne.s32.totalorder %s225, %s227
      %p234 = scmp.eq.s32.totalorder %s28, 3
      %p235 = por %p233, %p234
      %p236 = scmp.ne.s32.totalorder %s227, %s228
      %p237 = scmp.eq.s32.totalorder %s28, 0
      %p238 = por %p236, %p237
      %p239 = scmp.ne.s32.totalorder %s227, %s228
      %p240 = scmp.eq.s32.totalorder %s29, 3
      %p241 = por %p239, %p240
      %p243 = scmp.ne.s32.totalorder %s228, %s242
      %p244 = scmp.eq.s32.totalorder %s29, 0
      %p245 = por %p243, %p244
      %s247 = sadd.s32 %s246, 1
      %p250 = scmp.eq.s32.totalorder %s23, 3
      %p251 = scmp.ne.s32.totalorder %s246, %s248
      %p252 = scmp.eq.s32.totalorder %s23, 0
      %p253 = por %p251, %p252
      %p254 = scmp.ne.s32.totalorder %s246, %s248
      %p255 = scmp.eq.s32.totalorder %s28, 3
      %p256 = por %p254, %p255
      %p257 = scmp.ne.s32.totalorder %s248, %s249
      %p258 = scmp.eq.s32.totalorder %s28, 0
      %p259 = por %p257, %p258
      %p260 = scmp.ne.s32.totalorder %s248, %s249
      %p261 = scmp.eq.s32.totalorder %s29, 3
      %p262 = por %p260, %p261
      %p264 = scmp.ne.s32.totalorder %s249, %s263
      %p265 = scmp.eq.s32.totalorder %s29, 0
      %p266 = por %p264, %p265
      %s268 = sadd.s32 %s267, 1
      %p271 = scmp.eq.s32.totalorder %s23, 3
      %p272 = scmp.ne.s32.totalorder %s267, %s269
      %p273 = scmp.eq.s32.totalorder %s23, 0
      %p274 = por %p272, %p273
      %p275 = scmp.ne.s32.totalorder %s267, %s269
      %p276 = scmp.eq.s32.totalorder %s28, 3
      %p277 = por %p275, %p276
      %p278 = scmp.ne.s32.totalorder %s269, %s270
      %p279 = scmp.eq.s32.totalorder %s28, 0
      %p280 = por %p278, %p279
      %p281 = scmp.ne.s32.totalorder %s269, %s270
      %p282 = scmp.eq.s32.totalorder %s29, 3
      %p283 = por %p281, %p282
      %p285 = scmp.ne.s32.totalorder %s270, %s284
      %p286 = scmp.eq.s32.totalorder %s29, 0
      %p287 = por %p285, %p286
      %s289 = sadd.s32 %s288, 1
      %p292 = scmp.eq.s32.totalorder %s23, 3
      %p293 = scmp.ne.s32.totalorder %s288, %s290
      %p294 = scmp.eq.s32.totalorder %s23, 0
      %p295 = por %p293, %p294
      %p296 = scmp.ne.s32.totalorder %s288, %s290
      %p297 = scmp.eq.s32.totalorder %s28, 3
      %p298 = por %p296, %p297
      %p299 = scmp.ne.s32.totalorder %s290, %s291
      %p300 = scmp.eq.s32.totalorder %s28, 0
      %p301 = por %p299, %p300
      %p302 = scmp.ne.s32.totalorder %s290, %s291
      %p303 = scmp.eq.s32.totalorder %s29, 3
      %p304 = por %p302, %p303
      %p306 = scmp.ne.s32.totalorder %s291, %s305
      %p307 = scmp.eq.s32.totalorder %s29, 0
      %p308 = por %p306, %p307
      %s310 = sadd.s32 %s309, 1
      %p313 = scmp.eq.s32.totalorder %s23, 3
      %p314 = scmp.ne.s32.totalorder %s309, %s311
      %p315 = scmp.eq.s32.totalorder %s23, 0
      %p316 = por %p314, %p315
      %p317 = scmp.ne.s32.totalorder %s309, %s311
      %p318 = scmp.eq.s32.totalorder %s28, 3
      %p319 = por %p317, %p318
      %p320 = scmp.ne.s32.totalorder %s311, %s312
      %p321 = scmp.eq.s32.totalorder %s28, 0
      %p322 = por %p320, %p321
      %p323 = scmp.ne.s32.totalorder %s311, %s312
      %p324 = scmp.eq.s32.totalorder %s29, 3
      %p325 = por %p323, %p324
      %p327 = scmp.ne.s32.totalorder %s312, %s326
      %p328 = scmp.eq.s32.totalorder %s29, 0
      %p329 = por %p327, %p328
      %s330 = ssub.s32 %s23, %s30
      %p331 = scmp.eq.s32.totalorder %s330, 0
      %s333 = sadd.s32 %s332, 1
      %s334 = scalar_select %p331, %s332, %s333
      %p337 = pneg %p331
      %p338 = scmp.eq.s32.totalorder %s23, 3
      %p339 = por %p337, %p338
      %p340 = scmp.ne.s32.totalorder %s332, %s335
      %p341 = scmp.eq.s32.totalorder %s23, 0
      %p342 = por %p340, %p341
      %p343 = scmp.ne.s32.totalorder %s332, %s335
      %p344 = scmp.eq.s32.totalorder %s28, 3
      %p345 = por %p343, %p344
      %p346 = scmp.ne.s32.totalorder %s335, %s336
      %p347 = scmp.eq.s32.totalorder %s28, 0
      %p348 = por %p346, %p347
      %p349 = scmp.ne.s32.totalorder %s335, %s336
      %p350 = scmp.eq.s32.totalorder %s29, 3
      %p351 = por %p349, %p350
      %p353 = scmp.ne.s32.totalorder %s336, %s352
      %p354 = scmp.eq.s32.totalorder %s29, 0
      %p355 = por %p353, %p354
      %p356 = scmp.le.s32.totalorder 1, %s23
      %p357 = scmp.lt.s32.totalorder %s23, 5
      %p358 = pnand %p356, %p357
      %p359 = pneg %p358
      // Predicated region
      $region9: #{tpu_custom_call.1} parent=5 // pred_check
        _
      $region10: #{tpu_custom_call.1} parent=5 // pred_check_branch
        %361 = sbr.rel (%p358) target = $region12
      $region11: #{tpu_custom_call.1} parent=5 // pred_region
        %s362 = ssub.s32 %s23, 1
        // Predicated region
        $region13: #{tpu_custom_call.1} parent=11 // pred_check
          %p363 = pneg %p70
        $region14: #{tpu_custom_call.1} parent=11 // pred_check_branch
          %365 = sbr.rel (%p363) target = $region16
        $region15: #{tpu_custom_call.1} parent=11 // pred_region
          _
        $region16: #{tpu_custom_call.1} parent=11 // pred_fallthru
          _
        // Predicated region
        $region17: #{tpu_custom_call.1} parent=11 // pred_check
          %p366 = pneg %p91
        $region18: #{tpu_custom_call.1} parent=11 // pred_check_branch
          %368 = sbr.rel (%p366) target = $region20
        $region19: #{tpu_custom_call.1} parent=11 // pred_region
          _
        $region20: #{tpu_custom_call.1} parent=11 // pred_fallthru
          _
        // Predicated region
        $region21: #{tpu_custom_call.1} parent=11 // pred_check
          %p369 = pneg %p112
        $region22: #{tpu_custom_call.1} parent=11 // pred_check_branch
          %371 = sbr.rel (%p369) target = $region24
        $region23: #{tpu_custom_call.1} parent=11 // pred_region
          _
        $region24: #{tpu_custom_call.1} parent=11 // pred_fallthru
          _
        // Predicated region
        $region25: #{tpu_custom_call.1} parent=11 // pred_check
          %p372 = pneg %p133
        $region26: #{tpu_custom_call.1} parent=11 // pred_check_branch
          %374 = sbr.rel (%p372) target = $region28
        $region27: #{tpu_custom_call.1} parent=11 // pred_region
          _
        $region28: #{tpu_custom_call.1} parent=11 // pred_fallthru
          _
        // Predicated region
        $region29: #{tpu_custom_call.1} parent=11 // pred_check
          %p375 = pneg %p154
        $region30: #{tpu_custom_call.1} parent=11 // pred_check_branch
          %377 = sbr.rel (%p375) target = $region32
        $region31: #{tpu_custom_call.1} parent=11 // pred_region
          _
        $region32: #{tpu_custom_call.1} parent=11 // pred_fallthru
          _
        // Predicated region
        $region33: #{tpu_custom_call.1} parent=11 // pred_check
          %p378 = pneg %p175
        $region34: #{tpu_custom_call.1} parent=11 // pred_check_branch
          %380 = sbr.rel (%p378) target = $region36
        $region35: #{tpu_custom_call.1} parent=11 // pred_region
          _
        $region36: #{tpu_custom_call.1} parent=11 // pred_fallthru
          _
        // Predicated region
        $region37: #{tpu_custom_call.1} parent=11 // pred_check
          %p381 = pneg %p196
        $region38: #{tpu_custom_call.1} parent=11 // pred_check_branch
          %383 = sbr.rel (%p381) target = $region40
        $region39: #{tpu_custom_call.1} parent=11 // pred_region
          _
        $region40: #{tpu_custom_call.1} parent=11 // pred_fallthru
          _
        // Predicated region
        $region41: #{tpu_custom_call.1} parent=11 // pred_check
          %p384 = pneg %p217
        $region42: #{tpu_custom_call.1} parent=11 // pred_check_branch
          %386 = sbr.rel (%p384) target = $region44
        $region43: #{tpu_custom_call.1} parent=11 // pred_region
          _
        $region44: #{tpu_custom_call.1} parent=11 // pred_fallthru
          _
        // Predicated region
        $region45: #{tpu_custom_call.1} parent=11 // pred_check
          %p387 = pneg %p238
        $region46: #{tpu_custom_call.1} parent=11 // pred_check_branch
          %389 = sbr.rel (%p387) target = $region48
        $region47: #{tpu_custom_call.1} parent=11 // pred_region
          _
        $region48: #{tpu_custom_call.1} parent=11 // pred_fallthru
          _
        // Predicated region
        $region49: #{tpu_custom_call.1} parent=11 // pred_check
          %p390 = pneg %p259
        $region50: #{tpu_custom_call.1} parent=11 // pred_check_branch
          %392 = sbr.rel (%p390) target = $region52
        $region51: #{tpu_custom_call.1} parent=11 // pred_region
          _
        $region52: #{tpu_custom_call.1} parent=11 // pred_fallthru
          _
        // Predicated region
        $region53: #{tpu_custom_call.1} parent=11 // pred_check
          %p393 = pneg %p280
        $region54: #{tpu_custom_call.1} parent=11 // pred_check_branch
          %395 = sbr.rel (%p393) target = $region56
        $region55: #{tpu_custom_call.1} parent=11 // pred_region
          _
        $region56: #{tpu_custom_call.1} parent=11 // pred_fallthru
          _
        // Predicated region
        $region57: #{tpu_custom_call.1} parent=11 // pred_check
          %p396 = pneg %p301
        $region58: #{tpu_custom_call.1} parent=11 // pred_check_branch
          %398 = sbr.rel (%p396) target = $region60
        $region59: #{tpu_custom_call.1} parent=11 // pred_region
          _
        $region60: #{tpu_custom_call.1} parent=11 // pred_fallthru
          _
        // Predicated region
        $region61: #{tpu_custom_call.1} parent=11 // pred_check
          %p399 = pneg %p322
        $region62: #{tpu_custom_call.1} parent=11 // pred_check_branch
          %401 = sbr.rel (%p399) target = $region64
        $region63: #{tpu_custom_call.1} parent=11 // pred_region
          _
        $region64: #{tpu_custom_call.1} parent=11 // pred_fallthru
          _
      $region12: #{tpu_custom_call.1} parent=5 // pred_fallthru
        _
      %p402 = scmp.lt.s32.totalorder %s23, 4
      // Predicated region
      $region65: #{tpu_custom_call.1} parent=5 // pred_check
        %p403 = pneg %p402
      $region66: #{tpu_custom_call.1} parent=5 // pred_check_branch
        %405 = sbr.rel (%p403) target = $region68
      $region67: #{tpu_custom_call.1} parent=5 // pred_region
        // Predicated region
        $region69: #{tpu_custom_call.1} parent=67 // pred_check
          %p406 = pneg %p43
        $region70: #{tpu_custom_call.1} parent=67 // pred_check_branch
          %408 = sbr.rel (%p406) target = $region72
        $region71: #{tpu_custom_call.1} parent=67 // pred_region
          %p409 = scmp.lt.s32.totalorder %s23, 3
          %s410 = scalar_select %p409, %s23, 3
          %s411 = smul.addr %s410, 4
          %s412 = smul.addr %s411, 8
          %s413 = scalar_lea.vmem %s0, %s412
        $region72: #{tpu_custom_call.1} parent=67 // pred_fallthru
          _
      $region68: #{tpu_custom_call.1} parent=5 // pred_fallthru
        _
      %p414 = scmp.le.s32.totalorder 1, %s23
      %p415 = scmp.lt.s32.totalorder %s23, 5
      %p416 = pnand %p414, %p415
      %p417 = pneg %p416
      // Predicated region
      $region73: #{tpu_custom_call.1} parent=5 // pred_check
        _
      $region74: #{tpu_custom_call.1} parent=5 // pred_check_branch
        %419 = sbr.rel (%p416) target = $region76
      $region75: #{tpu_custom_call.1} parent=5 // pred_region
        %s420 = ssub.s32 %s23, 1
        %p421 = scmp.lt.s32.totalorder %s28, 3
        %s422 = scalar_select %p421, %s28, 3
        %s423 = smul.addr %s422, 4
        %s424 = smul.addr %s423, 8
        %s425 = scalar_lea.vmem %s0, %s424
        %p426 = pneg %p49
        %p427 = pneg %p46
        %p428 = pneg %p70
        %p429 = pneg %p67
        %p430 = pneg %p91
        %p431 = pneg %p88
        %p432 = pneg %p112
        %p433 = pneg %p109
        %p434 = pneg %p133
        %p435 = pneg %p130
        %p436 = pneg %p154
        %p437 = pneg %p151
        %p438 = pneg %p175
        %p439 = pneg %p172
        %p440 = pneg %p196
        %p441 = pneg %p193
        %p442 = pneg %p217
        %p443 = pneg %p214
        %p444 = pneg %p238
        %p445 = pneg %p235
        %p446 = pneg %p259
        %p447 = pneg %p256
        %p448 = pneg %p280
        %p449 = pneg %p277
        %p450 = pneg %p301
        %p451 = pneg %p298
        %p452 = pneg %p322
        %p453 = pneg %p319
        %p454 = pneg %p348
        %p455 = pneg %p345
        %s456 = sand.u32 %s335, 1
        %s457 = scalar_lea.sflag [#allocation6], %s456
        %s458 = sand.u32 %s335, 1
        %s459 = smul.addr %s458, 32
        %s460 = scalar_lea.vmem [#allocation5], %s459
        %p461 = scmp.lt.s32.totalorder %s28, 3
        %s462 = scalar_select %p461, %s28, 3
        %s463 = smul.addr %s462, 4
        %s464 = smul.addr %s463, 8
        %s465 = scalar_lea.vmem %s0, %s464
        %v466 = vld [vmem:[%s1] sm:$0xff]
        %v467 = vld [vmem:[%s1 + $0x8] sm:$0xff]
        %v468 = vld [vmem:[%s1 + $0x10] sm:$0xff]
        %v469 = vld [vmem:[%s1 + $0x18] sm:$0xff]
        %v470 = vld [vmem:[%s2] sm:$0xff]
        %v471 = vld [vmem:[%s2 + $0x8] sm:$0xff]
        %v472 = vld [vmem:[%s2 + $0x10] sm:$0xff]
        %v473 = vld [vmem:[%s2 + $0x18] sm:$0xff]
        %v474 = vld [vmem:[%s7] sm:$0xff]
        %v475 = vld [vmem:[%s7 + $0x8] sm:$0xff]
        %v476 = vld [vmem:[%s7 + $0x10] sm:$0xff]
        %v477 = vld [vmem:[%s7 + $0x18] sm:$0xff]
        %v478 = vld [vmem:[%s8] sm:$0xff]
        %v479 = vld [vmem:[%s8 + $0x8] sm:$0xff]
        %v480 = vld [vmem:[%s8 + $0x10] sm:$0xff]
        %v481 = vld [vmem:[%s8 + $0x18] sm:$0xff]
        %v482 = vld [vmem:[%s9] sm:$0xff]
        %v483 = vld [vmem:[%s9 + $0x8] sm:$0xff]
        %v484 = vld [vmem:[%s9 + $0x10] sm:$0xff]
        %v485 = vld [vmem:[%s9 + $0x18] sm:$0xff]
        %v486 = vld [vmem:[%s9 + $0x20] sm:$0xff]
        %v487 = vld [vmem:[%s9 + $0x28] sm:$0xff]
        %v488 = vld [vmem:[%s9 + $0x30] sm:$0xff]
        %v489 = vld [vmem:[%s9 + $0x38] sm:$0xff]
        %v490 = vld [vmem:[%s10] sm:$0xff]
        %v491 = vld [vmem:[%s10 + $0x8] sm:$0xff]
        %v492 = vld [vmem:[%s10 + $0x10] sm:$0xff]
        %v493 = vld [vmem:[%s10 + $0x18] sm:$0xff]
        %v494 = vld [vmem:[%s10 + $0x20] sm:$0xff]
        %v495 = vld [vmem:[%s10 + $0x28] sm:$0xff]
        %v496 = vld [vmem:[%s10 + $0x30] sm:$0xff]
        %v497 = vld [vmem:[%s10 + $0x38] sm:$0xff]
        %v498 = vld [vmem:[%s11] sm:$0xff]
        %v499 = vld [vmem:[%s11 + $0x8] sm:$0xff]
        %v500 = vld [vmem:[%s11 + $0x10] sm:$0xff]
        %v501 = vld [vmem:[%s11 + $0x18] sm:$0xff]
        %v502 = vld [vmem:[%s11 + $0x20] sm:$0xff]
        %v503 = vld [vmem:[%s11 + $0x28] sm:$0xff]
        %v504 = vld [vmem:[%s11 + $0x30] sm:$0xff]
        %v505 = vld [vmem:[%s11 + $0x38] sm:$0xff]
        %v506 = vld [vmem:[%s12] sm:$0xff]
        %v507 = vld [vmem:[%s12 + $0x8] sm:$0xff]
        %v508 = vld [vmem:[%s12 + $0x10] sm:$0xff]
        %v509 = vld [vmem:[%s12 + $0x18] sm:$0xff]
        %v510 = vld [vmem:[%s13] sm:$0xff]
        %v511 = vld [vmem:[%s13 + $0x8] sm:$0xff]
        %v512 = vld [vmem:[%s13 + $0x10] sm:$0xff]
        %v513 = vld [vmem:[%s13 + $0x18] sm:$0xff]
        %v514 = vld [vmem:[%s465] sm:$0xff]
        %v515 = vld [vmem:[%s465 + $0x8] sm:$0xff]
        %v516 = vld [vmem:[%s465 + $0x10] sm:$0xff]
        %v517 = vld [vmem:[%s465 + $0x18] sm:$0xff]
        %v518 = vld [vmem:[%s3] sm:$0xff]
        %v519 = vld [vmem:[%s3 + $0x8] sm:$0xff]
        %v520 = vld [vmem:[%s3 + $0x10] sm:$0xff]
        %v521 = vld [vmem:[%s3 + $0x18] sm:$0xff]
        %v522 = vld [vmem:[%s4] sm:$0xff]
        %v523 = vld [vmem:[%s4 + $0x8] sm:$0xff]
        %v524 = vld [vmem:[%s4 + $0x10] sm:$0xff]
        %v525 = vld [vmem:[%s4 + $0x18] sm:$0xff]
        %527 = vset.pattern.permute.xlu0 0
        %528 = vperm.xlu0 %527, %v522
        %v529 = vpop.permute.xlu0 %528
        %532 = vset.pattern.permute.xlu0 0
        %533 = vperm.xlu0 %532, %v523
        %v534 = vpop.permute.xlu0 %533
        %537 = vset.pattern.permute.xlu0 0
        %538 = vperm.xlu0 %537, %v524
        %v539 = vpop.permute.xlu0 %538
        %542 = vset.pattern.permute.xlu0 0
        %543 = vperm.xlu0 %542, %v525
        %v544 = vpop.permute.xlu0 %543
        %vm546 = vcmask 261120
        %v548 = vsel %vm546, %v518, 0
        %v551 = vsel %vm546, %v519, 0
        %v554 = vsel %vm546, %v520, 0
        %v557 = vsel %vm546, %v521, 0
        %559 = vmatpush.msra.mxu0 0.0
        %560 = vmatpush.msra.mxu0 0.0
        %561 = vmatpush.msra.mxu0 0.0
        %562 = vmatpush.msra.mxu0 0.0
        %563 = vmatpush.msra.mxu0 0.0
        %564 = vmatpush.msra.mxu0 0.0
        %565 = vmatpush.msra.mxu0 0.0
        %566 = vmatpush.msra.mxu0 0.0
        %567 = vmatpush.msra.mxu0 0.0
        %568 = vmatpush.msra.mxu0 0.0
        %569 = vmatpush.msra.mxu0 0.0
        %570 = vmatpush.msra.mxu0 0.0
        %571 = vmatpush.msra.mxu0 %v517
        %572 = vmatpush.msra.mxu0 %v516
        %573 = vmatpush.msra.mxu0 %v515
        %574 = vmatpush.msra.mxu0 %v514
        %575 = vmatmul.f32.gmra.mxu0 %v548
        %v576 = vpop.f32.mrf.mxu0
        %v577 = vadd.f32 %v529, %v576
        %578 = vmatmul.f32.gmra.mxu0 %v551
        %v579 = vpop.f32.mrf.mxu0
        %v580 = vadd.f32 %v534, %v579
        %581 = vmatmul.f32.gmra.mxu0 %v554
        %v582 = vpop.f32.mrf.mxu0
        %v583 = vadd.f32 %v539, %v582
        %584 = vmatmul.f32.gmra.mxu0 %v557
        %v585 = vpop.f32.mrf.mxu0
        %v586 = vadd.f32 %v544, %v585
        %587 = vdwg.mxu0
        %v588 = vld [vmem:[%s5] sm:$0xff]
        %v589 = vld [vmem:[%s5 + $0x8] sm:$0xff]
        %v590 = vld [vmem:[%s5 + $0x10] sm:$0xff]
        %v591 = vld [vmem:[%s5 + $0x18] sm:$0xff]
        %v592 = vld [vmem:[%s6] sm:$0xff]
        %v593 = vld [vmem:[%s6 + $0x8] sm:$0xff]
        %v594 = vld [vmem:[%s6 + $0x10] sm:$0xff]
        %v595 = vld [vmem:[%s6 + $0x18] sm:$0xff]
        %597 = vset.pattern.permute.xlu0 0
        %598 = vperm.xlu0 %597, %v592
        %v599 = vpop.permute.xlu0 %598
        %602 = vset.pattern.permute.xlu0 0
        %603 = vperm.xlu0 %602, %v593
        %v604 = vpop.permute.xlu0 %603
        %607 = vset.pattern.permute.xlu0 0
        %608 = vperm.xlu0 %607, %v594
        %v609 = vpop.permute.xlu0 %608
        %612 = vset.pattern.permute.xlu0 0
        %613 = vperm.xlu0 %612, %v595
        %v614 = vpop.permute.xlu0 %613
        %v617 = vsel %vm546, %v588, 0
        %v620 = vsel %vm546, %v589, 0
        %v623 = vsel %vm546, %v590, 0
        %v626 = vsel %vm546, %v591, 0
        %628 = vmatpush.msra.mxu0 0.0
        %629 = vmatpush.msra.mxu0 0.0
        %630 = vmatpush.msra.mxu0 0.0
        %631 = vmatpush.msra.mxu0 0.0
        %632 = vmatpush.msra.mxu0 0.0
        %633 = vmatpush.msra.mxu0 0.0
        %634 = vmatpush.msra.mxu0 0.0
        %635 = vmatpush.msra.mxu0 0.0
        %636 = vmatpush.msra.mxu0 0.0
        %637 = vmatpush.msra.mxu0 0.0
        %638 = vmatpush.msra.mxu0 0.0
        %639 = vmatpush.msra.mxu0 0.0
        %640 = vmatpush.msra.mxu0 %v517
        %641 = vmatpush.msra.mxu0 %v516
        %642 = vmatpush.msra.mxu0 %v515
        %643 = vmatpush.msra.mxu0 %v514
        %644 = vmatmul.f32.gmra.mxu0 %v617
        %v645 = vpop.f32.mrf.mxu0
        %v646 = vadd.f32 %v599, %v645
        %647 = vmatmul.f32.gmra.mxu0 %v620
        %v648 = vpop.f32.mrf.mxu0
        %v649 = vadd.f32 %v604, %v648
        %650 = vmatmul.f32.gmra.mxu0 %v623
        %v651 = vpop.f32.mrf.mxu0
        %v652 = vadd.f32 %v609, %v651
        %653 = vmatmul.f32.gmra.mxu0 %v626
        %v654 = vpop.f32.mrf.mxu0
        %v655 = vadd.f32 %v614, %v654
        %656 = vdwg.mxu0
        %v657 = vlaneseq
        %v658 = vand.u32 %v657, 127
        %vm659 = vcmp.lt.s32.totalorder %v658, 8
        %v660 = vsel %vm659, 0.0, -1e+30
        %vm661 = vcmask 7168
        %662 = vst.msk [vmem:[#allocation3] sm:$0xff] %vm661, 0.0
        %663 = vst.msk [vmem:[#allocation3 + $0x8] sm:$0xff] %vm661, 0.0
        %664 = vst.msk [vmem:[#allocation3 + $0x10] sm:$0xff] %vm661, 0.0
        %665 = vst.msk [vmem:[#allocation3 + $0x18] sm:$0xff] %vm661, 0.0
        %666 = vst.msk [vmem:[#allocation3 + $0x20] sm:$0xff] %vm661, 0.0
        %667 = vst.msk [vmem:[#allocation3 + $0x28] sm:$0xff] %vm661, 0.0
        %668 = vst.msk [vmem:[#allocation3 + $0x30] sm:$0xff] %vm661, 0.0
        %669 = vst.msk [vmem:[#allocation3 + $0x38] sm:$0xff] %vm661, 0.0
        %670 = vst.msk [vmem:[#allocation4] sm:$0xff] %vm661, 0.0
        %671 = vst.msk [vmem:[#allocation4 + $0x8] sm:$0xff] %vm661, 0.0
        %672 = vst.msk [vmem:[#allocation4 + $0x10] sm:$0xff] %vm661, 0.0
        %673 = vst.msk [vmem:[#allocation4 + $0x18] sm:$0xff] %vm661, 0.0
        %674 = vst.msk [vmem:[#allocation4 + $0x20] sm:$0xff] %vm661, 0.0
        %675 = vst.msk [vmem:[#allocation4 + $0x28] sm:$0xff] %vm661, 0.0
        %676 = vst.msk [vmem:[#allocation4 + $0x30] sm:$0xff] %vm661, 0.0
        %677 = vst.msk [vmem:[#allocation4 + $0x38] sm:$0xff] %vm661, 0.0
        %v678 = vld [vmem:[%s465] sm:$0xff]
        %v679 = vld [vmem:[%s465 + $0x8] sm:$0xff]
        %v680 = vld [vmem:[%s465 + $0x10] sm:$0xff]
        %v681 = vld [vmem:[%s465 + $0x18] sm:$0xff]
        %683 = vset.pattern.permute.xlu0 0
        %684 = vperm.xlu0 %683, %v470
        %v685 = vpop.permute.xlu0 %684
        %688 = vset.pattern.permute.xlu0 0
        %689 = vperm.xlu0 %688, %v471
        %v690 = vpop.permute.xlu0 %689
        %693 = vset.pattern.permute.xlu0 0
        %694 = vperm.xlu0 %693, %v472
        %v695 = vpop.permute.xlu0 %694
        %698 = vset.pattern.permute.xlu0 0
        %699 = vperm.xlu0 %698, %v473
        %v700 = vpop.permute.xlu0 %699
        %v703 = vsel %vm546, %v466, 0
        %v706 = vsel %vm546, %v467, 0
        %v709 = vsel %vm546, %v468, 0
        %v712 = vsel %vm546, %v469, 0
        %714 = vmatpush.msra.mxu0 0.0
        %715 = vmatpush.msra.mxu0 0.0
        %716 = vmatpush.msra.mxu0 0.0
        %717 = vmatpush.msra.mxu0 0.0
        %718 = vmatpush.msra.mxu0 0.0
        %719 = vmatpush.msra.mxu0 0.0
        %720 = vmatpush.msra.mxu0 0.0
        %721 = vmatpush.msra.mxu0 0.0
        %722 = vmatpush.msra.mxu0 0.0
        %723 = vmatpush.msra.mxu0 0.0
        %724 = vmatpush.msra.mxu0 0.0
        %725 = vmatpush.msra.mxu0 0.0
        %726 = vmatpush.msra.mxu0 %v681
        %727 = vmatpush.msra.mxu0 %v680
        %728 = vmatpush.msra.mxu0 %v679
        %729 = vmatpush.msra.mxu0 %v678
        %730 = vmatmul.f32.gmra.mxu0 %v703
        %v731 = vpop.f32.mrf.mxu0
        %v732 = vadd.f32 %v685, %v731
        %733 = vmatmul.f32.gmra.mxu0 %v706
        %v734 = vpop.f32.mrf.mxu0
        %v735 = vadd.f32 %v690, %v734
        %736 = vmatmul.f32.gmra.mxu0 %v709
        %v737 = vpop.f32.mrf.mxu0
        %v738 = vadd.f32 %v695, %v737
        %739 = vmatmul.f32.gmra.mxu0 %v712
        %v740 = vpop.f32.mrf.mxu0
        %v741 = vadd.f32 %v700, %v740
        %742 = vdwg.mxu0
        %743 = vxpose.xlu0.b32.start [1/16] %v732, 128
        %744 = vxpose.xlu0.b32.cont [2/16] 0.0, 128
        %745 = vxpose.xlu0.b32.cont [3/16] 0.0, 128
        %746 = vxpose.xlu0.b32.cont [4/16] 0.0, 128
        %747 = vxpose.xlu0.b32.cont [5/16] 0.0, 128
        %748 = vxpose.xlu0.b32.cont [6/16] 0.0, 128
        %749 = vxpose.xlu0.b32.cont [7/16] 0.0, 128
        %750 = vxpose.xlu0.b32.cont [8/16] 0.0, 128
        %751 = vxpose.xlu0.b32.cont [9/16] 0.0, 128
        %752 = vxpose.xlu0.b32.cont [10/16] 0.0, 128
        %753 = vxpose.xlu0.b32.cont [11/16] 0.0, 128
        %754 = vxpose.xlu0.b32.cont [12/16] 0.0, 128
        %755 = vxpose.xlu0.b32.cont [13/16] 0.0, 128
        %756 = vxpose.xlu0.b32.cont [14/16] 0.0, 128
        %757 = vxpose.xlu0.b32.cont [15/16] 0.0, 128
        %758 = vxpose.xlu0.b32.end [16/16] 0.0, 128
        %v759 = vpop.trf.xlu0
        %v760 = vpop.trf.xlu0
        %v761 = vpop.trf.xlu0
        %v762 = vpop.trf.xlu0
        %v763 = vpop.trf.xlu0
        %v764 = vpop.trf.xlu0
        %v765 = vpop.trf.xlu0
        %v766 = vpop.trf.xlu0
        %v767 = vpop.trf.xlu0
        %v768 = vpop.trf.xlu0
        %v769 = vpop.trf.xlu0
        %v770 = vpop.trf.xlu0
        %v771 = vpop.trf.xlu0
        %v772 = vpop.trf.xlu0
        %v773 = vpop.trf.xlu0
        %v774 = vpop.trf.xlu0
        %vm775 = vcmask 64512
        %v777 = vsel %vm775, %v759, 0
        %v780 = vsel %vm775, %v760, 0
        %v783 = vsel %vm775, %v761, 0
        %v786 = vsel %vm775, %v762, 0
        %v789 = vsel %vm775, %v763, 0
        %v792 = vsel %vm775, %v764, 0
        %v795 = vsel %vm775, %v765, 0
        %v798 = vsel %vm775, %v766, 0
        %v801 = vsel %vm775, %v767, 0
        %v804 = vsel %vm775, %v768, 0
        %v807 = vsel %vm775, %v769, 0
        %v810 = vsel %vm775, %v770, 0
        %v813 = vsel %vm775, %v771, 0
        %v816 = vsel %vm775, %v772, 0
        %v819 = vsel %vm775, %v773, 0
        %v822 = vsel %vm775, %v774, 0
        %824 = vmatpush.msra.mxu0 0.0
        %825 = vmatpush.msra.mxu0 0.0
        %826 = vmatpush.msra.mxu0 0.0
        %827 = vmatpush.msra.mxu0 0.0
        %828 = vmatpush.msra.mxu0 0.0
        %829 = vmatpush.msra.mxu0 0.0
        %830 = vmatpush.msra.mxu0 0.0
        %831 = vmatpush.msra.mxu0 0.0
        %832 = vmatpush.msra.mxu0 0.0
        %833 = vmatpush.msra.mxu0 0.0
        %834 = vmatpush.msra.mxu0 0.0
        %835 = vmatpush.msra.mxu0 0.0
        %836 = vmatpush.msra.mxu0 0.0
        %837 = vmatpush.msra.mxu0 0.0
        %838 = vmatpush.msra.mxu0 0.0
        %839 = vmatpush.msra.mxu0 %v577
        %840 = vmatmul.f32.gmra.mxu0 %v777
        %v841 = vpop.f32.mrf.mxu0
        %v842 = vadd.f32 %v660, %v841
        %843 = vmatmul.f32.gmra.mxu0 %v780
        %v844 = vpop.f32.mrf.mxu0
        %v845 = vadd.f32 %v660, %v844
        %846 = vmatmul.f32.gmra.mxu0 %v783
        %v847 = vpop.f32.mrf.mxu0
        %v848 = vadd.f32 %v660, %v847
        %849 = vmatmul.f32.gmra.mxu0 %v786
        %v850 = vpop.f32.mrf.mxu0
        %v851 = vadd.f32 %v660, %v850
        %852 = vmatmul.f32.gmra.mxu0 %v789
        %v853 = vpop.f32.mrf.mxu0
        %v854 = vadd.f32 %v660, %v853
        %855 = vmatmul.f32.gmra.mxu0 %v792
        %v856 = vpop.f32.mrf.mxu0
        %v857 = vadd.f32 %v660, %v856
        %858 = vmatmul.f32.gmra.mxu0 %v795
        %v859 = vpop.f32.mrf.mxu0
        %v860 = vadd.f32 %v660, %v859
        %861 = vmatmul.f32.gmra.mxu0 %v798
        %v862 = vpop.f32.mrf.mxu0
        %v863 = vadd.f32 %v660, %v862
        %864 = vmatmul.f32.gmra.mxu0 %v801
        %v865 = vpop.f32.mrf.mxu0
        %v866 = vadd.f32 %v660, %v865
        %867 = vmatmul.f32.gmra.mxu0 %v804
        %v868 = vpop.f32.mrf.mxu0
        %v869 = vadd.f32 %v660, %v868
        %870 = vmatmul.f32.gmra.mxu0 %v807
        %v871 = vpop.f32.mrf.mxu0
        %v872 = vadd.f32 %v660, %v871
        %873 = vmatmul.f32.gmra.mxu0 %v810
        %v874 = vpop.f32.mrf.mxu0
        %v875 = vadd.f32 %v660, %v874
        %876 = vmatmul.f32.gmra.mxu0 %v813
        %v877 = vpop.f32.mrf.mxu0
        %v878 = vadd.f32 %v660, %v877
        %879 = vmatmul.f32.gmra.mxu0 %v816
        %v880 = vpop.f32.mrf.mxu0
        %v881 = vadd.f32 %v660, %v880
        %882 = vmatmul.f32.gmra.mxu0 %v819
        %v883 = vpop.f32.mrf.mxu0
        %v884 = vadd.f32 %v660, %v883
        %885 = vmatmul.f32.gmra.mxu0 %v822
        %v886 = vpop.f32.mrf.mxu0
        %v887 = vadd.f32 %v660, %v886
        %888 = vdwg.mxu0
        %889 = vmax.xlane.f32.xlu0 %v842
        %v890 = vpop.xlane.xlu0 %889
        %891 = vmax.xlane.f32.xlu0 %v845
        %v892 = vpop.xlane.xlu0 %891
        %893 = vmax.xlane.f32.xlu0 %v848
        %v894 = vpop.xlane.xlu0 %893
        %895 = vmax.xlane.f32.xlu0 %v851
        %v896 = vpop.xlane.xlu0 %895
        %897 = vmax.xlane.f32.xlu0 %v854
        %v898 = vpop.xlane.xlu0 %897
        %899 = vmax.xlane.f32.xlu0 %v857
        %v900 = vpop.xlane.xlu0 %899
        %901 = vmax.xlane.f32.xlu0 %v860
        %v902 = vpop.xlane.xlu0 %901
        %903 = vmax.xlane.f32.xlu0 %v863
        %v904 = vpop.xlane.xlu0 %903
        %905 = vmax.xlane.f32.xlu0 %v866
        %v906 = vpop.xlane.xlu0 %905
        %907 = vmax.xlane.f32.xlu0 %v869
        %v908 = vpop.xlane.xlu0 %907
        %909 = vmax.xlane.f32.xlu0 %v872
        %v910 = vpop.xlane.xlu0 %909
        %911 = vmax.xlane.f32.xlu0 %v875
        %v912 = vpop.xlane.xlu0 %911
        %913 = vmax.xlane.f32.xlu0 %v878
        %v914 = vpop.xlane.xlu0 %913
        %915 = vmax.xlane.f32.xlu0 %v881
        %v916 = vpop.xlane.xlu0 %915
        %917 = vmax.xlane.f32.xlu0 %v884
        %v918 = vpop.xlane.xlu0 %917
        %919 = vmax.xlane.f32.xlu0 %v887
        %v920 = vpop.xlane.xlu0 %919
        %v921 = vsub.f32 %v842, %v890
        %v922 = vsub.f32 %v845, %v892
        %v923 = vsub.f32 %v848, %v894
        %v924 = vsub.f32 %v851, %v896
        %v925 = vsub.f32 %v854, %v898
        %v926 = vsub.f32 %v857, %v900
        %v927 = vsub.f32 %v860, %v902
        %v928 = vsub.f32 %v863, %v904
        %v929 = vsub.f32 %v866, %v906
        %v930 = vsub.f32 %v869, %v908
        %v931 = vsub.f32 %v872, %v910
        %v932 = vsub.f32 %v875, %v912
        %v933 = vsub.f32 %v878, %v914
        %v934 = vsub.f32 %v881, %v916
        %v935 = vsub.f32 %v884, %v918
        %v936 = vsub.f32 %v887, %v920
        %v937 = vmul.f32 %v921, 1.442695
        %v938 = vpow.pop %v937
        %v939 = vmul.f32 %v922, 1.442695
        %v940 = vpow.pop %v939
        %v941 = vmul.f32 %v923, 1.442695
        %v942 = vpow.pop %v941
        %v943 = vmul.f32 %v924, 1.442695
        %v944 = vpow.pop %v943
        %v945 = vmul.f32 %v925, 1.442695
        %v946 = vpow.pop %v945
        %v947 = vmul.f32 %v926, 1.442695
        %v948 = vpow.pop %v947
        %v949 = vmul.f32 %v927, 1.442695
        %v950 = vpow.pop %v949
        %v951 = vmul.f32 %v928, 1.442695
        %v952 = vpow.pop %v951
        %v953 = vmul.f32 %v929, 1.442695
        %v954 = vpow.pop %v953
        %v955 = vmul.f32 %v930, 1.442695
        %v956 = vpow.pop %v955
        %v957 = vmul.f32 %v931, 1.442695
        %v958 = vpow.pop %v957
        %v959 = vmul.f32 %v932, 1.442695
        %v960 = vpow.pop %v959
        %v961 = vmul.f32 %v933, 1.442695
        %v962 = vpow.pop %v961
        %v963 = vmul.f32 %v934, 1.442695
        %v964 = vpow.pop %v963
        %v965 = vmul.f32 %v935, 1.442695
        %v966 = vpow.pop %v965
        %v967 = vmul.f32 %v936, 1.442695
        %v968 = vpow.pop %v967
        %969 = vadd.xlane.f32.xlu0 %v938
        %v970 = vpop.xlane.xlu0 %969
        %971 = vadd.xlane.f32.xlu0 %v940
        %v972 = vpop.xlane.xlu0 %971
        %973 = vadd.xlane.f32.xlu0 %v942
        %v974 = vpop.xlane.xlu0 %973
        %975 = vadd.xlane.f32.xlu0 %v944
        %v976 = vpop.xlane.xlu0 %975
        %977 = vadd.xlane.f32.xlu0 %v946
        %v978 = vpop.xlane.xlu0 %977
        %979 = vadd.xlane.f32.xlu0 %v948
        %v980 = vpop.xlane.xlu0 %979
        %981 = vadd.xlane.f32.xlu0 %v950
        %v982 = vpop.xlane.xlu0 %981
        %983 = vadd.xlane.f32.xlu0 %v952
        %v984 = vpop.xlane.xlu0 %983
        %985 = vadd.xlane.f32.xlu0 %v954
        %v986 = vpop.xlane.xlu0 %985
        %987 = vadd.xlane.f32.xlu0 %v956
        %v988 = vpop.xlane.xlu0 %987
        %989 = vadd.xlane.f32.xlu0 %v958
        %v990 = vpop.xlane.xlu0 %989
        %991 = vadd.xlane.f32.xlu0 %v960
        %v992 = vpop.xlane.xlu0 %991
        %993 = vadd.xlane.f32.xlu0 %v962
        %v994 = vpop.xlane.xlu0 %993
        %995 = vadd.xlane.f32.xlu0 %v964
        %v996 = vpop.xlane.xlu0 %995
        %997 = vadd.xlane.f32.xlu0 %v966
        %v998 = vpop.xlane.xlu0 %997
        %999 = vadd.xlane.f32.xlu0 %v968
        %v1000 = vpop.xlane.xlu0 %999
        %v1001 = vrcp.pop %v970
        %v1002 = vmul.f32 %v970, %v1001
        %v1003 = vsub.f32 1.0, %v1002
        %v1004 = vmul.f32 %v1001, %v1003
        %v1005 = vadd.f32 %v1001, %v1004
        %vm1006 = vweird.f32 %v970
        %vm1007 = vweird.f32 %v1001
        %vm1008 = vmor %vm1006, %vm1007
        %v1009 = vsel %vm1008, %v1001, %v1005
        %v1010 = vand.u32 2147483647, %v970
        %vm1011 = vcmp.eq.f32.partialorder %v1010, 8.507059e+37
        %v1012 = vand.u32 %v970, 2147483648
        %v1013 = vor.u32 1.1754944e-38, %v1012
        %v1014 = vsel %vm1011, %v1013, %v1009
        %v1015 = vmul.f32 1.0, %v1014
        %v1016 = vrcp.pop %v972
        %v1017 = vmul.f32 %v972, %v1016
        %v1018 = vsub.f32 1.0, %v1017
        %v1019 = vmul.f32 %v1016, %v1018
        %v1020 = vadd.f32 %v1016, %v1019
        %vm1021 = vweird.f32 %v972
        %vm1022 = vweird.f32 %v1016
        %vm1023 = vmor %vm1021, %vm1022
        %v1024 = vsel %vm1023, %v1016, %v1020
        %v1025 = vand.u32 2147483647, %v972
        %vm1026 = vcmp.eq.f32.partialorder %v1025, 8.507059e+37
        %v1027 = vand.u32 %v972, 2147483648
        %v1028 = vor.u32 1.1754944e-38, %v1027
        %v1029 = vsel %vm1026, %v1028, %v1024
        %v1030 = vmul.f32 1.0, %v1029
        %v1031 = vrcp.pop %v974
        %v1032 = vmul.f32 %v974, %v1031
        %v1033 = vsub.f32 1.0, %v1032
        %v1034 = vmul.f32 %v1031, %v1033
        %v1035 = vadd.f32 %v1031, %v1034
        %vm1036 = vweird.f32 %v974
        %vm1037 = vweird.f32 %v1031
        %vm1038 = vmor %vm1036, %vm1037
        %v1039 = vsel %vm1038, %v1031, %v1035
        %v1040 = vand.u32 2147483647, %v974
        %vm1041 = vcmp.eq.f32.partialorder %v1040, 8.507059e+37
        %v1042 = vand.u32 %v974, 2147483648
        %v1043 = vor.u32 1.1754944e-38, %v1042
        %v1044 = vsel %vm1041, %v1043, %v1039
        %v1045 = vmul.f32 1.0, %v1044
        %v1046 = vrcp.pop %v976
        %v1047 = vmul.f32 %v976, %v1046
        %v1048 = vsub.f32 1.0, %v1047
        %v1049 = vmul.f32 %v1046, %v1048
        %v1050 = vadd.f32 %v1046, %v1049
        %vm1051 = vweird.f32 %v976
        %vm1052 = vweird.f32 %v1046
        %vm1053 = vmor %vm1051, %vm1052
        %v1054 = vsel %vm1053, %v1046, %v1050
        %v1055 = vand.u32 2147483647, %v976
        %vm1056 = vcmp.eq.f32.partialorder %v1055, 8.507059e+37
        %v1057 = vand.u32 %v976, 2147483648
        %v1058 = vor.u32 1.1754944e-38, %v1057
        %v1059 = vsel %vm1056, %v1058, %v1054
        %v1060 = vmul.f32 1.0, %v1059
        %v1061 = vrcp.pop %v978
        %v1062 = vmul.f32 %v978, %v1061
        %v1063 = vsub.f32 1.0, %v1062
        %v1064 = vmul.f32 %v1061, %v1063
        %v1065 = vadd.f32 %v1061, %v1064
        %vm1066 = vweird.f32 %v978
        %vm1067 = vweird.f32 %v1061
        %vm1068 = vmor %vm1066, %vm1067
        %v1069 = vsel %vm1068, %v1061, %v1065
        %v1070 = vand.u32 2147483647, %v978
        %vm1071 = vcmp.eq.f32.partialorder %v1070, 8.507059e+37
        %v1072 = vand.u32 %v978, 2147483648
        %v1073 = vor.u32 1.1754944e-38, %v1072
        %v1074 = vsel %vm1071, %v1073, %v1069
        %v1075 = vmul.f32 1.0, %v1074
        %v1076 = vrcp.pop %v980
        %v1077 = vmul.f32 %v980, %v1076
        %v1078 = vsub.f32 1.0, %v1077
        %v1079 = vmul.f32 %v1076, %v1078
        %v1080 = vadd.f32 %v1076, %v1079
        %vm1081 = vweird.f32 %v980
        %vm1082 = vweird.f32 %v1076
        %vm1083 = vmor %vm1081, %vm1082
        %v1084 = vsel %vm1083, %v1076, %v1080
        %v1085 = vand.u32 2147483647, %v980
        %vm1086 = vcmp.eq.f32.partialorder %v1085, 8.507059e+37
        %v1087 = vand.u32 %v980, 2147483648
        %v1088 = vor.u32 1.1754944e-38, %v1087
        %v1089 = vsel %vm1086, %v1088, %v1084
        %v1090 = vmul.f32 1.0, %v1089
        %v1091 = vrcp.pop %v982
        %v1092 = vmul.f32 %v982, %v1091
        %v1093 = vsub.f32 1.0, %v1092
        %v1094 = vmul.f32 %v1091, %v1093
        %v1095 = vadd.f32 %v1091, %v1094
        %vm1096 = vweird.f32 %v982
        %vm1097 = vweird.f32 %v1091
        %vm1098 = vmor %vm1096, %vm1097
        %v1099 = vsel %vm1098, %v1091, %v1095
        %v1100 = vand.u32 2147483647, %v982
        %vm1101 = vcmp.eq.f32.partialorder %v1100, 8.507059e+37
        %v1102 = vand.u32 %v982, 2147483648
        %v1103 = vor.u32 1.1754944e-38, %v1102
        %v1104 = vsel %vm1101, %v1103, %v1099
        %v1105 = vmul.f32 1.0, %v1104
        %v1106 = vrcp.pop %v984
        %v1107 = vmul.f32 %v984, %v1106
        %v1108 = vsub.f32 1.0, %v1107
        %v1109 = vmul.f32 %v1106, %v1108
        %v1110 = vadd.f32 %v1106, %v1109
        %vm1111 = vweird.f32 %v984
        %vm1112 = vweird.f32 %v1106
        %vm1113 = vmor %vm1111, %vm1112
        %v1114 = vsel %vm1113, %v1106, %v1110
        %v1115 = vand.u32 2147483647, %v984
        %vm1116 = vcmp.eq.f32.partialorder %v1115, 8.507059e+37
        %v1117 = vand.u32 %v984, 2147483648
        %v1118 = vor.u32 1.1754944e-38, %v1117
        %v1119 = vsel %vm1116, %v1118, %v1114
        %v1120 = vmul.f32 1.0, %v1119
        %v1121 = vrcp.pop %v986
        %v1122 = vmul.f32 %v986, %v1121
        %v1123 = vsub.f32 1.0, %v1122
        %v1124 = vmul.f32 %v1121, %v1123
        %v1125 = vadd.f32 %v1121, %v1124
        %vm1126 = vweird.f32 %v986
        %vm1127 = vweird.f32 %v1121
        %vm1128 = vmor %vm1126, %vm1127
        %v1129 = vsel %vm1128, %v1121, %v1125
        %v1130 = vand.u32 2147483647, %v986
        %vm1131 = vcmp.eq.f32.partialorder %v1130, 8.507059e+37
        %v1132 = vand.u32 %v986, 2147483648
        %v1133 = vor.u32 1.1754944e-38, %v1132
        %v1134 = vsel %vm1131, %v1133, %v1129
        %v1135 = vmul.f32 1.0, %v1134
        %v1136 = vrcp.pop %v988
        %v1137 = vmul.f32 %v988, %v1136
        %v1138 = vsub.f32 1.0, %v1137
        %v1139 = vmul.f32 %v1136, %v1138
        %v1140 = vadd.f32 %v1136, %v1139
        %vm1141 = vweird.f32 %v988
        %vm1142 = vweird.f32 %v1136
        %vm1143 = vmor %vm1141, %vm1142
        %v1144 = vsel %vm1143, %v1136, %v1140
        %v1145 = vand.u32 2147483647, %v988
        %vm1146 = vcmp.eq.f32.partialorder %v1145, 8.507059e+37
        %v1147 = vand.u32 %v988, 2147483648
        %v1148 = vor.u32 1.1754944e-38, %v1147
        %v1149 = vsel %vm1146, %v1148, %v1144
        %v1150 = vmul.f32 1.0, %v1149
        %v1151 = vrcp.pop %v990
        %v1152 = vmul.f32 %v990, %v1151
        %v1153 = vsub.f32 1.0, %v1152
        %v1154 = vmul.f32 %v1151, %v1153
        %v1155 = vadd.f32 %v1151, %v1154
        %vm1156 = vweird.f32 %v990
        %vm1157 = vweird.f32 %v1151
        %vm1158 = vmor %vm1156, %vm1157
        %v1159 = vsel %vm1158, %v1151, %v1155
        %v1160 = vand.u32 2147483647, %v990
        %vm1161 = vcmp.eq.f32.partialorder %v1160, 8.507059e+37
        %v1162 = vand.u32 %v990, 2147483648
        %v1163 = vor.u32 1.1754944e-38, %v1162
        %v1164 = vsel %vm1161, %v1163, %v1159
        %v1165 = vmul.f32 1.0, %v1164
        %v1166 = vrcp.pop %v992
        %v1167 = vmul.f32 %v992, %v1166
        %v1168 = vsub.f32 1.0, %v1167
        %v1169 = vmul.f32 %v1166, %v1168
        %v1170 = vadd.f32 %v1166, %v1169
        %vm1171 = vweird.f32 %v992
        %vm1172 = vweird.f32 %v1166
        %vm1173 = vmor %vm1171, %vm1172
        %v1174 = vsel %vm1173, %v1166, %v1170
        %v1175 = vand.u32 2147483647, %v992
        %vm1176 = vcmp.eq.f32.partialorder %v1175, 8.507059e+37
        %v1177 = vand.u32 %v992, 2147483648
        %v1178 = vor.u32 1.1754944e-38, %v1177
        %v1179 = vsel %vm1176, %v1178, %v1174
        %v1180 = vmul.f32 1.0, %v1179
        %v1181 = vrcp.pop %v994
        %v1182 = vmul.f32 %v994, %v1181
        %v1183 = vsub.f32 1.0, %v1182
        %v1184 = vmul.f32 %v1181, %v1183
        %v1185 = vadd.f32 %v1181, %v1184
        %vm1186 = vweird.f32 %v994
        %vm1187 = vweird.f32 %v1181
        %vm1188 = vmor %vm1186, %vm1187
        %v1189 = vsel %vm1188, %v1181, %v1185
        %v1190 = vand.u32 2147483647, %v994
        %vm1191 = vcmp.eq.f32.partialorder %v1190, 8.507059e+37
        %v1192 = vand.u32 %v994, 2147483648
        %v1193 = vor.u32 1.1754944e-38, %v1192
        %v1194 = vsel %vm1191, %v1193, %v1189
        %v1195 = vmul.f32 1.0, %v1194
        %v1196 = vrcp.pop %v996
        %v1197 = vmul.f32 %v996, %v1196
        %v1198 = vsub.f32 1.0, %v1197
        %v1199 = vmul.f32 %v1196, %v1198
        %v1200 = vadd.f32 %v1196, %v1199
        %vm1201 = vweird.f32 %v996
        %vm1202 = vweird.f32 %v1196
        %vm1203 = vmor %vm1201, %vm1202
        %v1204 = vsel %vm1203, %v1196, %v1200
        %v1205 = vand.u32 2147483647, %v996
        %vm1206 = vcmp.eq.f32.partialorder %v1205, 8.507059e+37
        %v1207 = vand.u32 %v996, 2147483648
        %v1208 = vor.u32 1.1754944e-38, %v1207
        %v1209 = vsel %vm1206, %v1208, %v1204
        %v1210 = vmul.f32 1.0, %v1209
        %v1211 = vrcp.pop %v998
        %v1212 = vmul.f32 %v998, %v1211
        %v1213 = vsub.f32 1.0, %v1212
        %v1214 = vmul.f32 %v1211, %v1213
        %v1215 = vadd.f32 %v1211, %v1214
        %vm1216 = vweird.f32 %v998
        %vm1217 = vweird.f32 %v1211
        %vm1218 = vmor %vm1216, %vm1217
        %v1219 = vsel %vm1218, %v1211, %v1215
        %v1220 = vand.u32 2147483647, %v998
        %vm1221 = vcmp.eq.f32.partialorder %v1220, 8.507059e+37
        %v1222 = vand.u32 %v998, 2147483648
        %v1223 = vor.u32 1.1754944e-38, %v1222
        %v1224 = vsel %vm1221, %v1223, %v1219
        %v1225 = vmul.f32 1.0, %v1224
        %v1226 = vrcp.pop %v1000
        %v1227 = vmul.f32 %v1000, %v1226
        %v1228 = vsub.f32 1.0, %v1227
        %v1229 = vmul.f32 %v1226, %v1228
        %v1230 = vadd.f32 %v1226, %v1229
        %vm1231 = vweird.f32 %v1000
        %vm1232 = vweird.f32 %v1226
        %vm1233 = vmor %vm1231, %vm1232
        %v1234 = vsel %vm1233, %v1226, %v1230
        %v1235 = vand.u32 2147483647, %v1000
        %vm1236 = vcmp.eq.f32.partialorder %v1235, 8.507059e+37
        %v1237 = vand.u32 %v1000, 2147483648
        %v1238 = vor.u32 1.1754944e-38, %v1237
        %v1239 = vsel %vm1236, %v1238, %v1234
        %v1240 = vmul.f32 1.0, %v1239
        %v1241 = vmul.f32 %v938, %v1015
        %v1242 = vmul.f32 %v940, %v1030
        %v1243 = vmul.f32 %v942, %v1045
        %v1244 = vmul.f32 %v944, %v1060
        %v1245 = vmul.f32 %v946, %v1075
        %v1246 = vmul.f32 %v948, %v1090
        %v1247 = vmul.f32 %v950, %v1105
        %v1248 = vmul.f32 %v952, %v1120
        %v1249 = vmul.f32 %v954, %v1135
        %v1250 = vmul.f32 %v956, %v1150
        %v1251 = vmul.f32 %v958, %v1165
        %v1252 = vmul.f32 %v960, %v1180
        %v1253 = vmul.f32 %v962, %v1195
        %v1254 = vmul.f32 %v964, %v1210
        %v1255 = vmul.f32 %v966, %v1225
        %v1256 = vmul.f32 %v968, %v1240
        %1257 = vmatpush.xpose.msra.mxu0 %v1256
        %1258 = vmatpush.xpose.msra.mxu0 %v1255
        %1259 = vmatpush.xpose.msra.mxu0 %v1254
        %1260 = vmatpush.xpose.msra.mxu0 %v1253
        %1261 = vmatpush.xpose.msra.mxu0 %v1252
        %1262 = vmatpush.xpose.msra.mxu0 %v1251
        %1263 = vmatpush.xpose.msra.mxu0 %v1250
        %1264 = vmatpush.xpose.msra.mxu0 %v1249
        %1265 = vmatpush.xpose.msra.mxu0 %v1248
        %1266 = vmatpush.xpose.msra.mxu0 %v1247
        %1267 = vmatpush.xpose.msra.mxu0 %v1246
        %1268 = vmatpush.xpose.msra.mxu0 %v1245
        %1269 = vmatpush.xpose.msra.mxu0 %v1244
        %1270 = vmatpush.xpose.msra.mxu0 %v1243
        %1271 = vmatpush.xpose.msra.mxu0 %v1242
        %1272 = vmatpush.xpose.msra.mxu0 %v1241
        %1273 = vmatmul.f32.gmra.mxu0 %v646
        %v1274 = vpop.f32.mrf.mxu0
        %v1275 = vadd.f32 0.0, %v1274
        %1276 = vdwg.mxu0
        %1277 = vxpose.xlu0.b32.start [1/16] %v735, 128
        %1278 = vxpose.xlu0.b32.cont [2/16] 0.0, 128
        %1279 = vxpose.xlu0.b32.cont [3/16] 0.0, 128
        %1280 = vxpose.xlu0.b32.cont [4/16] 0.0, 128
        %1281 = vxpose.xlu0.b32.cont [5/16] 0.0, 128
        %1282 = vxpose.xlu0.b32.cont [6/16] 0.0, 128
        %1283 = vxpose.xlu0.b32.cont [7/16] 0.0, 128
        %1284 = vxpose.xlu0.b32.cont [8/16] 0.0, 128
        %1285 = vxpose.xlu0.b32.cont [9/16] 0.0, 128
        %1286 = vxpose.xlu0.b32.cont [10/16] 0.0, 128
        %1287 = vxpose.xlu0.b32.cont [11/16] 0.0, 128
        %1288 = vxpose.xlu0.b32.cont [12/16] 0.0, 128
        %1289 = vxpose.xlu0.b32.cont [13/16] 0.0, 128
        %1290 = vxpose.xlu0.b32.cont [14/16] 0.0, 128
        %1291 = vxpose.xlu0.b32.cont [15/16] 0.0, 128
        %1292 = vxpose.xlu0.b32.end [16/16] 0.0, 128
        %v1293 = vpop.trf.xlu0
        %v1294 = vpop.trf.xlu0
        %v1295 = vpop.trf.xlu0
        %v1296 = vpop.trf.xlu0
        %v1297 = vpop.trf.xlu0
        %v1298 = vpop.trf.xlu0
        %v1299 = vpop.trf.xlu0
        %v1300 = vpop.trf.xlu0
        %v1301 = vpop.trf.xlu0
        %v1302 = vpop.trf.xlu0
        %v1303 = vpop.trf.xlu0
        %v1304 = vpop.trf.xlu0
        %v1305 = vpop.trf.xlu0
        %v1306 = vpop.trf.xlu0
        %v1307 = vpop.trf.xlu0
        %v1308 = vpop.trf.xlu0
        %v1310 = vsel %vm775, %v1293, 0
        %v1313 = vsel %vm775, %v1294, 0
        %v1316 = vsel %vm775, %v1295, 0
        %v1319 = vsel %vm775, %v1296, 0
        %v1322 = vsel %vm775, %v1297, 0
        %v1325 = vsel %vm775, %v1298, 0
        %v1328 = vsel %vm775, %v1299, 0
        %v1331 = vsel %vm775, %v1300, 0
        %v1334 = vsel %vm775, %v1301, 0
        %v1337 = vsel %vm775, %v1302, 0
        %v1340 = vsel %vm775, %v1303, 0
        %v1343 = vsel %vm775, %v1304, 0
        %v1346 = vsel %vm775, %v1305, 0
        %v1349 = vsel %vm775, %v1306, 0
        %v1352 = vsel %vm775, %v1307, 0
        %v1355 = vsel %vm775, %v1308, 0
        %1357 = vmatpush.msra.mxu0 0.0
        %1358 = vmatpush.msra.mxu0 0.0
        %1359 = vmatpush.msra.mxu0 0.0
        %1360 = vmatpush.msra.mxu0 0.0
        %1361 = vmatpush.msra.mxu0 0.0
        %1362 = vmatpush.msra.mxu0 0.0
        %1363 = vmatpush.msra.mxu0 0.0
        %1364 = vmatpush.msra.mxu0 0.0
        %1365 = vmatpush.msra.mxu0 0.0
        %1366 = vmatpush.msra.mxu0 0.0
        %1367 = vmatpush.msra.mxu0 0.0
        %1368 = vmatpush.msra.mxu0 0.0
        %1369 = vmatpush.msra.mxu0 0.0
        %1370 = vmatpush.msra.mxu0 0.0
        %1371 = vmatpush.msra.mxu0 0.0
        %1372 = vmatpush.msra.mxu0 %v580
        %1373 = vmatmul.f32.gmra.mxu0 %v1310
        %v1374 = vpop.f32.mrf.mxu0
        %v1375 = vadd.f32 %v660, %v1374
        %1376 = vmatmul.f32.gmra.mxu0 %v1313
        %v1377 = vpop.f32.mrf.mxu0
        %v1378 = vadd.f32 %v660, %v1377
        %1379 = vmatmul.f32.gmra.mxu0 %v1316
        %v1380 = vpop.f32.mrf.mxu0
        %v1381 = vadd.f32 %v660, %v1380
        %1382 = vmatmul.f32.gmra.mxu0 %v1319
        %v1383 = vpop.f32.mrf.mxu0
        %v1384 = vadd.f32 %v660, %v1383
        %1385 = vmatmul.f32.gmra.mxu0 %v1322
        %v1386 = vpop.f32.mrf.mxu0
        %v1387 = vadd.f32 %v660, %v1386
        %1388 = vmatmul.f32.gmra.mxu0 %v1325
        %v1389 = vpop.f32.mrf.mxu0
        %v1390 = vadd.f32 %v660, %v1389
        %1391 = vmatmul.f32.gmra.mxu0 %v1328
        %v1392 = vpop.f32.mrf.mxu0
        %v1393 = vadd.f32 %v660, %v1392
        %1394 = vmatmul.f32.gmra.mxu0 %v1331
        %v1395 = vpop.f32.mrf.mxu0
        %v1396 = vadd.f32 %v660, %v1395
        %1397 = vmatmul.f32.gmra.mxu0 %v1334
        %v1398 = vpop.f32.mrf.mxu0
        %v1399 = vadd.f32 %v660, %v1398
        %1400 = vmatmul.f32.gmra.mxu0 %v1337
        %v1401 = vpop.f32.mrf.mxu0
        %v1402 = vadd.f32 %v660, %v1401
        %1403 = vmatmul.f32.gmra.mxu0 %v1340
        %v1404 = vpop.f32.mrf.mxu0
        %v1405 = vadd.f32 %v660, %v1404
        %1406 = vmatmul.f32.gmra.mxu0 %v1343
        %v1407 = vpop.f32.mrf.mxu0
        %v1408 = vadd.f32 %v660, %v1407
        %1409 = vmatmul.f32.gmra.mxu0 %v1346
        %v1410 = vpop.f32.mrf.mxu0
        %v1411 = vadd.f32 %v660, %v1410
        %1412 = vmatmul.f32.gmra.mxu0 %v1349
        %v1413 = vpop.f32.mrf.mxu0
        %v1414 = vadd.f32 %v660, %v1413
        %1415 = vmatmul.f32.gmra.mxu0 %v1352
        %v1416 = vpop.f32.mrf.mxu0
        %v1417 = vadd.f32 %v660, %v1416
        %1418 = vmatmul.f32.gmra.mxu0 %v1355
        %v1419 = vpop.f32.mrf.mxu0
        %v1420 = vadd.f32 %v660, %v1419
        %1421 = vdwg.mxu0
        %1422 = vmax.xlane.f32.xlu0 %v1375
        %v1423 = vpop.xlane.xlu0 %1422
        %1424 = vmax.xlane.f32.xlu0 %v1378
        %v1425 = vpop.xlane.xlu0 %1424
        %1426 = vmax.xlane.f32.xlu0 %v1381
        %v1427 = vpop.xlane.xlu0 %1426
        %1428 = vmax.xlane.f32.xlu0 %v1384
        %v1429 = vpop.xlane.xlu0 %1428
        %1430 = vmax.xlane.f32.xlu0 %v1387
        %v1431 = vpop.xlane.xlu0 %1430
        %1432 = vmax.xlane.f32.xlu0 %v1390
        %v1433 = vpop.xlane.xlu0 %1432
        %1434 = vmax.xlane.f32.xlu0 %v1393
        %v1435 = vpop.xlane.xlu0 %1434
        %1436 = vmax.xlane.f32.xlu0 %v1396
        %v1437 = vpop.xlane.xlu0 %1436
        %1438 = vmax.xlane.f32.xlu0 %v1399
        %v1439 = vpop.xlane.xlu0 %1438
        %1440 = vmax.xlane.f32.xlu0 %v1402
        %v1441 = vpop.xlane.xlu0 %1440
        %1442 = vmax.xlane.f32.xlu0 %v1405
        %v1443 = vpop.xlane.xlu0 %1442
        %1444 = vmax.xlane.f32.xlu0 %v1408
        %v1445 = vpop.xlane.xlu0 %1444
        %1446 = vmax.xlane.f32.xlu0 %v1411
        %v1447 = vpop.xlane.xlu0 %1446
        %1448 = vmax.xlane.f32.xlu0 %v1414
        %v1449 = vpop.xlane.xlu0 %1448
        %1450 = vmax.xlane.f32.xlu0 %v1417
        %v1451 = vpop.xlane.xlu0 %1450
        %1452 = vmax.xlane.f32.xlu0 %v1420
        %v1453 = vpop.xlane.xlu0 %1452
        %v1454 = vsub.f32 %v1375, %v1423
        %v1455 = vsub.f32 %v1378, %v1425
        %v1456 = vsub.f32 %v1381, %v1427
        %v1457 = vsub.f32 %v1384, %v1429
        %v1458 = vsub.f32 %v1387, %v1431
        %v1459 = vsub.f32 %v1390, %v1433
        %v1460 = vsub.f32 %v1393, %v1435
        %v1461 = vsub.f32 %v1396, %v1437
        %v1462 = vsub.f32 %v1399, %v1439
        %v1463 = vsub.f32 %v1402, %v1441
        %v1464 = vsub.f32 %v1405, %v1443
        %v1465 = vsub.f32 %v1408, %v1445
        %v1466 = vsub.f32 %v1411, %v1447
        %v1467 = vsub.f32 %v1414, %v1449
        %v1468 = vsub.f32 %v1417, %v1451
        %v1469 = vsub.f32 %v1420, %v1453
        %v1470 = vmul.f32 %v1454, 1.442695
        %v1471 = vpow.pop %v1470
        %v1472 = vmul.f32 %v1455, 1.442695
        %v1473 = vpow.pop %v1472
        %v1474 = vmul.f32 %v1456, 1.442695
        %v1475 = vpow.pop %v1474
        %v1476 = vmul.f32 %v1457, 1.442695
        %v1477 = vpow.pop %v1476
        %v1478 = vmul.f32 %v1458, 1.442695
        %v1479 = vpow.pop %v1478
        %v1480 = vmul.f32 %v1459, 1.442695
        %v1481 = vpow.pop %v1480
        %v1482 = vmul.f32 %v1460, 1.442695
        %v1483 = vpow.pop %v1482
        %v1484 = vmul.f32 %v1461, 1.442695
        %v1485 = vpow.pop %v1484
        %v1486 = vmul.f32 %v1462, 1.442695
        %v1487 = vpow.pop %v1486
        %v1488 = vmul.f32 %v1463, 1.442695
        %v1489 = vpow.pop %v1488
        %v1490 = vmul.f32 %v1464, 1.442695
        %v1491 = vpow.pop %v1490
        %v1492 = vmul.f32 %v1465, 1.442695
        %v1493 = vpow.pop %v1492
        %v1494 = vmul.f32 %v1466, 1.442695
        %v1495 = vpow.pop %v1494
        %v1496 = vmul.f32 %v1467, 1.442695
        %v1497 = vpow.pop %v1496
        %v1498 = vmul.f32 %v1468, 1.442695
        %v1499 = vpow.pop %v1498
        %v1500 = vmul.f32 %v1469, 1.442695
        %v1501 = vpow.pop %v1500
        %1502 = vadd.xlane.f32.xlu0 %v1471
        %v1503 = vpop.xlane.xlu0 %1502
        %1504 = vadd.xlane.f32.xlu0 %v1473
        %v1505 = vpop.xlane.xlu0 %1504
        %1506 = vadd.xlane.f32.xlu0 %v1475
        %v1507 = vpop.xlane.xlu0 %1506
        %1508 = vadd.xlane.f32.xlu0 %v1477
        %v1509 = vpop.xlane.xlu0 %1508
        %1510 = vadd.xlane.f32.xlu0 %v1479
        %v1511 = vpop.xlane.xlu0 %1510
        %1512 = vadd.xlane.f32.xlu0 %v1481
        %v1513 = vpop.xlane.xlu0 %1512
        %1514 = vadd.xlane.f32.xlu0 %v1483
        %v1515 = vpop.xlane.xlu0 %1514
        %1516 = vadd.xlane.f32.xlu0 %v1485
        %v1517 = vpop.xlane.xlu0 %1516
        %1518 = vadd.xlane.f32.xlu0 %v1487
        %v1519 = vpop.xlane.xlu0 %1518
        %1520 = vadd.xlane.f32.xlu0 %v1489
        %v1521 = vpop.xlane.xlu0 %1520
        %1522 = vadd.xlane.f32.xlu0 %v1491
        %v1523 = vpop.xlane.xlu0 %1522
        %1524 = vadd.xlane.f32.xlu0 %v1493
        %v1525 = vpop.xlane.xlu0 %1524
        %1526 = vadd.xlane.f32.xlu0 %v1495
        %v1527 = vpop.xlane.xlu0 %1526
        %1528 = vadd.xlane.f32.xlu0 %v1497
        %v1529 = vpop.xlane.xlu0 %1528
        %1530 = vadd.xlane.f32.xlu0 %v1499
        %v1531 = vpop.xlane.xlu0 %1530
        %1532 = vadd.xlane.f32.xlu0 %v1501
        %v1533 = vpop.xlane.xlu0 %1532
        %v1534 = vrcp.pop %v1503
        %v1535 = vmul.f32 %v1503, %v1534
        %v1536 = vsub.f32 1.0, %v1535
        %v1537 = vmul.f32 %v1534, %v1536
        %v1538 = vadd.f32 %v1534, %v1537
        %vm1539 = vweird.f32 %v1503
        %vm1540 = vweird.f32 %v1534
        %vm1541 = vmor %vm1539, %vm1540
        %v1542 = vsel %vm1541, %v1534, %v1538
        %v1543 = vand.u32 2147483647, %v1503
        %vm1544 = vcmp.eq.f32.partialorder %v1543, 8.507059e+37
        %v1545 = vand.u32 %v1503, 2147483648
        %v1546 = vor.u32 1.1754944e-38, %v1545
        %v1547 = vsel %vm1544, %v1546, %v1542
        %v1548 = vmul.f32 1.0, %v1547
        %v1549 = vrcp.pop %v1505
        %v1550 = vmul.f32 %v1505, %v1549
        %v1551 = vsub.f32 1.0, %v1550
        %v1552 = vmul.f32 %v1549, %v1551
        %v1553 = vadd.f32 %v1549, %v1552
        %vm1554 = vweird.f32 %v1505
        %vm1555 = vweird.f32 %v1549
        %vm1556 = vmor %vm1554, %vm1555
        %v1557 = vsel %vm1556, %v1549, %v1553
        %v1558 = vand.u32 2147483647, %v1505
        %vm1559 = vcmp.eq.f32.partialorder %v1558, 8.507059e+37
        %v1560 = vand.u32 %v1505, 2147483648
        %v1561 = vor.u32 1.1754944e-38, %v1560
        %v1562 = vsel %vm1559, %v1561, %v1557
        %v1563 = vmul.f32 1.0, %v1562
        %v1564 = vrcp.pop %v1507
        %v1565 = vmul.f32 %v1507, %v1564
        %v1566 = vsub.f32 1.0, %v1565
        %v1567 = vmul.f32 %v1564, %v1566
        %v1568 = vadd.f32 %v1564, %v1567
        %vm1569 = vweird.f32 %v1507
        %vm1570 = vweird.f32 %v1564
        %vm1571 = vmor %vm1569, %vm1570
        %v1572 = vsel %vm1571, %v1564, %v1568
        %v1573 = vand.u32 2147483647, %v1507
        %vm1574 = vcmp.eq.f32.partialorder %v1573, 8.507059e+37
        %v1575 = vand.u32 %v1507, 2147483648
        %v1576 = vor.u32 1.1754944e-38, %v1575
        %v1577 = vsel %vm1574, %v1576, %v1572
        %v1578 = vmul.f32 1.0, %v1577
        %v1579 = vrcp.pop %v1509
        %v1580 = vmul.f32 %v1509, %v1579
        %v1581 = vsub.f32 1.0, %v1580
        %v1582 = vmul.f32 %v1579, %v1581
        %v1583 = vadd.f32 %v1579, %v1582
        %vm1584 = vweird.f32 %v1509
        %vm1585 = vweird.f32 %v1579
        %vm1586 = vmor %vm1584, %vm1585
        %v1587 = vsel %vm1586, %v1579, %v1583
        %v1588 = vand.u32 2147483647, %v1509
        %vm1589 = vcmp.eq.f32.partialorder %v1588, 8.507059e+37
        %v1590 = vand.u32 %v1509, 2147483648
        %v1591 = vor.u32 1.1754944e-38, %v1590
        %v1592 = vsel %vm1589, %v1591, %v1587
        %v1593 = vmul.f32 1.0, %v1592
        %v1594 = vrcp.pop %v1511
        %v1595 = vmul.f32 %v1511, %v1594
        %v1596 = vsub.f32 1.0, %v1595
        %v1597 = vmul.f32 %v1594, %v1596
        %v1598 = vadd.f32 %v1594, %v1597
        %vm1599 = vweird.f32 %v1511
        %vm1600 = vweird.f32 %v1594
        %vm1601 = vmor %vm1599, %vm1600
        %v1602 = vsel %vm1601, %v1594, %v1598
        %v1603 = vand.u32 2147483647, %v1511
        %vm1604 = vcmp.eq.f32.partialorder %v1603, 8.507059e+37
        %v1605 = vand.u32 %v1511, 2147483648
        %v1606 = vor.u32 1.1754944e-38, %v1605
        %v1607 = vsel %vm1604, %v1606, %v1602
        %v1608 = vmul.f32 1.0, %v1607
        %v1609 = vrcp.pop %v1513
        %v1610 = vmul.f32 %v1513, %v1609
        %v1611 = vsub.f32 1.0, %v1610
        %v1612 = vmul.f32 %v1609, %v1611
        %v1613 = vadd.f32 %v1609, %v1612
        %vm1614 = vweird.f32 %v1513
        %vm1615 = vweird.f32 %v1609
        %vm1616 = vmor %vm1614, %vm1615
        %v1617 = vsel %vm1616, %v1609, %v1613
        %v1618 = vand.u32 2147483647, %v1513
        %vm1619 = vcmp.eq.f32.partialorder %v1618, 8.507059e+37
        %v1620 = vand.u32 %v1513, 2147483648
        %v1621 = vor.u32 1.1754944e-38, %v1620
        %v1622 = vsel %vm1619, %v1621, %v1617
        %v1623 = vmul.f32 1.0, %v1622
        %v1624 = vrcp.pop %v1515
        %v1625 = vmul.f32 %v1515, %v1624
        %v1626 = vsub.f32 1.0, %v1625
        %v1627 = vmul.f32 %v1624, %v1626
        %v1628 = vadd.f32 %v1624, %v1627
        %vm1629 = vweird.f32 %v1515
        %vm1630 = vweird.f32 %v1624
        %vm1631 = vmor %vm1629, %vm1630
        %v1632 = vsel %vm1631, %v1624, %v1628
        %v1633 = vand.u32 2147483647, %v1515
        %vm1634 = vcmp.eq.f32.partialorder %v1633, 8.507059e+37
        %v1635 = vand.u32 %v1515, 2147483648
        %v1636 = vor.u32 1.1754944e-38, %v1635
        %v1637 = vsel %vm1634, %v1636, %v1632
        %v1638 = vmul.f32 1.0, %v1637
        %v1639 = vrcp.pop %v1517
        %v1640 = vmul.f32 %v1517, %v1639
        %v1641 = vsub.f32 1.0, %v1640
        %v1642 = vmul.f32 %v1639, %v1641
        %v1643 = vadd.f32 %v1639, %v1642
        %vm1644 = vweird.f32 %v1517
        %vm1645 = vweird.f32 %v1639
        %vm1646 = vmor %vm1644, %vm1645
        %v1647 = vsel %vm1646, %v1639, %v1643
        %v1648 = vand.u32 2147483647, %v1517
        %vm1649 = vcmp.eq.f32.partialorder %v1648, 8.507059e+37
        %v1650 = vand.u32 %v1517, 2147483648
        %v1651 = vor.u32 1.1754944e-38, %v1650
        %v1652 = vsel %vm1649, %v1651, %v1647
        %v1653 = vmul.f32 1.0, %v1652
        %v1654 = vrcp.pop %v1519
        %v1655 = vmul.f32 %v1519, %v1654
        %v1656 = vsub.f32 1.0, %v1655
        %v1657 = vmul.f32 %v1654, %v1656
        %v1658 = vadd.f32 %v1654, %v1657
        %vm1659 = vweird.f32 %v1519
        %vm1660 = vweird.f32 %v1654
        %vm1661 = vmor %vm1659, %vm1660
        %v1662 = vsel %vm1661, %v1654, %v1658
        %v1663 = vand.u32 2147483647, %v1519
        %vm1664 = vcmp.eq.f32.partialorder %v1663, 8.507059e+37
        %v1665 = vand.u32 %v1519, 2147483648
        %v1666 = vor.u32 1.1754944e-38, %v1665
        %v1667 = vsel %vm1664, %v1666, %v1662
        %v1668 = vmul.f32 1.0, %v1667
        %v1669 = vrcp.pop %v1521
        %v1670 = vmul.f32 %v1521, %v1669
        %v1671 = vsub.f32 1.0, %v1670
        %v1672 = vmul.f32 %v1669, %v1671
        %v1673 = vadd.f32 %v1669, %v1672
        %vm1674 = vweird.f32 %v1521
        %vm1675 = vweird.f32 %v1669
        %vm1676 = vmor %vm1674, %vm1675
        %v1677 = vsel %vm1676, %v1669, %v1673
        %v1678 = vand.u32 2147483647, %v1521
        %vm1679 = vcmp.eq.f32.partialorder %v1678, 8.507059e+37
        %v1680 = vand.u32 %v1521, 2147483648
        %v1681 = vor.u32 1.1754944e-38, %v1680
        %v1682 = vsel %vm1679, %v1681, %v1677
        %v1683 = vmul.f32 1.0, %v1682
        %v1684 = vrcp.pop %v1523
        %v1685 = vmul.f32 %v1523, %v1684
        %v1686 = vsub.f32 1.0, %v1685
        %v1687 = vmul.f32 %v1684, %v1686
        %v1688 = vadd.f32 %v1684, %v1687
        %vm1689 = vweird.f32 %v1523
        %vm1690 = vweird.f32 %v1684
        %vm1691 = vmor %vm1689, %vm1690
        %v1692 = vsel %vm1691, %v1684, %v1688
        %v1693 = vand.u32 2147483647, %v1523
        %vm1694 = vcmp.eq.f32.partialorder %v1693, 8.507059e+37
        %v1695 = vand.u32 %v1523, 2147483648
        %v1696 = vor.u32 1.1754944e-38, %v1695
        %v1697 = vsel %vm1694, %v1696, %v1692
        %v1698 = vmul.f32 1.0, %v1697
        %v1699 = vrcp.pop %v1525
        %v1700 = vmul.f32 %v1525, %v1699
        %v1701 = vsub.f32 1.0, %v1700
        %v1702 = vmul.f32 %v1699, %v1701
        %v1703 = vadd.f32 %v1699, %v1702
        %vm1704 = vweird.f32 %v1525
        %vm1705 = vweird.f32 %v1699
        %vm1706 = vmor %vm1704, %vm1705
        %v1707 = vsel %vm1706, %v1699, %v1703
        %v1708 = vand.u32 2147483647, %v1525
        %vm1709 = vcmp.eq.f32.partialorder %v1708, 8.507059e+37
        %v1710 = vand.u32 %v1525, 2147483648
        %v1711 = vor.u32 1.1754944e-38, %v1710
        %v1712 = vsel %vm1709, %v1711, %v1707
        %v1713 = vmul.f32 1.0, %v1712
        %v1714 = vrcp.pop %v1527
        %v1715 = vmul.f32 %v1527, %v1714
        %v1716 = vsub.f32 1.0, %v1715
        %v1717 = vmul.f32 %v1714, %v1716
        %v1718 = vadd.f32 %v1714, %v1717
        %vm1719 = vweird.f32 %v1527
        %vm1720 = vweird.f32 %v1714
        %vm1721 = vmor %vm1719, %vm1720
        %v1722 = vsel %vm1721, %v1714, %v1718
        %v1723 = vand.u32 2147483647, %v1527
        %vm1724 = vcmp.eq.f32.partialorder %v1723, 8.507059e+37
        %v1725 = vand.u32 %v1527, 2147483648
        %v1726 = vor.u32 1.1754944e-38, %v1725
        %v1727 = vsel %vm1724, %v1726, %v1722
        %v1728 = vmul.f32 1.0, %v1727
        %v1729 = vrcp.pop %v1529
        %v1730 = vmul.f32 %v1529, %v1729
        %v1731 = vsub.f32 1.0, %v1730
        %v1732 = vmul.f32 %v1729, %v1731
        %v1733 = vadd.f32 %v1729, %v1732
        %vm1734 = vweird.f32 %v1529
        %vm1735 = vweird.f32 %v1729
        %vm1736 = vmor %vm1734, %vm1735
        %v1737 = vsel %vm1736, %v1729, %v1733
        %v1738 = vand.u32 2147483647, %v1529
        %vm1739 = vcmp.eq.f32.partialorder %v1738, 8.507059e+37
        %v1740 = vand.u32 %v1529, 2147483648
        %v1741 = vor.u32 1.1754944e-38, %v1740
        %v1742 = vsel %vm1739, %v1741, %v1737
        %v1743 = vmul.f32 1.0, %v1742
        %v1744 = vrcp.pop %v1531
        %v1745 = vmul.f32 %v1531, %v1744
        %v1746 = vsub.f32 1.0, %v1745
        %v1747 = vmul.f32 %v1744, %v1746
        %v1748 = vadd.f32 %v1744, %v1747
        %vm1749 = vweird.f32 %v1531
        %vm1750 = vweird.f32 %v1744
        %vm1751 = vmor %vm1749, %vm1750
        %v1752 = vsel %vm1751, %v1744, %v1748
        %v1753 = vand.u32 2147483647, %v1531
        %vm1754 = vcmp.eq.f32.partialorder %v1753, 8.507059e+37
        %v1755 = vand.u32 %v1531, 2147483648
        %v1756 = vor.u32 1.1754944e-38, %v1755
        %v1757 = vsel %vm1754, %v1756, %v1752
        %v1758 = vmul.f32 1.0, %v1757
        %v1759 = vrcp.pop %v1533
        %v1760 = vmul.f32 %v1533, %v1759
        %v1761 = vsub.f32 1.0, %v1760
        %v1762 = vmul.f32 %v1759, %v1761
        %v1763 = vadd.f32 %v1759, %v1762
        %vm1764 = vweird.f32 %v1533
        %vm1765 = vweird.f32 %v1759
        %vm1766 = vmor %vm1764, %vm1765
        %v1767 = vsel %vm1766, %v1759, %v1763
        %v1768 = vand.u32 2147483647, %v1533
        %vm1769 = vcmp.eq.f32.partialorder %v1768, 8.507059e+37
        %v1770 = vand.u32 %v1533, 2147483648
        %v1771 = vor.u32 1.1754944e-38, %v1770
        %v1772 = vsel %vm1769, %v1771, %v1767
        %v1773 = vmul.f32 1.0, %v1772
        %v1774 = vmul.f32 %v1471, %v1548
        %v1775 = vmul.f32 %v1473, %v1563
        %v1776 = vmul.f32 %v1475, %v1578
        %v1777 = vmul.f32 %v1477, %v1593
        %v1778 = vmul.f32 %v1479, %v1608
        %v1779 = vmul.f32 %v1481, %v1623
        %v1780 = vmul.f32 %v1483, %v1638
        %v1781 = vmul.f32 %v1485, %v1653
        %v1782 = vmul.f32 %v1487, %v1668
        %v1783 = vmul.f32 %v1489, %v1683
        %v1784 = vmul.f32 %v1491, %v1698
        %v1785 = vmul.f32 %v1493, %v1713
        %v1786 = vmul.f32 %v1495, %v1728
        %v1787 = vmul.f32 %v1497, %v1743
        %v1788 = vmul.f32 %v1499, %v1758
        %v1789 = vmul.f32 %v1501, %v1773
        %1790 = vmatpush.xpose.msra.mxu0 %v1789
        %1791 = vmatpush.xpose.msra.mxu0 %v1788
        %1792 = vmatpush.xpose.msra.mxu0 %v1787
        %1793 = vmatpush.xpose.msra.mxu0 %v1786
        %1794 = vmatpush.xpose.msra.mxu0 %v1785
        %1795 = vmatpush.xpose.msra.mxu0 %v1784
        %1796 = vmatpush.xpose.msra.mxu0 %v1783
        %1797 = vmatpush.xpose.msra.mxu0 %v1782
        %1798 = vmatpush.xpose.msra.mxu0 %v1781
        %1799 = vmatpush.xpose.msra.mxu0 %v1780
        %1800 = vmatpush.xpose.msra.mxu0 %v1779
        %1801 = vmatpush.xpose.msra.mxu0 %v1778
        %1802 = vmatpush.xpose.msra.mxu0 %v1777
        %1803 = vmatpush.xpose.msra.mxu0 %v1776
        %1804 = vmatpush.xpose.msra.mxu0 %v1775
        %1805 = vmatpush.xpose.msra.mxu0 %v1774
        %1806 = vmatmul.f32.gmra.mxu0 %v649
        %v1807 = vpop.f32.mrf.mxu0
        %v1808 = vadd.f32 0.0, %v1807
        %1809 = vdwg.mxu0
        %1810 = vxpose.xlu0.b32.start [1/16] %v738, 128
        %1811 = vxpose.xlu0.b32.cont [2/16] 0.0, 128
        %1812 = vxpose.xlu0.b32.cont [3/16] 0.0, 128
        %1813 = vxpose.xlu0.b32.cont [4/16] 0.0, 128
        %1814 = vxpose.xlu0.b32.cont [5/16] 0.0, 128
        %1815 = vxpose.xlu0.b32.cont [6/16] 0.0, 128
        %1816 = vxpose.xlu0.b32.cont [7/16] 0.0, 128
        %1817 = vxpose.xlu0.b32.cont [8/16] 0.0, 128
        %1818 = vxpose.xlu0.b32.cont [9/16] 0.0, 128
        %1819 = vxpose.xlu0.b32.cont [10/16] 0.0, 128
        %1820 = vxpose.xlu0.b32.cont [11/16] 0.0, 128
        %1821 = vxpose.xlu0.b32.cont [12/16] 0.0, 128
        %1822 = vxpose.xlu0.b32.cont [13/16] 0.0, 128
        %1823 = vxpose.xlu0.b32.cont [14/16] 0.0, 128
        %1824 = vxpose.xlu0.b32.cont [15/16] 0.0, 128
        %1825 = vxpose.xlu0.b32.end [16/16] 0.0, 128
        %v1826 = vpop.trf.xlu0
        %v1827 = vpop.trf.xlu0
        %v1828 = vpop.trf.xlu0
        %v1829 = vpop.trf.xlu0
        %v1830 = vpop.trf.xlu0
        %v1831 = vpop.trf.xlu0
        %v1832 = vpop.trf.xlu0
        %v1833 = vpop.trf.xlu0
        %v1834 = vpop.trf.xlu0
        %v1835 = vpop.trf.xlu0
        %v1836 = vpop.trf.xlu0
        %v1837 = vpop.trf.xlu0
        %v1838 = vpop.trf.xlu0
        %v1839 = vpop.trf.xlu0
        %v1840 = vpop.trf.xlu0
        %v1841 = vpop.trf.xlu0
        %v1843 = vsel %vm775, %v1826, 0
        %v1846 = vsel %vm775, %v1827, 0
        %v1849 = vsel %vm775, %v1828, 0
        %v1852 = vsel %vm775, %v1829, 0
        %v1855 = vsel %vm775, %v1830, 0
        %v1858 = vsel %vm775, %v1831, 0
        %v1861 = vsel %vm775, %v1832, 0
        %v1864 = vsel %vm775, %v1833, 0
        %v1867 = vsel %vm775, %v1834, 0
        %v1870 = vsel %vm775, %v1835, 0
        %v1873 = vsel %vm775, %v1836, 0
        %v1876 = vsel %vm775, %v1837, 0
        %v1879 = vsel %vm775, %v1838, 0
        %v1882 = vsel %vm775, %v1839, 0
        %v1885 = vsel %vm775, %v1840, 0
        %v1888 = vsel %vm775, %v1841, 0
        %1890 = vmatpush.msra.mxu0 0.0
        %1891 = vmatpush.msra.mxu0 0.0
        %1892 = vmatpush.msra.mxu0 0.0
        %1893 = vmatpush.msra.mxu0 0.0
        %1894 = vmatpush.msra.mxu0 0.0
        %1895 = vmatpush.msra.mxu0 0.0
        %1896 = vmatpush.msra.mxu0 0.0
        %1897 = vmatpush.msra.mxu0 0.0
        %1898 = vmatpush.msra.mxu0 0.0
        %1899 = vmatpush.msra.mxu0 0.0
        %1900 = vmatpush.msra.mxu0 0.0
        %1901 = vmatpush.msra.mxu0 0.0
        %1902 = vmatpush.msra.mxu0 0.0
        %1903 = vmatpush.msra.mxu0 0.0
        %1904 = vmatpush.msra.mxu0 0.0
        %1905 = vmatpush.msra.mxu0 %v583
        %1906 = vmatmul.f32.gmra.mxu0 %v1843
        %v1907 = vpop.f32.mrf.mxu0
        %v1908 = vadd.f32 %v660, %v1907
        %1909 = vmatmul.f32.gmra.mxu0 %v1846
        %v1910 = vpop.f32.mrf.mxu0
        %v1911 = vadd.f32 %v660, %v1910
        %1912 = vmatmul.f32.gmra.mxu0 %v1849
        %v1913 = vpop.f32.mrf.mxu0
        %v1914 = vadd.f32 %v660, %v1913
        %1915 = vmatmul.f32.gmra.mxu0 %v1852
        %v1916 = vpop.f32.mrf.mxu0
        %v1917 = vadd.f32 %v660, %v1916
        %1918 = vmatmul.f32.gmra.mxu0 %v1855
        %v1919 = vpop.f32.mrf.mxu0
        %v1920 = vadd.f32 %v660, %v1919
        %1921 = vmatmul.f32.gmra.mxu0 %v1858
        %v1922 = vpop.f32.mrf.mxu0
        %v1923 = vadd.f32 %v660, %v1922
        %1924 = vmatmul.f32.gmra.mxu0 %v1861
        %v1925 = vpop.f32.mrf.mxu0
        %v1926 = vadd.f32 %v660, %v1925
        %1927 = vmatmul.f32.gmra.mxu0 %v1864
        %v1928 = vpop.f32.mrf.mxu0
        %v1929 = vadd.f32 %v660, %v1928
        %1930 = vmatmul.f32.gmra.mxu0 %v1867
        %v1931 = vpop.f32.mrf.mxu0
        %v1932 = vadd.f32 %v660, %v1931
        %1933 = vmatmul.f32.gmra.mxu0 %v1870
        %v1934 = vpop.f32.mrf.mxu0
        %v1935 = vadd.f32 %v660, %v1934
        %1936 = vmatmul.f32.gmra.mxu0 %v1873
        %v1937 = vpop.f32.mrf.mxu0
        %v1938 = vadd.f32 %v660, %v1937
        %1939 = vmatmul.f32.gmra.mxu0 %v1876
        %v1940 = vpop.f32.mrf.mxu0
        %v1941 = vadd.f32 %v660, %v1940
        %1942 = vmatmul.f32.gmra.mxu0 %v1879
        %v1943 = vpop.f32.mrf.mxu0
        %v1944 = vadd.f32 %v660, %v1943
        %1945 = vmatmul.f32.gmra.mxu0 %v1882
        %v1946 = vpop.f32.mrf.mxu0
        %v1947 = vadd.f32 %v660, %v1946
        %1948 = vmatmul.f32.gmra.mxu0 %v1885
        %v1949 = vpop.f32.mrf.mxu0
        %v1950 = vadd.f32 %v660, %v1949
        %1951 = vmatmul.f32.gmra.mxu0 %v1888
        %v1952 = vpop.f32.mrf.mxu0
        %v1953 = vadd.f32 %v660, %v1952
        %1954 = vdwg.mxu0
        %1955 = vmax.xlane.f32.xlu0 %v1908
        %v1956 = vpop.xlane.xlu0 %1955
        %1957 = vmax.xlane.f32.xlu0 %v1911
        %v1958 = vpop.xlane.xlu0 %1957
        %1959 = vmax.xlane.f32.xlu0 %v1914
        %v1960 = vpop.xlane.xlu0 %1959
        %1961 = vmax.xlane.f32.xlu0 %v1917
        %v1962 = vpop.xlane.xlu0 %1961
        %1963 = vmax.xlane.f32.xlu0 %v1920
        %v1964 = vpop.xlane.xlu0 %1963
        %1965 = vmax.xlane.f32.xlu0 %v1923
        %v1966 = vpop.xlane.xlu0 %1965
        %1967 = vmax.xlane.f32.xlu0 %v1926
        %v1968 = vpop.xlane.xlu0 %1967
        %1969 = vmax.xlane.f32.xlu0 %v1929
        %v1970 = vpop.xlane.xlu0 %1969
        %1971 = vmax.xlane.f32.xlu0 %v1932
        %v1972 = vpop.xlane.xlu0 %1971
        %1973 = vmax.xlane.f32.xlu0 %v1935
        %v1974 = vpop.xlane.xlu0 %1973
        %1975 = vmax.xlane.f32.xlu0 %v1938
        %v1976 = vpop.xlane.xlu0 %1975
        %1977 = vmax.xlane.f32.xlu0 %v1941
        %v1978 = vpop.xlane.xlu0 %1977
        %1979 = vmax.xlane.f32.xlu0 %v1944
        %v1980 = vpop.xlane.xlu0 %1979
        %1981 = vmax.xlane.f32.xlu0 %v1947
        %v1982 = vpop.xlane.xlu0 %1981
        %1983 = vmax.xlane.f32.xlu0 %v1950
        %v1984 = vpop.xlane.xlu0 %1983
        %1985 = vmax.xlane.f32.xlu0 %v1953
        %v1986 = vpop.xlane.xlu0 %1985
        %v1987 = vsub.f32 %v1908, %v1956
        %v1988 = vsub.f32 %v1911, %v1958
        %v1989 = vsub.f32 %v1914, %v1960
        %v1990 = vsub.f32 %v1917, %v1962
        %v1991 = vsub.f32 %v1920, %v1964
        %v1992 = vsub.f32 %v1923, %v1966
        %v1993 = vsub.f32 %v1926, %v1968
        %v1994 = vsub.f32 %v1929, %v1970
        %v1995 = vsub.f32 %v1932, %v1972
        %v1996 = vsub.f32 %v1935, %v1974
        %v1997 = vsub.f32 %v1938, %v1976
        %v1998 = vsub.f32 %v1941, %v1978
        %v1999 = vsub.f32 %v1944, %v1980
        %v2000 = vsub.f32 %v1947, %v1982
        %v2001 = vsub.f32 %v1950, %v1984
        %v2002 = vsub.f32 %v1953, %v1986
        %v2003 = vmul.f32 %v1987, 1.442695
        %v2004 = vpow.pop %v2003
        %v2005 = vmul.f32 %v1988, 1.442695
        %v2006 = vpow.pop %v2005
        %v2007 = vmul.f32 %v1989, 1.442695
        %v2008 = vpow.pop %v2007
        %v2009 = vmul.f32 %v1990, 1.442695
        %v2010 = vpow.pop %v2009
        %v2011 = vmul.f32 %v1991, 1.442695
        %v2012 = vpow.pop %v2011
        %v2013 = vmul.f32 %v1992, 1.442695
        %v2014 = vpow.pop %v2013
        %v2015 = vmul.f32 %v1993, 1.442695
        %v2016 = vpow.pop %v2015
        %v2017 = vmul.f32 %v1994, 1.442695
        %v2018 = vpow.pop %v2017
        %v2019 = vmul.f32 %v1995, 1.442695
        %v2020 = vpow.pop %v2019
        %v2021 = vmul.f32 %v1996, 1.442695
        %v2022 = vpow.pop %v2021
        %v2023 = vmul.f32 %v1997, 1.442695
        %v2024 = vpow.pop %v2023
        %v2025 = vmul.f32 %v1998, 1.442695
        %v2026 = vpow.pop %v2025
        %v2027 = vmul.f32 %v1999, 1.442695
        %v2028 = vpow.pop %v2027
        %v2029 = vmul.f32 %v2000, 1.442695
        %v2030 = vpow.pop %v2029
        %v2031 = vmul.f32 %v2001, 1.442695
        %v2032 = vpow.pop %v2031
        %v2033 = vmul.f32 %v2002, 1.442695
        %v2034 = vpow.pop %v2033
        %2035 = vadd.xlane.f32.xlu0 %v2004
        %v2036 = vpop.xlane.xlu0 %2035
        %2037 = vadd.xlane.f32.xlu0 %v2006
        %v2038 = vpop.xlane.xlu0 %2037
        %2039 = vadd.xlane.f32.xlu0 %v2008
        %v2040 = vpop.xlane.xlu0 %2039
        %2041 = vadd.xlane.f32.xlu0 %v2010
        %v2042 = vpop.xlane.xlu0 %2041
        %2043 = vadd.xlane.f32.xlu0 %v2012
        %v2044 = vpop.xlane.xlu0 %2043
        %2045 = vadd.xlane.f32.xlu0 %v2014
        %v2046 = vpop.xlane.xlu0 %2045
        %2047 = vadd.xlane.f32.xlu0 %v2016
        %v2048 = vpop.xlane.xlu0 %2047
        %2049 = vadd.xlane.f32.xlu0 %v2018
        %v2050 = vpop.xlane.xlu0 %2049
        %2051 = vadd.xlane.f32.xlu0 %v2020
        %v2052 = vpop.xlane.xlu0 %2051
        %2053 = vadd.xlane.f32.xlu0 %v2022
        %v2054 = vpop.xlane.xlu0 %2053
        %2055 = vadd.xlane.f32.xlu0 %v2024
        %v2056 = vpop.xlane.xlu0 %2055
        %2057 = vadd.xlane.f32.xlu0 %v2026
        %v2058 = vpop.xlane.xlu0 %2057
        %2059 = vadd.xlane.f32.xlu0 %v2028
        %v2060 = vpop.xlane.xlu0 %2059
        %2061 = vadd.xlane.f32.xlu0 %v2030
        %v2062 = vpop.xlane.xlu0 %2061
        %2063 = vadd.xlane.f32.xlu0 %v2032
        %v2064 = vpop.xlane.xlu0 %2063
        %2065 = vadd.xlane.f32.xlu0 %v2034
        %v2066 = vpop.xlane.xlu0 %2065
        %v2067 = vrcp.pop %v2036
        %v2068 = vmul.f32 %v2036, %v2067
        %v2069 = vsub.f32 1.0, %v2068
        %v2070 = vmul.f32 %v2067, %v2069
        %v2071 = vadd.f32 %v2067, %v2070
        %vm2072 = vweird.f32 %v2036
        %vm2073 = vweird.f32 %v2067
        %vm2074 = vmor %vm2072, %vm2073
        %v2075 = vsel %vm2074, %v2067, %v2071
        %v2076 = vand.u32 2147483647, %v2036
        %vm2077 = vcmp.eq.f32.partialorder %v2076, 8.507059e+37
        %v2078 = vand.u32 %v2036, 2147483648
        %v2079 = vor.u32 1.1754944e-38, %v2078
        %v2080 = vsel %vm2077, %v2079, %v2075
        %v2081 = vmul.f32 1.0, %v2080
        %v2082 = vrcp.pop %v2038
        %v2083 = vmul.f32 %v2038, %v2082
        %v2084 = vsub.f32 1.0, %v2083
        %v2085 = vmul.f32 %v2082, %v2084
        %v2086 = vadd.f32 %v2082, %v2085
        %vm2087 = vweird.f32 %v2038
        %vm2088 = vweird.f32 %v2082
        %vm2089 = vmor %vm2087, %vm2088
        %v2090 = vsel %vm2089, %v2082, %v2086
        %v2091 = vand.u32 2147483647, %v2038
        %vm2092 = vcmp.eq.f32.partialorder %v2091, 8.507059e+37
        %v2093 = vand.u32 %v2038, 2147483648
        %v2094 = vor.u32 1.1754944e-38, %v2093
        %v2095 = vsel %vm2092, %v2094, %v2090
        %v2096 = vmul.f32 1.0, %v2095
        %v2097 = vrcp.pop %v2040
        %v2098 = vmul.f32 %v2040, %v2097
        %v2099 = vsub.f32 1.0, %v2098
        %v2100 = vmul.f32 %v2097, %v2099
        %v2101 = vadd.f32 %v2097, %v2100
        %vm2102 = vweird.f32 %v2040
        %vm2103 = vweird.f32 %v2097
        %vm2104 = vmor %vm2102, %vm2103
        %v2105 = vsel %vm2104, %v2097, %v2101
        %v2106 = vand.u32 2147483647, %v2040
        %vm2107 = vcmp.eq.f32.partialorder %v2106, 8.507059e+37
        %v2108 = vand.u32 %v2040, 2147483648
        %v2109 = vor.u32 1.1754944e-38, %v2108
        %v2110 = vsel %vm2107, %v2109, %v2105
        %v2111 = vmul.f32 1.0, %v2110
        %v2112 = vrcp.pop %v2042
        %v2113 = vmul.f32 %v2042, %v2112
        %v2114 = vsub.f32 1.0, %v2113
        %v2115 = vmul.f32 %v2112, %v2114
        %v2116 = vadd.f32 %v2112, %v2115
        %vm2117 = vweird.f32 %v2042
        %vm2118 = vweird.f32 %v2112
        %vm2119 = vmor %vm2117, %vm2118
        %v2120 = vsel %vm2119, %v2112, %v2116
        %v2121 = vand.u32 2147483647, %v2042
        %vm2122 = vcmp.eq.f32.partialorder %v2121, 8.507059e+37
        %v2123 = vand.u32 %v2042, 2147483648
        %v2124 = vor.u32 1.1754944e-38, %v2123
        %v2125 = vsel %vm2122, %v2124, %v2120
        %v2126 = vmul.f32 1.0, %v2125
        %v2127 = vrcp.pop %v2044
        %v2128 = vmul.f32 %v2044, %v2127
        %v2129 = vsub.f32 1.0, %v2128
        %v2130 = vmul.f32 %v2127, %v2129
        %v2131 = vadd.f32 %v2127, %v2130
        %vm2132 = vweird.f32 %v2044
        %vm2133 = vweird.f32 %v2127
        %vm2134 = vmor %vm2132, %vm2133
        %v2135 = vsel %vm2134, %v2127, %v2131
        %v2136 = vand.u32 2147483647, %v2044
        %vm2137 = vcmp.eq.f32.partialorder %v2136, 8.507059e+37
        %v2138 = vand.u32 %v2044, 2147483648
        %v2139 = vor.u32 1.1754944e-38, %v2138
        %v2140 = vsel %vm2137, %v2139, %v2135
        %v2141 = vmul.f32 1.0, %v2140
        %v2142 = vrcp.pop %v2046
        %v2143 = vmul.f32 %v2046, %v2142
        %v2144 = vsub.f32 1.0, %v2143
        %v2145 = vmul.f32 %v2142, %v2144
        %v2146 = vadd.f32 %v2142, %v2145
        %vm2147 = vweird.f32 %v2046
        %vm2148 = vweird.f32 %v2142
        %vm2149 = vmor %vm2147, %vm2148
        %v2150 = vsel %vm2149, %v2142, %v2146
        %v2151 = vand.u32 2147483647, %v2046
        %vm2152 = vcmp.eq.f32.partialorder %v2151, 8.507059e+37
        %v2153 = vand.u32 %v2046, 2147483648
        %v2154 = vor.u32 1.1754944e-38, %v2153
        %v2155 = vsel %vm2152, %v2154, %v2150
        %v2156 = vmul.f32 1.0, %v2155
        %v2157 = vrcp.pop %v2048
        %v2158 = vmul.f32 %v2048, %v2157
        %v2159 = vsub.f32 1.0, %v2158
        %v2160 = vmul.f32 %v2157, %v2159
        %v2161 = vadd.f32 %v2157, %v2160
        %vm2162 = vweird.f32 %v2048
        %vm2163 = vweird.f32 %v2157
        %vm2164 = vmor %vm2162, %vm2163
        %v2165 = vsel %vm2164, %v2157, %v2161
        %v2166 = vand.u32 2147483647, %v2048
        %vm2167 = vcmp.eq.f32.partialorder %v2166, 8.507059e+37
        %v2168 = vand.u32 %v2048, 2147483648
        %v2169 = vor.u32 1.1754944e-38, %v2168
        %v2170 = vsel %vm2167, %v2169, %v2165
        %v2171 = vmul.f32 1.0, %v2170
        %v2172 = vrcp.pop %v2050
        %v2173 = vmul.f32 %v2050, %v2172
        %v2174 = vsub.f32 1.0, %v2173
        %v2175 = vmul.f32 %v2172, %v2174
        %v2176 = vadd.f32 %v2172, %v2175
        %vm2177 = vweird.f32 %v2050
        %vm2178 = vweird.f32 %v2172
        %vm2179 = vmor %vm2177, %vm2178
        %v2180 = vsel %vm2179, %v2172, %v2176
        %v2181 = vand.u32 2147483647, %v2050
        %vm2182 = vcmp.eq.f32.partialorder %v2181, 8.507059e+37
        %v2183 = vand.u32 %v2050, 2147483648
        %v2184 = vor.u32 1.1754944e-38, %v2183
        %v2185 = vsel %vm2182, %v2184, %v2180
        %v2186 = vmul.f32 1.0, %v2185
        %v2187 = vrcp.pop %v2052
        %v2188 = vmul.f32 %v2052, %v2187
        %v2189 = vsub.f32 1.0, %v2188
        %v2190 = vmul.f32 %v2187, %v2189
        %v2191 = vadd.f32 %v2187, %v2190
        %vm2192 = vweird.f32 %v2052
        %vm2193 = vweird.f32 %v2187
        %vm2194 = vmor %vm2192, %vm2193
        %v2195 = vsel %vm2194, %v2187, %v2191
        %v2196 = vand.u32 2147483647, %v2052
        %vm2197 = vcmp.eq.f32.partialorder %v2196, 8.507059e+37
        %v2198 = vand.u32 %v2052, 2147483648
        %v2199 = vor.u32 1.1754944e-38, %v2198
        %v2200 = vsel %vm2197, %v2199, %v2195
        %v2201 = vmul.f32 1.0, %v2200
        %v2202 = vrcp.pop %v2054
        %v2203 = vmul.f32 %v2054, %v2202
        %v2204 = vsub.f32 1.0, %v2203
        %v2205 = vmul.f32 %v2202, %v2204
        %v2206 = vadd.f32 %v2202, %v2205
        %vm2207 = vweird.f32 %v2054
        %vm2208 = vweird.f32 %v2202
        %vm2209 = vmor %vm2207, %vm2208
        %v2210 = vsel %vm2209, %v2202, %v2206
        %v2211 = vand.u32 2147483647, %v2054
        %vm2212 = vcmp.eq.f32.partialorder %v2211, 8.507059e+37
        %v2213 = vand.u32 %v2054, 2147483648
        %v2214 = vor.u32 1.1754944e-38, %v2213
        %v2215 = vsel %vm2212, %v2214, %v2210
        %v2216 = vmul.f32 1.0, %v2215
        %v2217 = vrcp.pop %v2056
        %v2218 = vmul.f32 %v2056, %v2217
        %v2219 = vsub.f32 1.0, %v2218
        %v2220 = vmul.f32 %v2217, %v2219
        %v2221 = vadd.f32 %v2217, %v2220
        %vm2222 = vweird.f32 %v2056
        %vm2223 = vweird.f32 %v2217
        %vm2224 = vmor %vm2222, %vm2223
        %v2225 = vsel %vm2224, %v2217, %v2221
        %v2226 = vand.u32 2147483647, %v2056
        %vm2227 = vcmp.eq.f32.partialorder %v2226, 8.507059e+37
        %v2228 = vand.u32 %v2056, 2147483648
        %v2229 = vor.u32 1.1754944e-38, %v2228
        %v2230 = vsel %vm2227, %v2229, %v2225
        %v2231 = vmul.f32 1.0, %v2230
        %v2232 = vrcp.pop %v2058
        %v2233 = vmul.f32 %v2058, %v2232
        %v2234 = vsub.f32 1.0, %v2233
        %v2235 = vmul.f32 %v2232, %v2234
        %v2236 = vadd.f32 %v2232, %v2235
        %vm2237 = vweird.f32 %v2058
        %vm2238 = vweird.f32 %v2232
        %vm2239 = vmor %vm2237, %vm2238
        %v2240 = vsel %vm2239, %v2232, %v2236
        %v2241 = vand.u32 2147483647, %v2058
        %vm2242 = vcmp.eq.f32.partialorder %v2241, 8.507059e+37
        %v2243 = vand.u32 %v2058, 2147483648
        %v2244 = vor.u32 1.1754944e-38, %v2243
        %v2245 = vsel %vm2242, %v2244, %v2240
        %v2246 = vmul.f32 1.0, %v2245
        %v2247 = vrcp.pop %v2060
        %v2248 = vmul.f32 %v2060, %v2247
        %v2249 = vsub.f32 1.0, %v2248
        %v2250 = vmul.f32 %v2247, %v2249
        %v2251 = vadd.f32 %v2247, %v2250
        %vm2252 = vweird.f32 %v2060
        %vm2253 = vweird.f32 %v2247
        %vm2254 = vmor %vm2252, %vm2253
        %v2255 = vsel %vm2254, %v2247, %v2251
        %v2256 = vand.u32 2147483647, %v2060
        %vm2257 = vcmp.eq.f32.partialorder %v2256, 8.507059e+37
        %v2258 = vand.u32 %v2060, 2147483648
        %v2259 = vor.u32 1.1754944e-38, %v2258
        %v2260 = vsel %vm2257, %v2259, %v2255
        %v2261 = vmul.f32 1.0, %v2260
        %v2262 = vrcp.pop %v2062
        %v2263 = vmul.f32 %v2062, %v2262
        %v2264 = vsub.f32 1.0, %v2263
        %v2265 = vmul.f32 %v2262, %v2264
        %v2266 = vadd.f32 %v2262, %v2265
        %vm2267 = vweird.f32 %v2062
        %vm2268 = vweird.f32 %v2262
        %vm2269 = vmor %vm2267, %vm2268
        %v2270 = vsel %vm2269, %v2262, %v2266
        %v2271 = vand.u32 2147483647, %v2062
        %vm2272 = vcmp.eq.f32.partialorder %v2271, 8.507059e+37
        %v2273 = vand.u32 %v2062, 2147483648
        %v2274 = vor.u32 1.1754944e-38, %v2273
        %v2275 = vsel %vm2272, %v2274, %v2270
        %v2276 = vmul.f32 1.0, %v2275
        %v2277 = vrcp.pop %v2064
        %v2278 = vmul.f32 %v2064, %v2277
        %v2279 = vsub.f32 1.0, %v2278
        %v2280 = vmul.f32 %v2277, %v2279
        %v2281 = vadd.f32 %v2277, %v2280
        %vm2282 = vweird.f32 %v2064
        %vm2283 = vweird.f32 %v2277
        %vm2284 = vmor %vm2282, %vm2283
        %v2285 = vsel %vm2284, %v2277, %v2281
        %v2286 = vand.u32 2147483647, %v2064
        %vm2287 = vcmp.eq.f32.partialorder %v2286, 8.507059e+37
        %v2288 = vand.u32 %v2064, 2147483648
        %v2289 = vor.u32 1.1754944e-38, %v2288
        %v2290 = vsel %vm2287, %v2289, %v2285
        %v2291 = vmul.f32 1.0, %v2290
        %v2292 = vrcp.pop %v2066
        %v2293 = vmul.f32 %v2066, %v2292
        %v2294 = vsub.f32 1.0, %v2293
        %v2295 = vmul.f32 %v2292, %v2294
        %v2296 = vadd.f32 %v2292, %v2295
        %vm2297 = vweird.f32 %v2066
        %vm2298 = vweird.f32 %v2292
        %vm2299 = vmor %vm2297, %vm2298
        %v2300 = vsel %vm2299, %v2292, %v2296
        %v2301 = vand.u32 2147483647, %v2066
        %vm2302 = vcmp.eq.f32.partialorder %v2301, 8.507059e+37
        %v2303 = vand.u32 %v2066, 2147483648
        %v2304 = vor.u32 1.1754944e-38, %v2303
        %v2305 = vsel %vm2302, %v2304, %v2300
        %v2306 = vmul.f32 1.0, %v2305
        %v2307 = vmul.f32 %v2004, %v2081
        %v2308 = vmul.f32 %v2006, %v2096
        %v2309 = vmul.f32 %v2008, %v2111
        %v2310 = vmul.f32 %v2010, %v2126
        %v2311 = vmul.f32 %v2012, %v2141
        %v2312 = vmul.f32 %v2014, %v2156
        %v2313 = vmul.f32 %v2016, %v2171
        %v2314 = vmul.f32 %v2018, %v2186
        %v2315 = vmul.f32 %v2020, %v2201
        %v2316 = vmul.f32 %v2022, %v2216
        %v2317 = vmul.f32 %v2024, %v2231
        %v2318 = vmul.f32 %v2026, %v2246
        %v2319 = vmul.f32 %v2028, %v2261
        %v2320 = vmul.f32 %v2030, %v2276
        %v2321 = vmul.f32 %v2032, %v2291
        %v2322 = vmul.f32 %v2034, %v2306
        %2323 = vmatpush.xpose.msra.mxu0 %v2322
        %2324 = vmatpush.xpose.msra.mxu0 %v2321
        %2325 = vmatpush.xpose.msra.mxu0 %v2320
        %2326 = vmatpush.xpose.msra.mxu0 %v2319
        %2327 = vmatpush.xpose.msra.mxu0 %v2318
        %2328 = vmatpush.xpose.msra.mxu0 %v2317
        %2329 = vmatpush.xpose.msra.mxu0 %v2316
        %2330 = vmatpush.xpose.msra.mxu0 %v2315
        %2331 = vmatpush.xpose.msra.mxu0 %v2314
        %2332 = vmatpush.xpose.msra.mxu0 %v2313
        %2333 = vmatpush.xpose.msra.mxu0 %v2312
        %2334 = vmatpush.xpose.msra.mxu0 %v2311
        %2335 = vmatpush.xpose.msra.mxu0 %v2310
        %2336 = vmatpush.xpose.msra.mxu0 %v2309
        %2337 = vmatpush.xpose.msra.mxu0 %v2308
        %2338 = vmatpush.xpose.msra.mxu0 %v2307
        %2339 = vmatmul.f32.gmra.mxu0 %v652
        %v2340 = vpop.f32.mrf.mxu0
        %v2341 = vadd.f32 0.0, %v2340
        %2342 = vdwg.mxu0
        %2343 = vxpose.xlu0.b32.start [1/16] %v741, 128
        %2344 = vxpose.xlu0.b32.cont [2/16] 0.0, 128
        %2345 = vxpose.xlu0.b32.cont [3/16] 0.0, 128
        %2346 = vxpose.xlu0.b32.cont [4/16] 0.0, 128
        %2347 = vxpose.xlu0.b32.cont [5/16] 0.0, 128
        %2348 = vxpose.xlu0.b32.cont [6/16] 0.0, 128
        %2349 = vxpose.xlu0.b32.cont [7/16] 0.0, 128
        %2350 = vxpose.xlu0.b32.cont [8/16] 0.0, 128
        %2351 = vxpose.xlu0.b32.cont [9/16] 0.0, 128
        %2352 = vxpose.xlu0.b32.cont [10/16] 0.0, 128
        %2353 = vxpose.xlu0.b32.cont [11/16] 0.0, 128
        %2354 = vxpose.xlu0.b32.cont [12/16] 0.0, 128
        %2355 = vxpose.xlu0.b32.cont [13/16] 0.0, 128
        %2356 = vxpose.xlu0.b32.cont [14/16] 0.0, 128
        %2357 = vxpose.xlu0.b32.cont [15/16] 0.0, 128
        %2358 = vxpose.xlu0.b32.end [16/16] 0.0, 128
        %v2359 = vpop.trf.xlu0
        %v2360 = vpop.trf.xlu0
        %v2361 = vpop.trf.xlu0
        %v2362 = vpop.trf.xlu0
        %v2363 = vpop.trf.xlu0
        %v2364 = vpop.trf.xlu0
        %v2365 = vpop.trf.xlu0
        %v2366 = vpop.trf.xlu0
        %v2367 = vpop.trf.xlu0
        %v2368 = vpop.trf.xlu0
        %v2369 = vpop.trf.xlu0
        %v2370 = vpop.trf.xlu0
        %v2371 = vpop.trf.xlu0
        %v2372 = vpop.trf.xlu0
        %v2373 = vpop.trf.xlu0
        %v2374 = vpop.trf.xlu0
        %v2376 = vsel %vm775, %v2359, 0
        %v2379 = vsel %vm775, %v2360, 0
        %v2382 = vsel %vm775, %v2361, 0
        %v2385 = vsel %vm775, %v2362, 0
        %v2388 = vsel %vm775, %v2363, 0
        %v2391 = vsel %vm775, %v2364, 0
        %v2394 = vsel %vm775, %v2365, 0
        %v2397 = vsel %vm775, %v2366, 0
        %v2400 = vsel %vm775, %v2367, 0
        %v2403 = vsel %vm775, %v2368, 0
        %v2406 = vsel %vm775, %v2369, 0
        %v2409 = vsel %vm775, %v2370, 0
        %v2412 = vsel %vm775, %v2371, 0
        %v2415 = vsel %vm775, %v2372, 0
        %v2418 = vsel %vm775, %v2373, 0
        %v2421 = vsel %vm775, %v2374, 0
        %2423 = vmatpush.msra.mxu0 0.0
        %2424 = vmatpush.msra.mxu0 0.0
        %2425 = vmatpush.msra.mxu0 0.0
        %2426 = vmatpush.msra.mxu0 0.0
        %2427 = vmatpush.msra.mxu0 0.0
        %2428 = vmatpush.msra.mxu0 0.0
        %2429 = vmatpush.msra.mxu0 0.0
        %2430 = vmatpush.msra.mxu0 0.0
        %2431 = vmatpush.msra.mxu0 0.0
        %2432 = vmatpush.msra.mxu0 0.0
        %2433 = vmatpush.msra.mxu0 0.0
        %2434 = vmatpush.msra.mxu0 0.0
        %2435 = vmatpush.msra.mxu0 0.0
        %2436 = vmatpush.msra.mxu0 0.0
        %2437 = vmatpush.msra.mxu0 0.0
        %2438 = vmatpush.msra.mxu0 %v586
        %2439 = vmatmul.f32.gmra.mxu0 %v2376
        %v2440 = vpop.f32.mrf.mxu0
        %v2441 = vadd.f32 %v660, %v2440
        %2442 = vmatmul.f32.gmra.mxu0 %v2379
        %v2443 = vpop.f32.mrf.mxu0
        %v2444 = vadd.f32 %v660, %v2443
        %2445 = vmatmul.f32.gmra.mxu0 %v2382
        %v2446 = vpop.f32.mrf.mxu0
        %v2447 = vadd.f32 %v660, %v2446
        %2448 = vmatmul.f32.gmra.mxu0 %v2385
        %v2449 = vpop.f32.mrf.mxu0
        %v2450 = vadd.f32 %v660, %v2449
        %2451 = vmatmul.f32.gmra.mxu0 %v2388
        %v2452 = vpop.f32.mrf.mxu0
        %v2453 = vadd.f32 %v660, %v2452
        %2454 = vmatmul.f32.gmra.mxu0 %v2391
        %v2455 = vpop.f32.mrf.mxu0
        %v2456 = vadd.f32 %v660, %v2455
        %2457 = vmatmul.f32.gmra.mxu0 %v2394
        %v2458 = vpop.f32.mrf.mxu0
        %v2459 = vadd.f32 %v660, %v2458
        %2460 = vmatmul.f32.gmra.mxu0 %v2397
        %v2461 = vpop.f32.mrf.mxu0
        %v2462 = vadd.f32 %v660, %v2461
        %2463 = vmatmul.f32.gmra.mxu0 %v2400
        %v2464 = vpop.f32.mrf.mxu0
        %v2465 = vadd.f32 %v660, %v2464
        %2466 = vmatmul.f32.gmra.mxu0 %v2403
        %v2467 = vpop.f32.mrf.mxu0
        %v2468 = vadd.f32 %v660, %v2467
        %2469 = vmatmul.f32.gmra.mxu0 %v2406
        %v2470 = vpop.f32.mrf.mxu0
        %v2471 = vadd.f32 %v660, %v2470
        %2472 = vmatmul.f32.gmra.mxu0 %v2409
        %v2473 = vpop.f32.mrf.mxu0
        %v2474 = vadd.f32 %v660, %v2473
        %2475 = vmatmul.f32.gmra.mxu0 %v2412
        %v2476 = vpop.f32.mrf.mxu0
        %v2477 = vadd.f32 %v660, %v2476
        %2478 = vmatmul.f32.gmra.mxu0 %v2415
        %v2479 = vpop.f32.mrf.mxu0
        %v2480 = vadd.f32 %v660, %v2479
        %2481 = vmatmul.f32.gmra.mxu0 %v2418
        %v2482 = vpop.f32.mrf.mxu0
        %v2483 = vadd.f32 %v660, %v2482
        %2484 = vmatmul.f32.gmra.mxu0 %v2421
        %v2485 = vpop.f32.mrf.mxu0
        %v2486 = vadd.f32 %v660, %v2485
        %2487 = vdwg.mxu0
        %2488 = vmax.xlane.f32.xlu0 %v2441
        %v2489 = vpop.xlane.xlu0 %2488
        %2490 = vmax.xlane.f32.xlu0 %v2444
        %v2491 = vpop.xlane.xlu0 %2490
        %2492 = vmax.xlane.f32.xlu0 %v2447
        %v2493 = vpop.xlane.xlu0 %2492
        %2494 = vmax.xlane.f32.xlu0 %v2450
        %v2495 = vpop.xlane.xlu0 %2494
        %2496 = vmax.xlane.f32.xlu0 %v2453
        %v2497 = vpop.xlane.xlu0 %2496
        %2498 = vmax.xlane.f32.xlu0 %v2456
        %v2499 = vpop.xlane.xlu0 %2498
        %2500 = vmax.xlane.f32.xlu0 %v2459
        %v2501 = vpop.xlane.xlu0 %2500
        %2502 = vmax.xlane.f32.xlu0 %v2462
        %v2503 = vpop.xlane.xlu0 %2502
        %2504 = vmax.xlane.f32.xlu0 %v2465
        %v2505 = vpop.xlane.xlu0 %2504
        %2506 = vmax.xlane.f32.xlu0 %v2468
        %v2507 = vpop.xlane.xlu0 %2506
        %2508 = vmax.xlane.f32.xlu0 %v2471
        %v2509 = vpop.xlane.xlu0 %2508
        %2510 = vmax.xlane.f32.xlu0 %v2474
        %v2511 = vpop.xlane.xlu0 %2510
        %2512 = vmax.xlane.f32.xlu0 %v2477
        %v2513 = vpop.xlane.xlu0 %2512
        %2514 = vmax.xlane.f32.xlu0 %v2480
        %v2515 = vpop.xlane.xlu0 %2514
        %2516 = vmax.xlane.f32.xlu0 %v2483
        %v2517 = vpop.xlane.xlu0 %2516
        %2518 = vmax.xlane.f32.xlu0 %v2486
        %v2519 = vpop.xlane.xlu0 %2518
        %v2520 = vsub.f32 %v2441, %v2489
        %v2521 = vsub.f32 %v2444, %v2491
        %v2522 = vsub.f32 %v2447, %v2493
        %v2523 = vsub.f32 %v2450, %v2495
        %v2524 = vsub.f32 %v2453, %v2497
        %v2525 = vsub.f32 %v2456, %v2499
        %v2526 = vsub.f32 %v2459, %v2501
        %v2527 = vsub.f32 %v2462, %v2503
        %v2528 = vsub.f32 %v2465, %v2505
        %v2529 = vsub.f32 %v2468, %v2507
        %v2530 = vsub.f32 %v2471, %v2509
        %v2531 = vsub.f32 %v2474, %v2511
        %v2532 = vsub.f32 %v2477, %v2513
        %v2533 = vsub.f32 %v2480, %v2515
        %v2534 = vsub.f32 %v2483, %v2517
        %v2535 = vsub.f32 %v2486, %v2519
        %v2536 = vmul.f32 %v2520, 1.442695
        %v2537 = vpow.pop %v2536
        %v2538 = vmul.f32 %v2521, 1.442695
        %v2539 = vpow.pop %v2538
        %v2540 = vmul.f32 %v2522, 1.442695
        %v2541 = vpow.pop %v2540
        %v2542 = vmul.f32 %v2523, 1.442695
        %v2543 = vpow.pop %v2542
        %v2544 = vmul.f32 %v2524, 1.442695
        %v2545 = vpow.pop %v2544
        %v2546 = vmul.f32 %v2525, 1.442695
        %v2547 = vpow.pop %v2546
        %v2548 = vmul.f32 %v2526, 1.442695
        %v2549 = vpow.pop %v2548
        %v2550 = vmul.f32 %v2527, 1.442695
        %v2551 = vpow.pop %v2550
        %v2552 = vmul.f32 %v2528, 1.442695
        %v2553 = vpow.pop %v2552
        %v2554 = vmul.f32 %v2529, 1.442695
        %v2555 = vpow.pop %v2554
        %v2556 = vmul.f32 %v2530, 1.442695
        %v2557 = vpow.pop %v2556
        %v2558 = vmul.f32 %v2531, 1.442695
        %v2559 = vpow.pop %v2558
        %v2560 = vmul.f32 %v2532, 1.442695
        %v2561 = vpow.pop %v2560
        %v2562 = vmul.f32 %v2533, 1.442695
        %v2563 = vpow.pop %v2562
        %v2564 = vmul.f32 %v2534, 1.442695
        %v2565 = vpow.pop %v2564
        %v2566 = vmul.f32 %v2535, 1.442695
        %v2567 = vpow.pop %v2566
        %2568 = vadd.xlane.f32.xlu0 %v2537
        %v2569 = vpop.xlane.xlu0 %2568
        %2570 = vadd.xlane.f32.xlu0 %v2539
        %v2571 = vpop.xlane.xlu0 %2570
        %2572 = vadd.xlane.f32.xlu0 %v2541
        %v2573 = vpop.xlane.xlu0 %2572
        %2574 = vadd.xlane.f32.xlu0 %v2543
        %v2575 = vpop.xlane.xlu0 %2574
        %2576 = vadd.xlane.f32.xlu0 %v2545
        %v2577 = vpop.xlane.xlu0 %2576
        %2578 = vadd.xlane.f32.xlu0 %v2547
        %v2579 = vpop.xlane.xlu0 %2578
        %2580 = vadd.xlane.f32.xlu0 %v2549
        %v2581 = vpop.xlane.xlu0 %2580
        %2582 = vadd.xlane.f32.xlu0 %v2551
        %v2583 = vpop.xlane.xlu0 %2582
        %2584 = vadd.xlane.f32.xlu0 %v2553
        %v2585 = vpop.xlane.xlu0 %2584
        %2586 = vadd.xlane.f32.xlu0 %v2555
        %v2587 = vpop.xlane.xlu0 %2586
        %2588 = vadd.xlane.f32.xlu0 %v2557
        %v2589 = vpop.xlane.xlu0 %2588
        %2590 = vadd.xlane.f32.xlu0 %v2559
        %v2591 = vpop.xlane.xlu0 %2590
        %2592 = vadd.xlane.f32.xlu0 %v2561
        %v2593 = vpop.xlane.xlu0 %2592
        %2594 = vadd.xlane.f32.xlu0 %v2563
        %v2595 = vpop.xlane.xlu0 %2594
        %2596 = vadd.xlane.f32.xlu0 %v2565
        %v2597 = vpop.xlane.xlu0 %2596
        %2598 = vadd.xlane.f32.xlu0 %v2567
        %v2599 = vpop.xlane.xlu0 %2598
        %v2600 = vrcp.pop %v2569
        %v2601 = vmul.f32 %v2569, %v2600
        %v2602 = vsub.f32 1.0, %v2601
        %v2603 = vmul.f32 %v2600, %v2602
        %v2604 = vadd.f32 %v2600, %v2603
        %vm2605 = vweird.f32 %v2569
        %vm2606 = vweird.f32 %v2600
        %vm2607 = vmor %vm2605, %vm2606
        %v2608 = vsel %vm2607, %v2600, %v2604
        %v2609 = vand.u32 2147483647, %v2569
        %vm2610 = vcmp.eq.f32.partialorder %v2609, 8.507059e+37
        %v2611 = vand.u32 %v2569, 2147483648
        %v2612 = vor.u32 1.1754944e-38, %v2611
        %v2613 = vsel %vm2610, %v2612, %v2608
        %v2614 = vmul.f32 1.0, %v2613
        %v2615 = vrcp.pop %v2571
        %v2616 = vmul.f32 %v2571, %v2615
        %v2617 = vsub.f32 1.0, %v2616
        %v2618 = vmul.f32 %v2615, %v2617
        %v2619 = vadd.f32 %v2615, %v2618
        %vm2620 = vweird.f32 %v2571
        %vm2621 = vweird.f32 %v2615
        %vm2622 = vmor %vm2620, %vm2621
        %v2623 = vsel %vm2622, %v2615, %v2619
        %v2624 = vand.u32 2147483647, %v2571
        %vm2625 = vcmp.eq.f32.partialorder %v2624, 8.507059e+37
        %v2626 = vand.u32 %v2571, 2147483648
        %v2627 = vor.u32 1.1754944e-38, %v2626
        %v2628 = vsel %vm2625, %v2627, %v2623
        %v2629 = vmul.f32 1.0, %v2628
        %v2630 = vrcp.pop %v2573
        %v2631 = vmul.f32 %v2573, %v2630
        %v2632 = vsub.f32 1.0, %v2631
        %v2633 = vmul.f32 %v2630, %v2632
        %v2634 = vadd.f32 %v2630, %v2633
        %vm2635 = vweird.f32 %v2573
        %vm2636 = vweird.f32 %v2630
        %vm2637 = vmor %vm2635, %vm2636
        %v2638 = vsel %vm2637, %v2630, %v2634
        %v2639 = vand.u32 2147483647, %v2573
        %vm2640 = vcmp.eq.f32.partialorder %v2639, 8.507059e+37
        %v2641 = vand.u32 %v2573, 2147483648
        %v2642 = vor.u32 1.1754944e-38, %v2641
        %v2643 = vsel %vm2640, %v2642, %v2638
        %v2644 = vmul.f32 1.0, %v2643
        %v2645 = vrcp.pop %v2575
        %v2646 = vmul.f32 %v2575, %v2645
        %v2647 = vsub.f32 1.0, %v2646
        %v2648 = vmul.f32 %v2645, %v2647
        %v2649 = vadd.f32 %v2645, %v2648
        %vm2650 = vweird.f32 %v2575
        %vm2651 = vweird.f32 %v2645
        %vm2652 = vmor %vm2650, %vm2651
        %v2653 = vsel %vm2652, %v2645, %v2649
        %v2654 = vand.u32 2147483647, %v2575
        %vm2655 = vcmp.eq.f32.partialorder %v2654, 8.507059e+37
        %v2656 = vand.u32 %v2575, 2147483648
        %v2657 = vor.u32 1.1754944e-38, %v2656
        %v2658 = vsel %vm2655, %v2657, %v2653
        %v2659 = vmul.f32 1.0, %v2658
        %v2660 = vrcp.pop %v2577
        %v2661 = vmul.f32 %v2577, %v2660
        %v2662 = vsub.f32 1.0, %v2661
        %v2663 = vmul.f32 %v2660, %v2662
        %v2664 = vadd.f32 %v2660, %v2663
        %vm2665 = vweird.f32 %v2577
        %vm2666 = vweird.f32 %v2660
        %vm2667 = vmor %vm2665, %vm2666
        %v2668 = vsel %vm2667, %v2660, %v2664
        %v2669 = vand.u32 2147483647, %v2577
        %vm2670 = vcmp.eq.f32.partialorder %v2669, 8.507059e+37
        %v2671 = vand.u32 %v2577, 2147483648
        %v2672 = vor.u32 1.1754944e-38, %v2671
        %v2673 = vsel %vm2670, %v2672, %v2668
        %v2674 = vmul.f32 1.0, %v2673
        %v2675 = vrcp.pop %v2579
        %v2676 = vmul.f32 %v2579, %v2675
        %v2677 = vsub.f32 1.0, %v2676
        %v2678 = vmul.f32 %v2675, %v2677
        %v2679 = vadd.f32 %v2675, %v2678
        %vm2680 = vweird.f32 %v2579
        %vm2681 = vweird.f32 %v2675
        %vm2682 = vmor %vm2680, %vm2681
        %v2683 = vsel %vm2682, %v2675, %v2679
        %v2684 = vand.u32 2147483647, %v2579
        %vm2685 = vcmp.eq.f32.partialorder %v2684, 8.507059e+37
        %v2686 = vand.u32 %v2579, 2147483648
        %v2687 = vor.u32 1.1754944e-38, %v2686
        %v2688 = vsel %vm2685, %v2687, %v2683
        %v2689 = vmul.f32 1.0, %v2688
        %v2690 = vrcp.pop %v2581
        %v2691 = vmul.f32 %v2581, %v2690
        %v2692 = vsub.f32 1.0, %v2691
        %v2693 = vmul.f32 %v2690, %v2692
        %v2694 = vadd.f32 %v2690, %v2693
        %vm2695 = vweird.f32 %v2581
        %vm2696 = vweird.f32 %v2690
        %vm2697 = vmor %vm2695, %vm2696
        %v2698 = vsel %vm2697, %v2690, %v2694
        %v2699 = vand.u32 2147483647, %v2581
        %vm2700 = vcmp.eq.f32.partialorder %v2699, 8.507059e+37
        %v2701 = vand.u32 %v2581, 2147483648
        %v2702 = vor.u32 1.1754944e-38, %v2701
        %v2703 = vsel %vm2700, %v2702, %v2698
        %v2704 = vmul.f32 1.0, %v2703
        %v2705 = vrcp.pop %v2583
        %v2706 = vmul.f32 %v2583, %v2705
        %v2707 = vsub.f32 1.0, %v2706
        %v2708 = vmul.f32 %v2705, %v2707
        %v2709 = vadd.f32 %v2705, %v2708
        %vm2710 = vweird.f32 %v2583
        %vm2711 = vweird.f32 %v2705
        %vm2712 = vmor %vm2710, %vm2711
        %v2713 = vsel %vm2712, %v2705, %v2709
        %v2714 = vand.u32 2147483647, %v2583
        %vm2715 = vcmp.eq.f32.partialorder %v2714, 8.507059e+37
        %v2716 = vand.u32 %v2583, 2147483648
        %v2717 = vor.u32 1.1754944e-38, %v2716
        %v2718 = vsel %vm2715, %v2717, %v2713
        %v2719 = vmul.f32 1.0, %v2718
        %v2720 = vrcp.pop %v2585
        %v2721 = vmul.f32 %v2585, %v2720
        %v2722 = vsub.f32 1.0, %v2721
        %v2723 = vmul.f32 %v2720, %v2722
        %v2724 = vadd.f32 %v2720, %v2723
        %vm2725 = vweird.f32 %v2585
        %vm2726 = vweird.f32 %v2720
        %vm2727 = vmor %vm2725, %vm2726
        %v2728 = vsel %vm2727, %v2720, %v2724
        %v2729 = vand.u32 2147483647, %v2585
        %vm2730 = vcmp.eq.f32.partialorder %v2729, 8.507059e+37
        %v2731 = vand.u32 %v2585, 2147483648
        %v2732 = vor.u32 1.1754944e-38, %v2731
        %v2733 = vsel %vm2730, %v2732, %v2728
        %v2734 = vmul.f32 1.0, %v2733
        %v2735 = vrcp.pop %v2587
        %v2736 = vmul.f32 %v2587, %v2735
        %v2737 = vsub.f32 1.0, %v2736
        %v2738 = vmul.f32 %v2735, %v2737
        %v2739 = vadd.f32 %v2735, %v2738
        %vm2740 = vweird.f32 %v2587
        %vm2741 = vweird.f32 %v2735
        %vm2742 = vmor %vm2740, %vm2741
        %v2743 = vsel %vm2742, %v2735, %v2739
        %v2744 = vand.u32 2147483647, %v2587
        %vm2745 = vcmp.eq.f32.partialorder %v2744, 8.507059e+37
        %v2746 = vand.u32 %v2587, 2147483648
        %v2747 = vor.u32 1.1754944e-38, %v2746
        %v2748 = vsel %vm2745, %v2747, %v2743
        %v2749 = vmul.f32 1.0, %v2748
        %v2750 = vrcp.pop %v2589
        %v2751 = vmul.f32 %v2589, %v2750
        %v2752 = vsub.f32 1.0, %v2751
        %v2753 = vmul.f32 %v2750, %v2752
        %v2754 = vadd.f32 %v2750, %v2753
        %vm2755 = vweird.f32 %v2589
        %vm2756 = vweird.f32 %v2750
        %vm2757 = vmor %vm2755, %vm2756
        %v2758 = vsel %vm2757, %v2750, %v2754
        %v2759 = vand.u32 2147483647, %v2589
        %vm2760 = vcmp.eq.f32.partialorder %v2759, 8.507059e+37
        %v2761 = vand.u32 %v2589, 2147483648
        %v2762 = vor.u32 1.1754944e-38, %v2761
        %v2763 = vsel %vm2760, %v2762, %v2758
        %v2764 = vmul.f32 1.0, %v2763
        %v2765 = vrcp.pop %v2591
        %v2766 = vmul.f32 %v2591, %v2765
        %v2767 = vsub.f32 1.0, %v2766
        %v2768 = vmul.f32 %v2765, %v2767
        %v2769 = vadd.f32 %v2765, %v2768
        %vm2770 = vweird.f32 %v2591
        %vm2771 = vweird.f32 %v2765
        %vm2772 = vmor %vm2770, %vm2771
        %v2773 = vsel %vm2772, %v2765, %v2769
        %v2774 = vand.u32 2147483647, %v2591
        %vm2775 = vcmp.eq.f32.partialorder %v2774, 8.507059e+37
        %v2776 = vand.u32 %v2591, 2147483648
        %v2777 = vor.u32 1.1754944e-38, %v2776
        %v2778 = vsel %vm2775, %v2777, %v2773
        %v2779 = vmul.f32 1.0, %v2778
        %v2780 = vrcp.pop %v2593
        %v2781 = vmul.f32 %v2593, %v2780
        %v2782 = vsub.f32 1.0, %v2781
        %v2783 = vmul.f32 %v2780, %v2782
        %v2784 = vadd.f32 %v2780, %v2783
        %vm2785 = vweird.f32 %v2593
        %vm2786 = vweird.f32 %v2780
        %vm2787 = vmor %vm2785, %vm2786
        %v2788 = vsel %vm2787, %v2780, %v2784
        %v2789 = vand.u32 2147483647, %v2593
        %vm2790 = vcmp.eq.f32.partialorder %v2789, 8.507059e+37
        %v2791 = vand.u32 %v2593, 2147483648
        %v2792 = vor.u32 1.1754944e-38, %v2791
        %v2793 = vsel %vm2790, %v2792, %v2788
        %v2794 = vmul.f32 1.0, %v2793
        %v2795 = vrcp.pop %v2595
        %v2796 = vmul.f32 %v2595, %v2795
        %v2797 = vsub.f32 1.0, %v2796
        %v2798 = vmul.f32 %v2795, %v2797
        %v2799 = vadd.f32 %v2795, %v2798
        %vm2800 = vweird.f32 %v2595
        %vm2801 = vweird.f32 %v2795
        %vm2802 = vmor %vm2800, %vm2801
        %v2803 = vsel %vm2802, %v2795, %v2799
        %v2804 = vand.u32 2147483647, %v2595
        %vm2805 = vcmp.eq.f32.partialorder %v2804, 8.507059e+37
        %v2806 = vand.u32 %v2595, 2147483648
        %v2807 = vor.u32 1.1754944e-38, %v2806
        %v2808 = vsel %vm2805, %v2807, %v2803
        %v2809 = vmul.f32 1.0, %v2808
        %v2810 = vrcp.pop %v2597
        %v2811 = vmul.f32 %v2597, %v2810
        %v2812 = vsub.f32 1.0, %v2811
        %v2813 = vmul.f32 %v2810, %v2812
        %v2814 = vadd.f32 %v2810, %v2813
        %vm2815 = vweird.f32 %v2597
        %vm2816 = vweird.f32 %v2810
        %vm2817 = vmor %vm2815, %vm2816
        %v2818 = vsel %vm2817, %v2810, %v2814
        %v2819 = vand.u32 2147483647, %v2597
        %vm2820 = vcmp.eq.f32.partialorder %v2819, 8.507059e+37
        %v2821 = vand.u32 %v2597, 2147483648
        %v2822 = vor.u32 1.1754944e-38, %v2821
        %v2823 = vsel %vm2820, %v2822, %v2818
        %v2824 = vmul.f32 1.0, %v2823
        %v2825 = vrcp.pop %v2599
        %v2826 = vmul.f32 %v2599, %v2825
        %v2827 = vsub.f32 1.0, %v2826
        %v2828 = vmul.f32 %v2825, %v2827
        %v2829 = vadd.f32 %v2825, %v2828
        %vm2830 = vweird.f32 %v2599
        %vm2831 = vweird.f32 %v2825
        %vm2832 = vmor %vm2830, %vm2831
        %v2833 = vsel %vm2832, %v2825, %v2829
        %v2834 = vand.u32 2147483647, %v2599
        %vm2835 = vcmp.eq.f32.partialorder %v2834, 8.507059e+37
        %v2836 = vand.u32 %v2599, 2147483648
        %v2837 = vor.u32 1.1754944e-38, %v2836
        %v2838 = vsel %vm2835, %v2837, %v2833
        %v2839 = vmul.f32 1.0, %v2838
        %v2840 = vmul.f32 %v2537, %v2614
        %v2841 = vmul.f32 %v2539, %v2629
        %v2842 = vmul.f32 %v2541, %v2644
        %v2843 = vmul.f32 %v2543, %v2659
        %v2844 = vmul.f32 %v2545, %v2674
        %v2845 = vmul.f32 %v2547, %v2689
        %v2846 = vmul.f32 %v2549, %v2704
        %v2847 = vmul.f32 %v2551, %v2719
        %v2848 = vmul.f32 %v2553, %v2734
        %v2849 = vmul.f32 %v2555, %v2749
        %v2850 = vmul.f32 %v2557, %v2764
        %v2851 = vmul.f32 %v2559, %v2779
        %v2852 = vmul.f32 %v2561, %v2794
        %v2853 = vmul.f32 %v2563, %v2809
        %v2854 = vmul.f32 %v2565, %v2824
        %v2855 = vmul.f32 %v2567, %v2839
        %2856 = vmatpush.xpose.msra.mxu0 %v2855
        %2857 = vmatpush.xpose.msra.mxu0 %v2854
        %2858 = vmatpush.xpose.msra.mxu0 %v2853
        %2859 = vmatpush.xpose.msra.mxu0 %v2852
        %2860 = vmatpush.xpose.msra.mxu0 %v2851
        %2861 = vmatpush.xpose.msra.mxu0 %v2850
        %2862 = vmatpush.xpose.msra.mxu0 %v2849
        %2863 = vmatpush.xpose.msra.mxu0 %v2848
        %2864 = vmatpush.xpose.msra.mxu0 %v2847
        %2865 = vmatpush.xpose.msra.mxu0 %v2846
        %2866 = vmatpush.xpose.msra.mxu0 %v2845
        %2867 = vmatpush.xpose.msra.mxu0 %v2844
        %2868 = vmatpush.xpose.msra.mxu0 %v2843
        %2869 = vmatpush.xpose.msra.mxu0 %v2842
        %2870 = vmatpush.xpose.msra.mxu0 %v2841
        %2871 = vmatpush.xpose.msra.mxu0 %v2840
        %2872 = vmatmul.f32.gmra.mxu0 %v655
        %v2873 = vpop.f32.mrf.mxu0
        %v2874 = vadd.f32 0.0, %v2873
        %2875 = vdwg.mxu0
        %2877 = vset.pattern.permute.xlu0 0
        %2878 = vperm.xlu0 %2877, %v478
        %v2879 = vpop.permute.xlu0 %2878
        %2882 = vset.pattern.permute.xlu0 0
        %2883 = vperm.xlu0 %2882, %v479
        %v2884 = vpop.permute.xlu0 %2883
        %2887 = vset.pattern.permute.xlu0 0
        %2888 = vperm.xlu0 %2887, %v480
        %v2889 = vpop.permute.xlu0 %2888
        %2892 = vset.pattern.permute.xlu0 0
        %2893 = vperm.xlu0 %2892, %v481
        %v2894 = vpop.permute.xlu0 %2893
        %v2897 = vsel %vm546, %v474, 0
        %v2900 = vsel %vm546, %v475, 0
        %v2903 = vsel %vm546, %v476, 0
        %v2906 = vsel %vm546, %v477, 0
        %2908 = vmatpush.msra.mxu0 0.0
        %2909 = vmatpush.msra.mxu0 0.0
        %2910 = vmatpush.msra.mxu0 0.0
        %2911 = vmatpush.msra.mxu0 0.0
        %2912 = vmatpush.msra.mxu0 0.0
        %2913 = vmatpush.msra.mxu0 0.0
        %2914 = vmatpush.msra.mxu0 0.0
        %2915 = vmatpush.msra.mxu0 0.0
        %2916 = vmatpush.msra.mxu0 0.0
        %2917 = vmatpush.msra.mxu0 0.0
        %2918 = vmatpush.msra.mxu0 0.0
        %2919 = vmatpush.msra.mxu0 0.0
        %2920 = vmatpush.msra.mxu0 %v2874
        %2921 = vmatpush.msra.mxu0 %v2341
        %2922 = vmatpush.msra.mxu0 %v1808
        %2923 = vmatpush.msra.mxu0 %v1275
        %2924 = vmatmul.f32.gmra.mxu0 %v2897
        %v2925 = vpop.f32.mrf.mxu0
        %v2926 = vadd.f32 %v2879, %v2925
        %2927 = vmatmul.f32.gmra.mxu0 %v2900
        %v2928 = vpop.f32.mrf.mxu0
        %v2929 = vadd.f32 %v2884, %v2928
        %2930 = vmatmul.f32.gmra.mxu0 %v2903
        %v2931 = vpop.f32.mrf.mxu0
        %v2932 = vadd.f32 %v2889, %v2931
        %2933 = vmatmul.f32.gmra.mxu0 %v2906
        %v2934 = vpop.f32.mrf.mxu0
        %v2935 = vadd.f32 %v2894, %v2934
        %2936 = vdwg.mxu0
        %v2938 = vsel %vm546, %v490, 0
        %v2941 = vsel %vm546, %v491, 0
        %v2944 = vsel %vm546, %v492, 0
        %v2947 = vsel %vm546, %v493, 0
        %v2950 = vsel %vm546, %v494, 0
        %v2953 = vsel %vm546, %v495, 0
        %v2956 = vsel %vm546, %v496, 0
        %v2959 = vsel %vm546, %v497, 0
        %2961 = vmatpush.msra.mxu0 0.0
        %2962 = vmatpush.msra.mxu0 0.0
        %2963 = vmatpush.msra.mxu0 0.0
        %2964 = vmatpush.msra.mxu0 0.0
        %2965 = vmatpush.msra.mxu0 0.0
        %2966 = vmatpush.msra.mxu0 0.0
        %2967 = vmatpush.msra.mxu0 0.0
        %2968 = vmatpush.msra.mxu0 0.0
        %2969 = vmatpush.msra.mxu0 0.0
        %2970 = vmatpush.msra.mxu0 0.0
        %2971 = vmatpush.msra.mxu0 0.0
        %2972 = vmatpush.msra.mxu0 0.0
        %2973 = vmatpush.msra.mxu0 %v2935
        %2974 = vmatpush.msra.mxu0 %v2932
        %2975 = vmatpush.msra.mxu0 %v2929
        %2976 = vmatpush.msra.mxu0 %v2926
        %2977 = vmatmul.f32.gmra.mxu0 %v2938
        %v2978 = vpop.f32.mrf.mxu0
        %v2979 = vadd.f32 0.0, %v2978
        %2980 = vmatmul.f32.gmra.mxu0 %v2941
        %v2981 = vpop.f32.mrf.mxu0
        %v2982 = vadd.f32 0.0, %v2981
        %2983 = vmatmul.f32.gmra.mxu0 %v2944
        %v2984 = vpop.f32.mrf.mxu0
        %v2985 = vadd.f32 0.0, %v2984
        %2986 = vmatmul.f32.gmra.mxu0 %v2947
        %v2987 = vpop.f32.mrf.mxu0
        %v2988 = vadd.f32 0.0, %v2987
        %2989 = vmatmul.f32.gmra.mxu0 %v2950
        %v2990 = vpop.f32.mrf.mxu0
        %v2991 = vadd.f32 0.0, %v2990
        %2992 = vmatmul.f32.gmra.mxu0 %v2953
        %v2993 = vpop.f32.mrf.mxu0
        %v2994 = vadd.f32 0.0, %v2993
        %2995 = vmatmul.f32.gmra.mxu0 %v2956
        %v2996 = vpop.f32.mrf.mxu0
        %v2997 = vadd.f32 0.0, %v2996
        %2998 = vmatmul.f32.gmra.mxu0 %v2959
        %v2999 = vpop.f32.mrf.mxu0
        %v3000 = vadd.f32 0.0, %v2999
        %3001 = vdwg.mxu0
        %v3003 = vsel %vm546, %v482, 0
        %v3006 = vsel %vm546, %v483, 0
        %v3009 = vsel %vm546, %v484, 0
        %v3012 = vsel %vm546, %v485, 0
        %v3015 = vsel %vm546, %v486, 0
        %v3018 = vsel %vm546, %v487, 0
        %v3021 = vsel %vm546, %v488, 0
        %v3024 = vsel %vm546, %v489, 0
        %3026 = vmatpush.msra.mxu0 0.0
        %3027 = vmatpush.msra.mxu0 0.0
        %3028 = vmatpush.msra.mxu0 0.0
        %3029 = vmatpush.msra.mxu0 0.0
        %3030 = vmatpush.msra.mxu0 0.0
        %3031 = vmatpush.msra.mxu0 0.0
        %3032 = vmatpush.msra.mxu0 0.0
        %3033 = vmatpush.msra.mxu0 0.0
        %3034 = vmatpush.msra.mxu0 0.0
        %3035 = vmatpush.msra.mxu0 0.0
        %3036 = vmatpush.msra.mxu0 0.0
        %3037 = vmatpush.msra.mxu0 0.0
        %3038 = vmatpush.msra.mxu0 %v681
        %3039 = vmatpush.msra.mxu0 %v680
        %3040 = vmatpush.msra.mxu0 %v679
        %3041 = vmatpush.msra.mxu0 %v678
        %3042 = vmatmul.f32.gmra.mxu0 %v3003
        %v3043 = vpop.f32.mrf.mxu0
        %v3044 = vadd.f32 %v2979, %v3043
        %3045 = vmatmul.f32.gmra.mxu0 %v3006
        %v3046 = vpop.f32.mrf.mxu0
        %v3047 = vadd.f32 %v2982, %v3046
        %3048 = vmatmul.f32.gmra.mxu0 %v3009
        %v3049 = vpop.f32.mrf.mxu0
        %v3050 = vadd.f32 %v2985, %v3049
        %3051 = vmatmul.f32.gmra.mxu0 %v3012
        %v3052 = vpop.f32.mrf.mxu0
        %v3053 = vadd.f32 %v2988, %v3052
        %3054 = vmatmul.f32.gmra.mxu0 %v3015
        %v3055 = vpop.f32.mrf.mxu0
        %v3056 = vadd.f32 %v2991, %v3055
        %3057 = vmatmul.f32.gmra.mxu0 %v3018
        %v3058 = vpop.f32.mrf.mxu0
        %v3059 = vadd.f32 %v2994, %v3058
        %3060 = vmatmul.f32.gmra.mxu0 %v3021
        %v3061 = vpop.f32.mrf.mxu0
        %v3062 = vadd.f32 %v2997, %v3061
        %3063 = vmatmul.f32.gmra.mxu0 %v3024
        %v3064 = vpop.f32.mrf.mxu0
        %v3065 = vadd.f32 %v3000, %v3064
        %3066 = vdwg.mxu0
        %3068 = vset.pattern.permute.xlu0 0
        %3069 = vperm.xlu0 %3068, %v498
        %v3070 = vpop.permute.xlu0 %3069
        %3073 = vset.pattern.permute.xlu0 0
        %3074 = vperm.xlu0 %3073, %v499
        %v3075 = vpop.permute.xlu0 %3074
        %3078 = vset.pattern.permute.xlu0 0
        %3079 = vperm.xlu0 %3078, %v500
        %v3080 = vpop.permute.xlu0 %3079
        %3083 = vset.pattern.permute.xlu0 0
        %3084 = vperm.xlu0 %3083, %v501
        %v3085 = vpop.permute.xlu0 %3084
        %3088 = vset.pattern.permute.xlu0 0
        %3089 = vperm.xlu0 %3088, %v502
        %v3090 = vpop.permute.xlu0 %3089
        %3093 = vset.pattern.permute.xlu0 0
        %3094 = vperm.xlu0 %3093, %v503
        %v3095 = vpop.permute.xlu0 %3094
        %3098 = vset.pattern.permute.xlu0 0
        %3099 = vperm.xlu0 %3098, %v504
        %v3100 = vpop.permute.xlu0 %3099
        %3103 = vset.pattern.permute.xlu0 0
        %3104 = vperm.xlu0 %3103, %v505
        %v3105 = vpop.permute.xlu0 %3104
        %v3107 = vadd.f32 %v3044, %v3070
        %v3108 = vadd.f32 %v3047, %v3075
        %v3109 = vadd.f32 %v3050, %v3080
        %v3110 = vadd.f32 %v3053, %v3085
        %v3111 = vadd.f32 %v3056, %v3090
        %v3112 = vadd.f32 %v3059, %v3095
        %v3113 = vadd.f32 %v3062, %v3100
        %v3114 = vadd.f32 %v3065, %v3105
        %3115 = vst [vmem:[#allocation2] sm:$0xff] %v3107
        %3116 = vst [vmem:[#allocation2 + $0x8] sm:$0xff] %v3108
        %3117 = vst [vmem:[#allocation2 + $0x10] sm:$0xff] %v3109
        %3118 = vst [vmem:[#allocation2 + $0x18] sm:$0xff] %v3110
        %3119 = vst [vmem:[#allocation2 + $0x20] sm:$0xff] %v3111
        %3120 = vst [vmem:[#allocation2 + $0x28] sm:$0xff] %v3112
        %3121 = vst [vmem:[#allocation2 + $0x30] sm:$0xff] %v3113
        %3122 = vst [vmem:[#allocation2 + $0x38] sm:$0xff] %v3114
        %v3123 = vstv 0
        %v3124 = vadd.s32 %v658, %v3123
        %vm3125 = vcmp.lt.s32.totalorder %v3124, 8
        %v3126 = vsel %vm3125, 1, 0
        %vm3127 = vcmp.eq.s32.totalorder %v3126, 1
        %v3128 = vsel %vm3127, %v3107, 0.0
        %v3129 = vsel %vm3127, %v3108, 0.0
        %v3130 = vsel %vm3127, %v3109, 0.0
        %v3131 = vsel %vm3127, %v3110, 0.0
        %v3132 = vsel %vm3127, %v3111, 0.0
        %v3133 = vsel %vm3127, %v3112, 0.0
        %v3134 = vsel %vm3127, %v3113, 0.0
        %v3135 = vsel %vm3127, %v3114, 0.0
        %v3136 = vld [vmem:[#allocation3] sm:$0xff]
        %v3137 = vld [vmem:[#allocation3 + $0x8] sm:$0xff]
        %v3138 = vld [vmem:[#allocation3 + $0x10] sm:$0xff]
        %v3139 = vld [vmem:[#allocation3 + $0x18] sm:$0xff]
        %v3140 = vld [vmem:[#allocation3 + $0x20] sm:$0xff]
        %v3141 = vld [vmem:[#allocation3 + $0x28] sm:$0xff]
        %v3142 = vld [vmem:[#allocation3 + $0x30] sm:$0xff]
        %v3143 = vld [vmem:[#allocation3 + $0x38] sm:$0xff]
        %3144 = vadd.xlane.f32.xlu0 %v3128
        %v3145 = vpop.xlane.xlu0 %3144
        %3146 = vadd.xlane.f32.xlu0 %v3129
        %v3147 = vpop.xlane.xlu0 %3146
        %3148 = vadd.xlane.f32.xlu0 %v3130
        %v3149 = vpop.xlane.xlu0 %3148
        %3150 = vadd.xlane.f32.xlu0 %v3131
        %v3151 = vpop.xlane.xlu0 %3150
        %3152 = vadd.xlane.f32.xlu0 %v3132
        %v3153 = vpop.xlane.xlu0 %3152
        %3154 = vadd.xlane.f32.xlu0 %v3133
        %v3155 = vpop.xlane.xlu0 %3154
        %3156 = vadd.xlane.f32.xlu0 %v3134
        %v3157 = vpop.xlane.xlu0 %3156
        %3158 = vadd.xlane.f32.xlu0 %v3135
        %v3159 = vpop.xlane.xlu0 %3158
        %v3160 = vadd.f32 %v3136, %v3145
        %v3161 = vadd.f32 %v3137, %v3147
        %v3162 = vadd.f32 %v3138, %v3149
        %v3163 = vadd.f32 %v3139, %v3151
        %v3164 = vadd.f32 %v3140, %v3153
        %v3165 = vadd.f32 %v3141, %v3155
        %v3166 = vadd.f32 %v3142, %v3157
        %v3167 = vadd.f32 %v3143, %v3159
        %3168 = vst.msk [vmem:[#allocation3] sm:$0xff] %vm661, %v3160
        %3169 = vst.msk [vmem:[#allocation3 + $0x8] sm:$0xff] %vm661, %v3161
        %3170 = vst.msk [vmem:[#allocation3 + $0x10] sm:$0xff] %vm661, %v3162
        %3171 = vst.msk [vmem:[#allocation3 + $0x18] sm:$0xff] %vm661, %v3163
        %3172 = vst.msk [vmem:[#allocation3 + $0x20] sm:$0xff] %vm661, %v3164
        %3173 = vst.msk [vmem:[#allocation3 + $0x28] sm:$0xff] %vm661, %v3165
        %3174 = vst.msk [vmem:[#allocation3 + $0x30] sm:$0xff] %vm661, %v3166
        %3175 = vst.msk [vmem:[#allocation3 + $0x38] sm:$0xff] %vm661, %v3167
        %v3176 = vld [vmem:[#allocation3] sm:$0xff]
        %v3177 = vld [vmem:[#allocation3 + $0x8] sm:$0xff]
        %v3178 = vld [vmem:[#allocation3 + $0x10] sm:$0xff]
        %v3179 = vld [vmem:[#allocation3 + $0x18] sm:$0xff]
        %v3180 = vld [vmem:[#allocation3 + $0x20] sm:$0xff]
        %v3181 = vld [vmem:[#allocation3 + $0x28] sm:$0xff]
        %v3182 = vld [vmem:[#allocation3 + $0x30] sm:$0xff]
        %v3183 = vld [vmem:[#allocation3 + $0x38] sm:$0xff]
        %v3184 = vmul.f32 %v3176, 0.125
        %v3185 = vmul.f32 %v3177, 0.125
        %v3186 = vmul.f32 %v3178, 0.125
        %v3187 = vmul.f32 %v3179, 0.125
        %v3188 = vmul.f32 %v3180, 0.125
        %v3189 = vmul.f32 %v3181, 0.125
        %v3190 = vmul.f32 %v3182, 0.125
        %v3191 = vmul.f32 %v3183, 0.125
        %v3192 = vld [vmem:[#allocation2] sm:$0xff]
        %v3193 = vld [vmem:[#allocation2 + $0x8] sm:$0xff]
        %v3194 = vld [vmem:[#allocation2 + $0x10] sm:$0xff]
        %v3195 = vld [vmem:[#allocation2 + $0x18] sm:$0xff]
        %v3196 = vld [vmem:[#allocation2 + $0x20] sm:$0xff]
        %v3197 = vld [vmem:[#allocation2 + $0x28] sm:$0xff]
        %v3198 = vld [vmem:[#allocation2 + $0x30] sm:$0xff]
        %v3199 = vld [vmem:[#allocation2 + $0x38] sm:$0xff]
        %3201 = vset.pattern.permute.xlu0 0
        %3202 = vperm.xlu0 %3201, %v3184
        %v3203 = vpop.permute.xlu0 %3202
        %3206 = vset.pattern.permute.xlu0 0
        %3207 = vperm.xlu0 %3206, %v3185
        %v3208 = vpop.permute.xlu0 %3207
        %3211 = vset.pattern.permute.xlu0 0
        %3212 = vperm.xlu0 %3211, %v3186
        %v3213 = vpop.permute.xlu0 %3212
        %3216 = vset.pattern.permute.xlu0 0
        %3217 = vperm.xlu0 %3216, %v3187
        %v3218 = vpop.permute.xlu0 %3217
        %3221 = vset.pattern.permute.xlu0 0
        %3222 = vperm.xlu0 %3221, %v3188
        %v3223 = vpop.permute.xlu0 %3222
        %3226 = vset.pattern.permute.xlu0 0
        %3227 = vperm.xlu0 %3226, %v3189
        %v3228 = vpop.permute.xlu0 %3227
        %3231 = vset.pattern.permute.xlu0 0
        %3232 = vperm.xlu0 %3231, %v3190
        %v3233 = vpop.permute.xlu0 %3232
        %3236 = vset.pattern.permute.xlu0 0
        %3237 = vperm.xlu0 %3236, %v3191
        %v3238 = vpop.permute.xlu0 %3237
        %v3240 = vsub.f32 %v3192, %v3203
        %v3241 = vsub.f32 %v3193, %v3208
        %v3242 = vsub.f32 %v3194, %v3213
        %v3243 = vsub.f32 %v3195, %v3218
        %v3244 = vsub.f32 %v3196, %v3223
        %v3245 = vsub.f32 %v3197, %v3228
        %v3246 = vsub.f32 %v3198, %v3233
        %v3247 = vsub.f32 %v3199, %v3238
        %v3248 = vsel %vm3127, %v3240, 0.0
        %v3249 = vsel %vm3127, %v3241, 0.0
        %v3250 = vsel %vm3127, %v3242, 0.0
        %v3251 = vsel %vm3127, %v3243, 0.0
        %v3252 = vsel %vm3127, %v3244, 0.0
        %v3253 = vsel %vm3127, %v3245, 0.0
        %v3254 = vsel %vm3127, %v3246, 0.0
        %v3255 = vsel %vm3127, %v3247, 0.0
        %v3256 = vld [vmem:[#allocation4] sm:$0xff]
        %v3257 = vld [vmem:[#allocation4 + $0x8] sm:$0xff]
        %v3258 = vld [vmem:[#allocation4 + $0x10] sm:$0xff]
        %v3259 = vld [vmem:[#allocation4 + $0x18] sm:$0xff]
        %v3260 = vld [vmem:[#allocation4 + $0x20] sm:$0xff]
        %v3261 = vld [vmem:[#allocation4 + $0x28] sm:$0xff]
        %v3262 = vld [vmem:[#allocation4 + $0x30] sm:$0xff]
        %v3263 = vld [vmem:[#allocation4 + $0x38] sm:$0xff]
        %v3264 = vmul.f32 %v3248, %v3248
        %v3265 = vmul.f32 %v3249, %v3249
        %v3266 = vmul.f32 %v3250, %v3250
        %v3267 = vmul.f32 %v3251, %v3251
        %v3268 = vmul.f32 %v3252, %v3252
        %v3269 = vmul.f32 %v3253, %v3253
        %v3270 = vmul.f32 %v3254, %v3254
        %v3271 = vmul.f32 %v3255, %v3255
        %3272 = vadd.xlane.f32.xlu0 %v3264
        %v3273 = vpop.xlane.xlu0 %3272
        %3274 = vadd.xlane.f32.xlu0 %v3265
        %v3275 = vpop.xlane.xlu0 %3274
        %3276 = vadd.xlane.f32.xlu0 %v3266
        %v3277 = vpop.xlane.xlu0 %3276
        %3278 = vadd.xlane.f32.xlu0 %v3267
        %v3279 = vpop.xlane.xlu0 %3278
        %3280 = vadd.xlane.f32.xlu0 %v3268
        %v3281 = vpop.xlane.xlu0 %3280
        %3282 = vadd.xlane.f32.xlu0 %v3269
        %v3283 = vpop.xlane.xlu0 %3282
        %3284 = vadd.xlane.f32.xlu0 %v3270
        %v3285 = vpop.xlane.xlu0 %3284
        %3286 = vadd.xlane.f32.xlu0 %v3271
        %v3287 = vpop.xlane.xlu0 %3286
        %v3288 = vadd.f32 %v3256, %v3273
        %v3289 = vadd.f32 %v3257, %v3275
        %v3290 = vadd.f32 %v3258, %v3277
        %v3291 = vadd.f32 %v3259, %v3279
        %v3292 = vadd.f32 %v3260, %v3281
        %v3293 = vadd.f32 %v3261, %v3283
        %v3294 = vadd.f32 %v3262, %v3285
        %v3295 = vadd.f32 %v3263, %v3287
        %3296 = vst.msk [vmem:[#allocation4] sm:$0xff] %vm661, %v3288
        %3297 = vst.msk [vmem:[#allocation4 + $0x8] sm:$0xff] %vm661, %v3289
        %3298 = vst.msk [vmem:[#allocation4 + $0x10] sm:$0xff] %vm661, %v3290
        %3299 = vst.msk [vmem:[#allocation4 + $0x18] sm:$0xff] %vm661, %v3291
        %3300 = vst.msk [vmem:[#allocation4 + $0x20] sm:$0xff] %vm661, %v3292
        %3301 = vst.msk [vmem:[#allocation4 + $0x28] sm:$0xff] %vm661, %v3293
        %3302 = vst.msk [vmem:[#allocation4 + $0x30] sm:$0xff] %vm661, %v3294
        %3303 = vst.msk [vmem:[#allocation4 + $0x38] sm:$0xff] %vm661, %v3295
        %v3304 = vld [vmem:[#allocation4] sm:$0xff]
        %v3305 = vld [vmem:[#allocation4 + $0x8] sm:$0xff]
        %v3306 = vld [vmem:[#allocation4 + $0x10] sm:$0xff]
        %v3307 = vld [vmem:[#allocation4 + $0x18] sm:$0xff]
        %v3308 = vld [vmem:[#allocation4 + $0x20] sm:$0xff]
        %v3309 = vld [vmem:[#allocation4 + $0x28] sm:$0xff]
        %v3310 = vld [vmem:[#allocation4 + $0x30] sm:$0xff]
        %v3311 = vld [vmem:[#allocation4 + $0x38] sm:$0xff]
        %v3312 = vmul.f32 %v3304, 0.125
        %v3313 = vmul.f32 %v3305, 0.125
        %v3314 = vmul.f32 %v3306, 0.125
        %v3315 = vmul.f32 %v3307, 0.125
        %v3316 = vmul.f32 %v3308, 0.125
        %v3317 = vmul.f32 %v3309, 0.125
        %v3318 = vmul.f32 %v3310, 0.125
        %v3319 = vmul.f32 %v3311, 0.125
        %v3320 = vadd.f32 %v3312, 1e-05
        %v3321 = vadd.f32 %v3313, 1e-05
        %v3322 = vadd.f32 %v3314, 1e-05
        %v3323 = vadd.f32 %v3315, 1e-05
        %v3324 = vadd.f32 %v3316, 1e-05
        %v3325 = vadd.f32 %v3317, 1e-05
        %v3326 = vadd.f32 %v3318, 1e-05
        %v3327 = vadd.f32 %v3319, 1e-05
        %v3328 = vrsqrt.pop %v3320
        %v3329 = vmul.f32 %v3328, %v3320
        %v3330 = vmul.f32 %v3329, %v3328
        %v3331 = vmul.f32 0.5, %v3330
        %v3332 = vsub.f32 1.5, %v3331
        %v3333 = vmul.f32 %v3328, %v3332
        %vm3334 = vweird.f32 %v3320
        %vm3335 = vweird.f32 %v3328
        %vm3336 = vmor %vm3334, %vm3335
        %v3337 = vsel %vm3336, %v3328, %v3333
        %v3338 = vrsqrt.pop %v3321
        %v3339 = vmul.f32 %v3338, %v3321
        %v3340 = vmul.f32 %v3339, %v3338
        %v3341 = vmul.f32 0.5, %v3340
        %v3342 = vsub.f32 1.5, %v3341
        %v3343 = vmul.f32 %v3338, %v3342
        %vm3344 = vweird.f32 %v3321
        %vm3345 = vweird.f32 %v3338
        %vm3346 = vmor %vm3344, %vm3345
        %v3347 = vsel %vm3346, %v3338, %v3343
        %v3348 = vrsqrt.pop %v3322
        %v3349 = vmul.f32 %v3348, %v3322
        %v3350 = vmul.f32 %v3349, %v3348
        %v3351 = vmul.f32 0.5, %v3350
        %v3352 = vsub.f32 1.5, %v3351
        %v3353 = vmul.f32 %v3348, %v3352
        %vm3354 = vweird.f32 %v3322
        %vm3355 = vweird.f32 %v3348
        %vm3356 = vmor %vm3354, %vm3355
        %v3357 = vsel %vm3356, %v3348, %v3353
        %v3358 = vrsqrt.pop %v3323
        %v3359 = vmul.f32 %v3358, %v3323
        %v3360 = vmul.f32 %v3359, %v3358
        %v3361 = vmul.f32 0.5, %v3360
        %v3362 = vsub.f32 1.5, %v3361
        %v3363 = vmul.f32 %v3358, %v3362
        %vm3364 = vweird.f32 %v3323
        %vm3365 = vweird.f32 %v3358
        %vm3366 = vmor %vm3364, %vm3365
        %v3367 = vsel %vm3366, %v3358, %v3363
        %v3368 = vrsqrt.pop %v3324
        %v3369 = vmul.f32 %v3368, %v3324
        %v3370 = vmul.f32 %v3369, %v3368
        %v3371 = vmul.f32 0.5, %v3370
        %v3372 = vsub.f32 1.5, %v3371
        %v3373 = vmul.f32 %v3368, %v3372
        %vm3374 = vweird.f32 %v3324
        %vm3375 = vweird.f32 %v3368
        %vm3376 = vmor %vm3374, %vm3375
        %v3377 = vsel %vm3376, %v3368, %v3373
        %v3378 = vrsqrt.pop %v3325
        %v3379 = vmul.f32 %v3378, %v3325
        %v3380 = vmul.f32 %v3379, %v3378
        %v3381 = vmul.f32 0.5, %v3380
        %v3382 = vsub.f32 1.5, %v3381
        %v3383 = vmul.f32 %v3378, %v3382
        %vm3384 = vweird.f32 %v3325
        %vm3385 = vweird.f32 %v3378
        %vm3386 = vmor %vm3384, %vm3385
        %v3387 = vsel %vm3386, %v3378, %v3383
        %v3388 = vrsqrt.pop %v3326
        %v3389 = vmul.f32 %v3388, %v3326
        %v3390 = vmul.f32 %v3389, %v3388
        %v3391 = vmul.f32 0.5, %v3390
        %v3392 = vsub.f32 1.5, %v3391
        %v3393 = vmul.f32 %v3388, %v3392
        %vm3394 = vweird.f32 %v3326
        %vm3395 = vweird.f32 %v3388
        %vm3396 = vmor %vm3394, %vm3395
        %v3397 = vsel %vm3396, %v3388, %v3393
        %v3398 = vrsqrt.pop %v3327
        %v3399 = vmul.f32 %v3398, %v3327
        %v3400 = vmul.f32 %v3399, %v3398
        %v3401 = vmul.f32 0.5, %v3400
        %v3402 = vsub.f32 1.5, %v3401
        %v3403 = vmul.f32 %v3398, %v3402
        %vm3404 = vweird.f32 %v3327
        %vm3405 = vweird.f32 %v3398
        %vm3406 = vmor %vm3404, %vm3405
        %v3407 = vsel %vm3406, %v3398, %v3403
        %v3408 = vld [vmem:[#allocation2] sm:$0xff]
        %v3409 = vld [vmem:[#allocation2 + $0x8] sm:$0xff]
        %v3410 = vld [vmem:[#allocation2 + $0x10] sm:$0xff]
        %v3411 = vld [vmem:[#allocation2 + $0x18] sm:$0xff]
        %v3412 = vld [vmem:[#allocation2 + $0x20] sm:$0xff]
        %v3413 = vld [vmem:[#allocation2 + $0x28] sm:$0xff]
        %v3414 = vld [vmem:[#allocation2 + $0x30] sm:$0xff]
        %v3415 = vld [vmem:[#allocation2 + $0x38] sm:$0xff]
        %v3416 = vsub.f32 %v3408, %v3203
        %v3417 = vsub.f32 %v3409, %v3208
        %v3418 = vsub.f32 %v3410, %v3213
        %v3419 = vsub.f32 %v3411, %v3218
        %v3420 = vsub.f32 %v3412, %v3223
        %v3421 = vsub.f32 %v3413, %v3228
        %v3422 = vsub.f32 %v3414, %v3233
        %v3423 = vsub.f32 %v3415, %v3238
        %3425 = vset.pattern.permute.xlu0 0
        %3426 = vperm.xlu0 %3425, %v3337
        %v3427 = vpop.permute.xlu0 %3426
        %3430 = vset.pattern.permute.xlu0 0
        %3431 = vperm.xlu0 %3430, %v3347
        %v3432 = vpop.permute.xlu0 %3431
        %3435 = vset.pattern.permute.xlu0 0
        %3436 = vperm.xlu0 %3435, %v3357
        %v3437 = vpop.permute.xlu0 %3436
        %3440 = vset.pattern.permute.xlu0 0
        %3441 = vperm.xlu0 %3440, %v3367
        %v3442 = vpop.permute.xlu0 %3441
        %3445 = vset.pattern.permute.xlu0 0
        %3446 = vperm.xlu0 %3445, %v3377
        %v3447 = vpop.permute.xlu0 %3446
        %3450 = vset.pattern.permute.xlu0 0
        %3451 = vperm.xlu0 %3450, %v3387
        %v3452 = vpop.permute.xlu0 %3451
        %3455 = vset.pattern.permute.xlu0 0
        %3456 = vperm.xlu0 %3455, %v3397
        %v3457 = vpop.permute.xlu0 %3456
        %3460 = vset.pattern.permute.xlu0 0
        %3461 = vperm.xlu0 %3460, %v3407
        %v3462 = vpop.permute.xlu0 %3461
        %v3464 = vmul.f32 %v3416, %v3427
        %v3465 = vmul.f32 %v3417, %v3432
        %v3466 = vmul.f32 %v3418, %v3437
        %v3467 = vmul.f32 %v3419, %v3442
        %v3468 = vmul.f32 %v3420, %v3447
        %v3469 = vmul.f32 %v3421, %v3452
        %v3470 = vmul.f32 %v3422, %v3457
        %v3471 = vmul.f32 %v3423, %v3462
        %v3472 = vmax.f32 %v3464, 0.0
        %v3473 = vmax.f32 %v3465, 0.0
        %v3474 = vmax.f32 %v3466, 0.0
        %v3475 = vmax.f32 %v3467, 0.0
        %v3476 = vmax.f32 %v3468, 0.0
        %v3477 = vmax.f32 %v3469, 0.0
        %v3478 = vmax.f32 %v3470, 0.0
        %v3479 = vmax.f32 %v3471, 0.0
        %3481 = vset.pattern.permute.xlu0 0
        %3482 = vperm.xlu0 %3481, %v510
        %v3483 = vpop.permute.xlu0 %3482
        %3486 = vset.pattern.permute.xlu0 0
        %3487 = vperm.xlu0 %3486, %v511
        %v3488 = vpop.permute.xlu0 %3487
        %3491 = vset.pattern.permute.xlu0 0
        %3492 = vperm.xlu0 %3491, %v512
        %v3493 = vpop.permute.xlu0 %3492
        %3496 = vset.pattern.permute.xlu0 0
        %3497 = vperm.xlu0 %3496, %v513
        %v3498 = vpop.permute.xlu0 %3497
        %vm3500 = vcmask 523264
        %v3502 = vsel %vm3500, %v506, 0
        %v3505 = vsel %vm3500, %v507, 0
        %v3508 = vsel %vm3500, %v508, 0
        %v3511 = vsel %vm3500, %v509, 0
        %3513 = vmatpush.msra.mxu0 0.0
        %3514 = vmatpush.msra.mxu0 0.0
        %3515 = vmatpush.msra.mxu0 0.0
        %3516 = vmatpush.msra.mxu0 0.0
        %3517 = vmatpush.msra.mxu0 0.0
        %3518 = vmatpush.msra.mxu0 0.0
        %3519 = vmatpush.msra.mxu0 0.0
        %3520 = vmatpush.msra.mxu0 0.0
        %3521 = vmatpush.msra.mxu0 %v3479
        %3522 = vmatpush.msra.mxu0 %v3478
        %3523 = vmatpush.msra.mxu0 %v3477
        %3524 = vmatpush.msra.mxu0 %v3476
        %3525 = vmatpush.msra.mxu0 %v3475
        %3526 = vmatpush.msra.mxu0 %v3474
        %3527 = vmatpush.msra.mxu0 %v3473
        %3528 = vmatpush.msra.mxu0 %v3472
        %3529 = vmatmul.f32.gmra.mxu0 %v3502
        %v3530 = vpop.f32.mrf.mxu0
        %v3531 = vadd.f32 %v3483, %v3530
        %3532 = vmatmul.f32.gmra.mxu0 %v3505
        %v3533 = vpop.f32.mrf.mxu0
        %v3534 = vadd.f32 %v3488, %v3533
        %3535 = vmatmul.f32.gmra.mxu0 %v3508
        %v3536 = vpop.f32.mrf.mxu0
        %v3537 = vadd.f32 %v3493, %v3536
        %3538 = vmatmul.f32.gmra.mxu0 %v3511
        %v3539 = vpop.f32.mrf.mxu0
        %v3540 = vadd.f32 %v3498, %v3539
        %3541 = vdwg.mxu0
        %v3542 = vld [vmem:[%s465] sm:$0xff]
        %v3543 = vld [vmem:[%s465 + $0x8] sm:$0xff]
        %v3544 = vld [vmem:[%s465 + $0x10] sm:$0xff]
        %v3545 = vld [vmem:[%s465 + $0x18] sm:$0xff]
        %v3546 = vadd.f32 %v3542, %v3531
        %v3547 = vadd.f32 %v3543, %v3534
        %v3548 = vadd.f32 %v3544, %v3537
        %v3549 = vadd.f32 %v3545, %v3540
        %v3550 = vsel %vm3127, %v3546, 0.0
        %v3551 = vsel %vm3127, %v3547, 0.0
        %v3552 = vsel %vm3127, %v3548, 0.0
        %v3553 = vsel %vm3127, %v3549, 0.0
        %3554 = vst [vmem:[%s460] sm:$0xff] %v3550
        %3555 = vst [vmem:[%s460 + $0x8] sm:$0xff] %v3551
        %3556 = vst [vmem:[%s460 + $0x10] sm:$0xff] %v3552
        %3557 = vst [vmem:[%s460 + $0x18] sm:$0xff] %v3553
        %s3558 = sand.u32 %s335, 1
        %s3559 = scalar_lea.sflag [#allocation6], %s3558
        %s3560 = sand.u32 %s335, 1
        %s3561 = smul.addr %s3560, 32
        %s3562 = scalar_lea.vmem [#allocation5], %s3561
        // Predicated region
        $region77: #{tpu_custom_call.1} parent=75 // pred_check
          %p3563 = pneg %p345
        $region78: #{tpu_custom_call.1} parent=75 // pred_check_branch
          %3565 = sbr.rel (%p3563) target = $region80
        $region79: #{tpu_custom_call.1} parent=75 // pred_region
          %3567 = vsyncadd %s3559, 0
          %s3568 = smul.addr %s28, 4
          %s3569 = smul.addr %s3568, 8
          %s3570 = scalar_lea.hbm %s14, %s3569
          %s3571 = sshll.u32 %s3562, 4
          %s3572 = int_to_ptr.vmem [resolvable:$true] %s3571
          %s3573 = sshll.u32 %s3570, 4
          %s3574 = int_to_ptr.hbm [resolvable:$true] %s3573
          %3579 = dma.vmem_to_hbm [thread:$0]  %s3572, 512, %s3574, %s3559, 128, 128, 8
        $region80: #{tpu_custom_call.1} parent=75 // pred_fallthru
          _
      $region76: #{tpu_custom_call.1} parent=5 // pred_fallthru
        _
      %p3580 = scmp.le.s32.totalorder 2, %s23
      // Predicated region
      $region81: #{tpu_custom_call.1} parent=5 // pred_check
        %p3581 = pneg %p3580
      $region82: #{tpu_custom_call.1} parent=5 // pred_check_branch
        %3583 = sbr.rel (%p3581) target = $region84
      $region83: #{tpu_custom_call.1} parent=5 // pred_region
        %s3584 = ssub.s32 %s23, 2
        // Predicated region
        $region85: #{tpu_custom_call.1} parent=83 // pred_check
          %p3585 = pneg %p351
        $region86: #{tpu_custom_call.1} parent=83 // pred_check_branch
          %3587 = sbr.rel (%p3585) target = $region88
        $region87: #{tpu_custom_call.1} parent=83 // pred_region
          %s3588 = sand.u32 %s336, 1
          %s3589 = scalar_lea.sflag [#allocation6], %s3588
          %s3590 = sand.u32 %s336, 1
          %s3591 = smul.addr %s3590, 32
          %s3592 = scalar_lea.vmem [#allocation5], %s3591
          %3594 = dma.done %s3589, 512
        $region88: #{tpu_custom_call.1} parent=83 // pred_fallthru
          _
      $region84: #{tpu_custom_call.1} parent=5 // pred_fallthru
        _
    $region6: #{tpu_custom_call.1} parent=1 // loop_footer
      %s27 = sadd.s32 1, %s23
    $region7: #{tpu_custom_call.1} parent=1 // loop_footer_branch
      %22 = sbr.rel target = $region3
    $region8: #{tpu_custom_call.1} parent=1 // loop_exit
      _
    %3595 = vsyncpa [#allocation6], 1
    %s3596 = scalar_lea.sflag [#allocation6], 1
    %3597 = vsyncpa %s3596, 1

</llo_original>
